<compile_context>
chip_gen: v5e
topology: v5e:2x2
jax: 0.10.0
libtpu: 0.0.40
codegen_flags: <defaults>
</compile_context>

<pallas_src>
import functools

import jax
import jax.numpy as jnp
from jax.experimental import pallas as pl
from jax.experimental.pallas import tpu as pltpu

EPS = 1e-5
KSIZE = 3
LANE = 128
SUBLANE = 8
VMEM_LIMIT_BYTES = 32 * 1024 * 1024       # explicit; safe on v5e/v6e/v7x
VMEM_TILE_BUDGET = 24 * 1024 * 1024       # leave double-buffering headroom


def _round_up(x, m):
    return ((x + m - 1) // m) * m


# ----------------------------- Pallas kernels ------------------------------ #

def _conv_bias_stats_kernel(cols_ref, w_ref, b_ref, y_ref, psum_ref, psq_ref,
                            *, m_valid, tm):
    """One M tile: conv-as-matmul (+bias) and per-tile partial BN statistics."""
    acc = jnp.dot(cols_ref[...], w_ref[...], preferred_element_type=jnp.float32)
    y = acc + b_ref[...]                      # (tm, Cp) f32
    y_ref[...] = y.astype(y_ref.dtype)        # bf16 store -> half the HBM bytes

    # Rows beyond the real M (the M axis is zero-padded to a tile multiple) would
    # contribute `bias` to the batch statistics -> mask them out of the partials.
    if m_valid % tm:
        row = pl.program_id(0) * tm + jax.lax.broadcasted_iota(jnp.int32, (tm, 1), 0)
        ym = jnp.where(row < m_valid, y, 0.0)
    else:
        ym = y

    psum = jnp.sum(ym, axis=0, keepdims=True)          # (1, Cp)
    psq = jnp.sum(ym * ym, axis=0, keepdims=True)      # (1, Cp)
    psum_ref[...] = psum[None]                         # (1, 1, Cp)
    psq_ref[...] = psq[None]                           # (1, 1, Cp)


def _finalize_stats_kernel(psum_ref, psq_ref, gamma_ref, beta_ref,
                           scale_ref, shift_ref, *, inv_count):
    """Reduce per-tile partial sums -> per-channel BN scale/shift (tiny)."""
    mean = jnp.sum(psum_ref[...], axis=0) * inv_count          # (1, Cp)
    ex2 = jnp.sum(psq_ref[...], axis=0) * inv_count            # (1, Cp)
    var = jnp.maximum(ex2 - mean * mean, 0.0)                  # biased batch var
    inv_std = jax.lax.rsqrt(var + EPS)
    scale = gamma_ref[...] * inv_std
    scale_ref[...] = scale
    shift_ref[...] = beta_ref[...] - mean * scale


def _bn_relu_kernel(y_ref, scale_ref, shift_ref, out_ref):
    """Tiled normalize + affine + ReLU on one (tm, Cp) block (f32 math)."""
    z = y_ref[...].astype(jnp.float32) * scale_ref[...] + shift_ref[...]
    out_ref[...] = jnp.maximum(z, 0.0).astype(out_ref.dtype)


# ------------------------------ Pallas wrappers ----------------------------- #

def _pick_tile_m(m, k_p, c_p, budget_bytes=VMEM_TILE_BUDGET):
    """Largest M tile (<=1024) whose double-buffered conv footprint fits the budget."""
    tm = 1024
    while tm > SUBLANE:
        tile_bytes = 2 * (tm * k_p * 2        # cols tile (bf16)
                          + k_p * c_p * 2     # weight slab (bf16)
                          + tm * c_p * 2      # conv output tile (bf16)
                          + 8 * c_p * 4)      # bias + partial-stat rows (f32)
        if tile_bytes <= budget_bytes:
            break
        tm //= 2
    return max(SUBLANE, min(tm, _round_up(m, SUBLANE)))


def _conv_bn_relu_stage(x_ndhwc, w, b, gamma, beta, out_dtype):
    N, D, H, W, Cin = x_ndhwc.shape
    Cout = w.shape[0]
    M = N * D * H * W
    K = KSIZE ** 3 * Cin
    Kp = _round_up(K, LANE)                   # lane-aligned K (no padded MXU lanes)
    Cp = _round_up(Cout, LANE)                # lane-dense output (unmasked stores)

    tm = _pick_tile_m(M, Kp, Cp)
    G = (M + tm - 1) // tm
    Mp = G * tm

    # ---- glue: im2col + lane/tile zero-padding (slicing/concat only) -------
    cols = _im2col_3d(x_ndhwc).astype(jnp.bfloat16)                    # (M, K)
    cols = jnp.pad(cols, ((0, Mp - M), (0, Kp - K)))                   # (Mp, Kp)
    # (Cout, Cin, kd, kh, kw) -> (kd, kh, kw, Cin, Cout) -> (27*Cin, Cout)
    w2 = jnp.transpose(w, (2, 3, 4, 1, 0)).reshape(K, Cout).astype(jnp.bfloat16)
    w2 = jnp.pad(w2, ((0, Kp - K), (0, Cp - Cout)))                    # (Kp, Cp)
    b2 = jnp.pad(b.astype(jnp.float32), (0, Cp - Cout)).reshape(1, Cp)
    g2 = jnp.pad(gamma.astype(jnp.float32), (0, Cp - Cout)).reshape(1, Cp)
    be2 = jnp.pad(beta.astype(jnp.float32), (0, Cp - Cout)).reshape(1, Cp)

    # ---- pass 1: fused conv + bias + per-tile partial BN stats (MXU) -------
    conv_kernel = functools.partial(_conv_bias_stats_kernel, m_valid=M, tm=tm)
    y, psum, psq = pl.pallas_call(
        conv_kernel,
        out_shape=(
            jax.ShapeDtypeStruct((Mp, Cp), jnp.bfloat16),
            jax.ShapeDtypeStruct((G, 1, Cp), jnp.float32),
            jax.ShapeDtypeStruct((G, 1, Cp), jnp.float32),
        ),
        grid=(G,),
        in_specs=[
            pl.BlockSpec((tm, Kp), lambda i: (i, 0)),
            pl.BlockSpec((Kp, Cp), lambda i: (0, 0)),
            pl.BlockSpec((1, Cp), lambda i: (0, 0)),
        ],
        out_specs=(
            pl.BlockSpec((tm, Cp), lambda i: (i, 0)),
            pl.BlockSpec((1, 1, Cp), lambda i: (i, 0, 0)),
            pl.BlockSpec((1, 1, Cp), lambda i: (i, 0, 0)),
        ),
        compiler_params=pltpu.CompilerParams(
            dimension_semantics=("parallel",),
            vmem_limit_bytes=VMEM_LIMIT_BYTES),
    )(cols, w2, b2)

    # ---- pass 2: tiny reduction of partials -> per-channel scale/shift -----
    fin_kernel = functools.partial(_finalize_stats_kernel, inv_count=1.0 / M)
    scale, shift = pl.pallas_call(
        fin_kernel,
        out_shape=(
            jax.ShapeDtypeStruct((1, Cp), jnp.float32),
            jax.ShapeDtypeStruct((1, Cp), jnp.float32),
        ),
        grid=(1,),
        in_specs=[
            pl.BlockSpec((G, 1, Cp), lambda i: (0, 0, 0)),
            pl.BlockSpec((G, 1, Cp), lambda i: (0, 0, 0)),
            pl.BlockSpec((1, Cp), lambda i: (0, 0)),
            pl.BlockSpec((1, Cp), lambda i: (0, 0)),
        ],
        out_specs=(
            pl.BlockSpec((1, Cp), lambda i: (0, 0)),
            pl.BlockSpec((1, Cp), lambda i: (0, 0)),
        ),
        compiler_params=pltpu.CompilerParams(
            dimension_semantics=("arbitrary",),
            vmem_limit_bytes=VMEM_LIMIT_BYTES),
    )(psum, psq, g2, be2)

    # ---- pass 3: tiled normalize + affine + ReLU ----------------------------
    z = pl.pallas_call(
        _bn_relu_kernel,
        out_shape=jax.ShapeDtypeStruct((Mp, Cp), out_dtype),
        grid=(G,),
        in_specs=[
            pl.BlockSpec((tm, Cp), lambda i: (i, 0)),
            pl.BlockSpec((1, Cp), lambda i: (0, 0)),
            pl.BlockSpec((1, Cp), lambda i: (0, 0)),
        ],
        out_specs=pl.BlockSpec((tm, Cp), lambda i: (i, 0)),
        compiler_params=pltpu.CompilerParams(
            dimension_semantics=("parallel",),
            vmem_limit_bytes=VMEM_LIMIT_BYTES),
    )(y, scale, shift)

    return z[:M, :Cout].reshape(N, D, H, W, Cout)


# --------------------------------- JAX glue --------------------------------- #

def _im2col_3d(x_ndhwc, ksize=KSIZE, pad=1):
    # Glue: rectangular 3x3x3 patch extraction (slicing/concat only, no FLOPs).
    N, D, H, W, C = x_ndhwc.shape
    xp = jnp.pad(x_ndhwc, ((0, 0), (pad, pad), (pad, pad), (pad, pad), (0, 0)))
    patches = []
    for kd in range(ksize):
        for kh in range(ksize):
            for kw in range(ksize):
                patches.append(xp[:, kd:kd + D, kh:kh + H, kw:kw + W, :])
    cols = jnp.concatenate(patches, axis=-1)                 # (N, D, H, W, 27*C)
    return cols.reshape(N * D * H * W, ksize ** 3 * C)


def init_conv_block_params(key, in_channels, out_channels, ksize=KSIZE):
    # PyTorch default Conv3d init (uniform +/- 1/sqrt(fan_in)); BN gamma=1, beta=0.
    ks = jax.random.split(key, 4)

    def conv_init(kw_key, kb_key, cin, cout):
        fan_in = cin * ksize ** 3
        bound = 1.0 / jnp.sqrt(jnp.float32(fan_in))
        w = jax.random.uniform(kw_key, (cout, cin, ksize, ksize, ksize),
                               jnp.float32, -bound, bound)
        b = jax.random.uniform(kb_key, (cout,), jnp.float32, -bound, bound)
        return w, b

    w1, b1 = conv_init(ks[0], ks[1], in_channels, out_channels)
    w2, b2 = conv_init(ks[2], ks[3], out_channels, out_channels)
    ones = jnp.ones((out_channels,), jnp.float32)
    zeros = jnp.zeros((out_channels,), jnp.float32)
    return dict(w1=w1, b1=b1, g1=ones, be1=zeros,
                w2=w2, b2=b2, g2=ones, be2=zeros)


def conv_block_forward(x_ncdhw, params):
    x = jnp.transpose(x_ncdhw, (0, 2, 3, 4, 1))              # NCDHW -> NDHWC
    # Stage-1 activations stay in bf16 (they feed a bf16 MXU matmul anyway).
    h = _conv_bn_relu_stage(x, params["w1"], params["b1"], params["g1"],
                            params["be1"], out_dtype=jnp.bfloat16)
    h = _conv_bn_relu_stage(h, params["w2"], params["b2"], params["g2"],
                            params["be2"], out_dtype=jnp.float32)
    return jnp.transpose(h, (0, 4, 1, 2, 3))                 # NDHWC -> NCDHW


# ------------------------------- Reference ---------------------------------- #

def conv_block_reference(x, params):
    def conv(x, w, b):
        y = jax.lax.conv_general_dilated(
            x, w, window_strides=(1, 1, 1),
            padding=((1, 1), (1, 1), (1, 1)),
            dimension_numbers=("NCDHW", "OIDHW", "NCDHW"))
        return y + b[None, :, None, None, None]

    def bn_relu(y, g, be):
        mean = y.mean(axis=(0, 2, 3, 4), keepdims=True)
        var = ((y - mean) ** 2).mean(axis=(0, 2, 3, 4), keepdims=True)
        z = (y - mean) * jax.lax.rsqrt(var + EPS)
        z = z * g[None, :, None, None, None] + be[None, :, None, None, None]
        return jnp.maximum(z, 0.0)

    h = bn_relu(conv(x, params["w1"], params["b1"]), params["g1"], params["be1"])
    h = bn_relu(conv(h, params["w2"], params["b2"]), params["g2"], params["be2"])
    return h


# ---------------------------------- Main ------------------------------------ #

if __name__ == "__main__":
    key = jax.random.PRNGKey(0)
    kx, kp = jax.random.split(key)

    N, Cin, Cout, D, H, W = 2, 4, 8, 8, 8, 8
    x = jax.random.normal(kx, (N, Cin, D, H, W), jnp.float32)
    params = init_conv_block_params(kp, Cin, Cout)

    fwd = jax.jit(lambda xx: conv_block_forward(xx, params))
    out = jax.block_until_ready(fwd(x))

    assert out.shape == (N, Cout, D, H, W)
    assert bool(jnp.all(jnp.isfinite(out)))

    ref = conv_block_reference(x, params)
    max_err = float(jnp.max(jnp.abs(out - ref)))
    # Tolerance covers bf16 MXU inputs / bf16 intermediates (f32 accumulation and
    # f32 BN math) vs the f32 XLA reference conv.
    assert max_err < 1.5e-1, f"max abs err {max_err}"

    print("KERNEL_OK")
</pallas_src>

<mosaic_0001>
module attributes {stable_mosaic.version = 11 : i64} {
  func.func @_conv_bias_stats_kernel(%arg0: i32, %arg1: memref<1024x128xbf16, #tpu.memory_space<vmem>>, %arg2: memref<128x128xbf16, #tpu.memory_space<vmem>>, %arg3: memref<1x128xf32, #tpu.memory_space<vmem>>, %arg4: memref<1024x128xbf16, #tpu.memory_space<vmem>>, %arg5: memref<1x1x128xf32, #tpu.memory_space<vmem>>, %arg6: memref<1x1x128xf32, #tpu.memory_space<vmem>>) attributes {dimension_semantics = [#tpu.dimension_semantics<parallel>], iteration_bounds = array<i64: 1>, scalar_prefetch = 0 : i64, scratch_operands = 0 : i64, tpu.core_type = #tpu.core_type<tc>, window_params = [{transform_indices = @transform_0, window_bounds = array<i64: 1024, 128>}, {pipeline_mode = #tpu.pipeline_mode<synchronous>, transform_indices = @transform_1, window_bounds = array<i64: 128, 128>}, {pipeline_mode = #tpu.pipeline_mode<synchronous>, transform_indices = @transform_2, window_bounds = array<i64: 1, 128>}, {transform_indices = @transform_3, window_bounds = array<i64: 1024, 128>}, {transform_indices = @transform_4, window_bounds = array<i64: 1, 1, 128>}, {transform_indices = @transform_5, window_bounds = array<i64: 1, 1, 128>}]} {
    %c0 = arith.constant 0 : index
    %c0_0 = arith.constant 0 : index
    %0 = vector.load %arg1[%c0, %c0_0] : memref<1024x128xbf16, #tpu.memory_space<vmem>>, vector<1024x128xbf16>
    %c0_1 = arith.constant 0 : index
    %c0_2 = arith.constant 0 : index
    %1 = vector.load %arg2[%c0_1, %c0_2] : memref<128x128xbf16, #tpu.memory_space<vmem>>, vector<128x128xbf16>
    %cst = arith.constant dense<0.000000e+00> : vector<1024x128xf32>
    %2 = tpu.matmul %0, %1, %cst {dimension_numbers = #tpu.dot_dimension_numbers<[1], [0], [0], [1], [0, 0, 1, 1], [], []>} : vector<1024x128xbf16>, vector<128x128xbf16>, vector<1024x128xf32> -> vector<1024x128xf32>
    %c0_3 = arith.constant 0 : index
    %c0_4 = arith.constant 0 : index
    %3 = vector.load %arg3[%c0_3, %c0_4] : memref<1x128xf32, #tpu.memory_space<vmem>>, vector<1x128xf32>
    %4 = vector.broadcast %3 : vector<1x128xf32> to vector<1024x128xf32>
    %5 = arith.addf %2, %4 : vector<1024x128xf32>
    %6 = arith.truncf %5 : vector<1024x128xf32> to vector<1024x128xbf16>
    %c0_5 = arith.constant 0 : index
    %c0_6 = arith.constant 0 : index
    %7 = vector.load %arg4[%c0_5, %c0_6] : memref<1024x128xbf16, #tpu.memory_space<vmem>>, vector<1024x128xbf16>
    tpu.vector_store %arg4[%c0_5, %c0_6], %6 {strides = array<i32>} : memref<1024x128xbf16, #tpu.memory_space<vmem>>, vector<1024x128xbf16>,
    %cst_7 = arith.constant dense<0.000000e+00> : vector<128xf32>
    %8 = vector.multi_reduction <add>, %5, %cst_7 [0] : vector<1024x128xf32> to vector<128xf32>
    %9 = vector.shape_cast %8 : vector<128xf32> to vector<1x128xf32>
    %10 = arith.mulf %5, %5 : vector<1024x128xf32>
    %cst_8 = arith.constant dense<0.000000e+00> : vector<128xf32>
    %11 = vector.multi_reduction <add>, %10, %cst_8 [0] : vector<1024x128xf32> to vector<128xf32>
    %12 = vector.shape_cast %11 : vector<128xf32> to vector<1x128xf32>
    %13 = vector.shape_cast %9 : vector<1x128xf32> to vector<1x1x128xf32>
    %c0_9 = arith.constant 0 : index
    %c0_10 = arith.constant 0 : index
    %c0_11 = arith.constant 0 : index
    %14 = vector.load %arg5[%c0_9, %c0_10, %c0_11] : memref<1x1x128xf32, #tpu.memory_space<vmem>>, vector<1x1x128xf32>
    tpu.vector_store %arg5[%c0_9, %c0_10, %c0_11], %13 {strides = array<i32>} : memref<1x1x128xf32, #tpu.memory_space<vmem>>, vector<1x1x128xf32>,
    %15 = vector.shape_cast %12 : vector<1x128xf32> to vector<1x1x128xf32>
    %c0_12 = arith.constant 0 : index
    %c0_13 = arith.constant 0 : index
    %c0_14 = arith.constant 0 : index
    %16 = vector.load %arg6[%c0_12, %c0_13, %c0_14] : memref<1x1x128xf32, #tpu.memory_space<vmem>>, vector<1x1x128xf32>
    tpu.vector_store %arg6[%c0_12, %c0_13, %c0_14], %15 {strides = array<i32>} : memref<1x1x128xf32, #tpu.memory_space<vmem>>, vector<1x1x128xf32>,
    return
  }
  func.func @transform_0(%arg0: i32) -> (i32, i32) {
    %c0_i32 = arith.constant 0 : i32
    %c0_i32_0 = arith.constant 0 : i32
    return %arg0, %c0_i32 : i32, i32
  }
  func.func @transform_1(%arg0: i32) -> (i32, i32) {
    %c0_i32 = arith.constant 0 : i32
    %c0_i32_0 = arith.constant 0 : i32
    %c0_i32_1 = arith.constant 0 : i32
    return %c0_i32, %c0_i32_0 : i32, i32
  }
  func.func @transform_2(%arg0: i32) -> (i32, i32) {
    %c0_i32 = arith.constant 0 : i32
    %c0_i32_0 = arith.constant 0 : i32
    %c0_i32_1 = arith.constant 0 : i32
    return %c0_i32, %c0_i32_0 : i32, i32
  }
  func.func @transform_3(%arg0: i32) -> (i32, i32) {
    %c0_i32 = arith.constant 0 : i32
    %c0_i32_0 = arith.constant 0 : i32
    return %arg0, %c0_i32 : i32, i32
  }
  func.func @transform_4(%arg0: i32) -> (i32, i32, i32) {
    %c0_i32 = arith.constant 0 : i32
    %c0_i32_0 = arith.constant 0 : i32
    %c0_i32_1 = arith.constant 0 : i32
    return %arg0, %c0_i32, %c0_i32_0 : i32, i32, i32
  }
  func.func @transform_5(%arg0: i32) -> (i32, i32, i32) {
    %c0_i32 = arith.constant 0 : i32
    %c0_i32_0 = arith.constant 0 : i32
    %c0_i32_1 = arith.constant 0 : i32
    return %arg0, %c0_i32, %c0_i32_0 : i32, i32, i32
  }
}

module attributes {stable_mosaic.version = 11 : i64} {
  func.func @_finalize_stats_kernel(%arg0: i32, %arg1: memref<1x1x128xf32, #tpu.memory_space<vmem>>, %arg2: memref<1x1x128xf32, #tpu.memory_space<vmem>>, %arg3: memref<1x128xf32, #tpu.memory_space<vmem>>, %arg4: memref<1x128xf32, #tpu.memory_space<vmem>>, %arg5: memref<1x128xf32, #tpu.memory_space<vmem>>, %arg6: memref<1x128xf32, #tpu.memory_space<vmem>>) attributes {dimension_semantics = [#tpu.dimension_semantics<arbitrary>], iteration_bounds = array<i64: 1>, scalar_prefetch = 0 : i64, scratch_operands = 0 : i64, tpu.core_type = #tpu.core_type<tc>, window_params = [{pipeline_mode = #tpu.pipeline_mode<synchronous>, transform_indices = @transform_0, window_bounds = array<i64: 1, 1, 128>}, {pipeline_mode = #tpu.pipeline_mode<synchronous>, transform_indices = @transform_1, window_bounds = array<i64: 1, 1, 128>}, {pipeline_mode = #tpu.pipeline_mode<synchronous>, transform_indices = @transform_2, window_bounds = array<i64: 1, 128>}, {pipeline_mode = #tpu.pipeline_mode<synchronous>, transform_indices = @transform_3, window_bounds = array<i64: 1, 128>}, {pipeline_mode = #tpu.pipeline_mode<synchronous>, transform_indices = @transform_4, window_bounds = array<i64: 1, 128>}, {pipeline_mode = #tpu.pipeline_mode<synchronous>, transform_indices = @transform_5, window_bounds = array<i64: 1, 128>}]} {
    %c0 = arith.constant 0 : index
    %c0_0 = arith.constant 0 : index
    %c0_1 = arith.constant 0 : index
    %0 = vector.load %arg1[%c0, %c0_0, %c0_1] : memref<1x1x128xf32, #tpu.memory_space<vmem>>, vector<1x1x128xf32>
    %cst = arith.constant dense<0.000000e+00> : vector<1x128xf32>
    %1 = vector.multi_reduction <add>, %0, %cst [0] : vector<1x1x128xf32> to vector<1x128xf32>
    %cst_2 = arith.constant 9.765625E-4 : f32
    %2 = vector.broadcast %cst_2 : f32 to vector<1x128xf32>
    %3 = arith.mulf %1, %2 : vector<1x128xf32>
    %c0_3 = arith.constant 0 : index
    %c0_4 = arith.constant 0 : index
    %c0_5 = arith.constant 0 : index
    %4 = vector.load %arg2[%c0_3, %c0_4, %c0_5] : memref<1x1x128xf32, #tpu.memory_space<vmem>>, vector<1x1x128xf32>
    %cst_6 = arith.constant dense<0.000000e+00> : vector<1x128xf32>
    %5 = vector.multi_reduction <add>, %4, %cst_6 [0] : vector<1x1x128xf32> to vector<1x128xf32>
    %cst_7 = arith.constant 9.765625E-4 : f32
    %6 = vector.broadcast %cst_7 : f32 to vector<1x128xf32>
    %7 = arith.mulf %5, %6 : vector<1x128xf32>
    %8 = arith.mulf %3, %3 : vector<1x128xf32>
    %9 = arith.subf %7, %8 : vector<1x128xf32>
    %cst_8 = arith.constant 0.000000e+00 : f32
    %10 = vector.broadcast %cst_8 : f32 to vector<1x128xf32>
    %11 = arith.maximumf %9, %10 : vector<1x128xf32>
    %cst_9 = arith.constant 9.99999974E-6 : f32
    %12 = vector.broadcast %cst_9 : f32 to vector<1x128xf32>
    %13 = arith.addf %11, %12 : vector<1x128xf32>
    %14 = math.rsqrt %13 : vector<1x128xf32>
    %c0_10 = arith.constant 0 : index
    %c0_11 = arith.constant 0 : index
    %15 = vector.load %arg3[%c0_10, %c0_11] : memref<1x128xf32, #tpu.memory_space<vmem>>, vector<1x128xf32>
    %16 = arith.mulf %15, %14 : vector<1x128xf32>
    %c0_12 = arith.constant 0 : index
    %c0_13 = arith.constant 0 : index
    %17 = vector.load %arg5[%c0_12, %c0_13] : memref<1x128xf32, #tpu.memory_space<vmem>>, vector<1x128xf32>
    tpu.vector_store %arg5[%c0_12, %c0_13], %16 {strides = array<i32>} : memref<1x128xf32, #tpu.memory_space<vmem>>, vector<1x128xf32>,
    %c0_14 = arith.constant 0 : index
    %c0_15 = arith.constant 0 : index
    %18 = vector.load %arg4[%c0_14, %c0_15] : memref<1x128xf32, #tpu.memory_space<vmem>>, vector<1x128xf32>
    %19 = arith.mulf %3, %16 : vector<1x128xf32>
    %20 = arith.subf %18, %19 : vector<1x128xf32>
    %c0_16 = arith.constant 0 : index
    %c0_17 = arith.constant 0 : index
    %21 = vector.load %arg6[%c0_16, %c0_17] : memref<1x128xf32, #tpu.memory_space<vmem>>, vector<1x128xf32>
    tpu.vector_store %arg6[%c0_16, %c0_17], %20 {strides = array<i32>} : memref<1x128xf32, #tpu.memory_space<vmem>>, vector<1x128xf32>,
    return
  }
  func.func @transform_0(%arg0: i32) -> (i32, i32, i32) {
    %c0_i32 = arith.constant 0 : i32
    %c0_i32_0 = arith.constant 0 : i32
    %c0_i32_1 = arith.constant 0 : i32
    %c0_i32_2 = arith.constant 0 : i32
    return %c0_i32, %c0_i32_0, %c0_i32_1 : i32, i32, i32
  }
  func.func @transform_1(%arg0: i32) -> (i32, i32, i32) {
    %c0_i32 = arith.constant 0 : i32
    %c0_i32_0 = arith.constant 0 : i32
    %c0_i32_1 = arith.constant 0 : i32
    %c0_i32_2 = arith.constant 0 : i32
    return %c0_i32, %c0_i32_0, %c0_i32_1 : i32, i32, i32
  }
  func.func @transform_2(%arg0: i32) -> (i32, i32) {
    %c0_i32 = arith.constant 0 : i32
    %c0_i32_0 = arith.constant 0 : i32
    %c0_i32_1 = arith.constant 0 : i32
    return %c0_i32, %c0_i32_0 : i32, i32
  }
  func.func @transform_3(%arg0: i32) -> (i32, i32) {
    %c0_i32 = arith.constant 0 : i32
    %c0_i32_0 = arith.constant 0 : i32
    %c0_i32_1 = arith.constant 0 : i32
    return %c0_i32, %c0_i32_0 : i32, i32
  }
  func.func @transform_4(%arg0: i32) -> (i32, i32) {
    %c0_i32 = arith.constant 0 : i32
    %c0_i32_0 = arith.constant 0 : i32
    %c0_i32_1 = arith.constant 0 : i32
    return %c0_i32, %c0_i32_0 : i32, i32
  }
  func.func @transform_5(%arg0: i32) -> (i32, i32) {
    %c0_i32 = arith.constant 0 : i32
    %c0_i32_0 = arith.constant 0 : i32
    %c0_i32_1 = arith.constant 0 : i32
    return %c0_i32, %c0_i32_0 : i32, i32
  }
}

module attributes {stable_mosaic.version = 11 : i64} {
  func.func @_bn_relu_kernel(%arg0: i32, %arg1: memref<1024x128xbf16, #tpu.memory_space<vmem>>, %arg2: memref<1x128xf32, #tpu.memory_space<vmem>>, %arg3: memref<1x128xf32, #tpu.memory_space<vmem>>, %arg4: memref<1024x128xbf16, #tpu.memory_space<vmem>>) attributes {dimension_semantics = [#tpu.dimension_semantics<parallel>], iteration_bounds = array<i64: 1>, scalar_prefetch = 0 : i64, scratch_operands = 0 : i64, tpu.core_type = #tpu.core_type<tc>, window_params = [{transform_indices = @transform_0, window_bounds = array<i64: 1024, 128>}, {pipeline_mode = #tpu.pipeline_mode<synchronous>, transform_indices = @transform_1, window_bounds = array<i64: 1, 128>}, {pipeline_mode = #tpu.pipeline_mode<synchronous>, transform_indices = @transform_2, window_bounds = array<i64: 1, 128>}, {transform_indices = @transform_3, window_bounds = array<i64: 1024, 128>}]} {
    %c0 = arith.constant 0 : index
    %c0_0 = arith.constant 0 : index
    %0 = vector.load %arg1[%c0, %c0_0] : memref<1024x128xbf16, #tpu.memory_space<vmem>>, vector<1024x128xbf16>
    %1 = arith.extf %0 : vector<1024x128xbf16> to vector<1024x128xf32>
    %c0_1 = arith.constant 0 : index
    %c0_2 = arith.constant 0 : index
    %2 = vector.load %arg2[%c0_1, %c0_2] : memref<1x128xf32, #tpu.memory_space<vmem>>, vector<1x128xf32>
    %3 = vector.broadcast %2 : vector<1x128xf32> to vector<1024x128xf32>
    %4 = arith.mulf %1, %3 : vector<1024x128xf32>
    %c0_3 = arith.constant 0 : index
    %c0_4 = arith.constant 0 : index
    %5 = vector.load %arg3[%c0_3, %c0_4] : memref<1x128xf32, #tpu.memory_space<vmem>>, vector<1x128xf32>
    %6 = vector.broadcast %5 : vector<1x128xf32> to vector<1024x128xf32>
    %7 = arith.addf %4, %6 : vector<1024x128xf32>
    %cst = arith.constant 0.000000e+00 : f32
    %8 = vector.broadcast %cst : f32 to vector<1024x128xf32>
    %9 = arith.maximumf %7, %8 : vector<1024x128xf32>
    %10 = arith.truncf %9 : vector<1024x128xf32> to vector<1024x128xbf16>
    %c0_5 = arith.constant 0 : index
    %c0_6 = arith.constant 0 : index
    %11 = vector.load %arg4[%c0_5, %c0_6] : memref<1024x128xbf16, #tpu.memory_space<vmem>>, vector<1024x128xbf16>
    tpu.vector_store %arg4[%c0_5, %c0_6], %10 {strides = array<i32>} : memref<1024x128xbf16, #tpu.memory_space<vmem>>, vector<1024x128xbf16>,
    return
  }
  func.func @transform_0(%arg0: i32) -> (i32, i32) {
    %c0_i32 = arith.constant 0 : i32
    %c0_i32_0 = arith.constant 0 : i32
    return %arg0, %c0_i32 : i32, i32
  }
  func.func @transform_1(%arg0: i32) -> (i32, i32) {
    %c0_i32 = arith.constant 0 : i32
    %c0_i32_0 = arith.constant 0 : i32
    %c0_i32_1 = arith.constant 0 : i32
    return %c0_i32, %c0_i32_0 : i32, i32
  }
  func.func @transform_2(%arg0: i32) -> (i32, i32) {
    %c0_i32 = arith.constant 0 : i32
    %c0_i32_0 = arith.constant 0 : i32
    %c0_i32_1 = arith.constant 0 : i32
    return %c0_i32, %c0_i32_0 : i32, i32
  }
  func.func @transform_3(%arg0: i32) -> (i32, i32) {
    %c0_i32 = arith.constant 0 : i32
    %c0_i32_0 = arith.constant 0 : i32
    return %arg0, %c0_i32 : i32, i32
  }
}

module attributes {stable_mosaic.version = 11 : i64} {
  func.func @_conv_bias_stats_kernel(%arg0: i32, %arg1: memref<1024x256xbf16, #tpu.memory_space<vmem>>, %arg2: memref<256x128xbf16, #tpu.memory_space<vmem>>, %arg3: memref<1x128xf32, #tpu.memory_space<vmem>>, %arg4: memref<1024x128xbf16, #tpu.memory_space<vmem>>, %arg5: memref<1x1x128xf32, #tpu.memory_space<vmem>>, %arg6: memref<1x1x128xf32, #tpu.memory_space<vmem>>) attributes {dimension_semantics = [#tpu.dimension_semantics<parallel>], iteration_bounds = array<i64: 1>, scalar_prefetch = 0 : i64, scratch_operands = 0 : i64, tpu.core_type = #tpu.core_type<tc>, window_params = [{transform_indices = @transform_0, window_bounds = array<i64: 1024, 256>}, {pipeline_mode = #tpu.pipeline_mode<synchronous>, transform_indices = @transform_1, window_bounds = array<i64: 256, 128>}, {pipeline_mode = #tpu.pipeline_mode<synchronous>, transform_indices = @transform_2, window_bounds = array<i64: 1, 128>}, {transform_indices = @transform_3, window_bounds = array<i64: 1024, 128>}, {transform_indices = @transform_4, window_bounds = array<i64: 1, 1, 128>}, {transform_indices = @transform_5, window_bounds = array<i64: 1, 1, 128>}]} {
    %c0 = arith.constant 0 : index
    %c0_0 = arith.constant 0 : index
    %0 = vector.load %arg1[%c0, %c0_0] : memref<1024x256xbf16, #tpu.memory_space<vmem>>, vector<1024x256xbf16>
    %c0_1 = arith.constant 0 : index
    %c0_2 = arith.constant 0 : index
    %1 = vector.load %arg2[%c0_1, %c0_2] : memref<256x128xbf16, #tpu.memory_space<vmem>>, vector<256x128xbf16>
    %cst = arith.constant dense<0.000000e+00> : vector<1024x128xf32>
    %2 = tpu.matmul %0, %1, %cst {dimension_numbers = #tpu.dot_dimension_numbers<[1], [0], [0], [1], [0, 0, 1, 1], [], []>} : vector<1024x256xbf16>, vector<256x128xbf16>, vector<1024x128xf32> -> vector<1024x128xf32>
    %c0_3 = arith.constant 0 : index
    %c0_4 = arith.constant 0 : index
    %3 = vector.load %arg3[%c0_3, %c0_4] : memref<1x128xf32, #tpu.memory_space<vmem>>, vector<1x128xf32>
    %4 = vector.broadcast %3 : vector<1x128xf32> to vector<1024x128xf32>
    %5 = arith.addf %2, %4 : vector<1024x128xf32>
    %6 = arith.truncf %5 : vector<1024x128xf32> to vector<1024x128xbf16>
    %c0_5 = arith.constant 0 : index
    %c0_6 = arith.constant 0 : index
    %7 = vector.load %arg4[%c0_5, %c0_6] : memref<1024x128xbf16, #tpu.memory_space<vmem>>, vector<1024x128xbf16>
    tpu.vector_store %arg4[%c0_5, %c0_6], %6 {strides = array<i32>} : memref<1024x128xbf16, #tpu.memory_space<vmem>>, vector<1024x128xbf16>,
    %cst_7 = arith.constant dense<0.000000e+00> : vector<128xf32>
    %8 = vector.multi_reduction <add>, %5, %cst_7 [0] : vector<1024x128xf32> to vector<128xf32>
    %9 = vector.shape_cast %8 : vector<128xf32> to vector<1x128xf32>
    %10 = arith.mulf %5, %5 : vector<1024x128xf32>
    %cst_8 = arith.constant dense<0.000000e+00> : vector<128xf32>
    %11 = vector.multi_reduction <add>, %10, %cst_8 [0] : vector<1024x128xf32> to vector<128xf32>
    %12 = vector.shape_cast %11 : vector<128xf32> to vector<1x128xf32>
    %13 = vector.shape_cast %9 : vector<1x128xf32> to vector<1x1x128xf32>
    %c0_9 = arith.constant 0 : index
    %c0_10 = arith.constant 0 : index
    %c0_11 = arith.constant 0 : index
    %14 = vector.load %arg5[%c0_9, %c0_10, %c0_11] : memref<1x1x128xf32, #tpu.memory_space<vmem>>, vector<1x1x128xf32>
    tpu.vector_store %arg5[%c0_9, %c0_10, %c0_11], %13 {strides = array<i32>} : memref<1x1x128xf32, #tpu.memory_space<vmem>>, vector<1x1x128xf32>,
    %15 = vector.shape_cast %12 : vector<1x128xf32> to vector<1x1x128xf32>
    %c0_12 = arith.constant 0 : index
    %c0_13 = arith.constant 0 : index
    %c0_14 = arith.constant 0 : index
    %16 = vector.load %arg6[%c0_12, %c0_13, %c0_14] : memref<1x1x128xf32, #tpu.memory_space<vmem>>, vector<1x1x128xf32>
    tpu.vector_store %arg6[%c0_12, %c0_13, %c0_14], %15 {strides = array<i32>} : memref<1x1x128xf32, #tpu.memory_space<vmem>>, vector<1x1x128xf32>,
    return
  }
  func.func @transform_0(%arg0: i32) -> (i32, i32) {
    %c0_i32 = arith.constant 0 : i32
    %c0_i32_0 = arith.constant 0 : i32
    return %arg0, %c0_i32 : i32, i32
  }
  func.func @transform_1(%arg0: i32) -> (i32, i32) {
    %c0_i32 = arith.constant 0 : i32
    %c0_i32_0 = arith.constant 0 : i32
    %c0_i32_1 = arith.constant 0 : i32
    return %c0_i32, %c0_i32_0 : i32, i32
  }
  func.func @transform_2(%arg0: i32) -> (i32, i32) {
    %c0_i32 = arith.constant 0 : i32
    %c0_i32_0 = arith.constant 0 : i32
    %c0_i32_1 = arith.constant 0 : i32
    return %c0_i32, %c0_i32_0 : i32, i32
  }
  func.func @transform_3(%arg0: i32) -> (i32, i32) {
    %c0_i32 = arith.constant 0 : i32
    %c0_i32_0 = arith.constant 0 : i32
    return %arg0, %c0_i32 : i32, i32
  }
  func.func @transform_4(%arg0: i32) -> (i32, i32, i32) {
    %c0_i32 = arith.constant 0 : i32
    %c0_i32_0 = arith.constant 0 : i32
    %c0_i32_1 = arith.constant 0 : i32
    return %arg0, %c0_i32, %c0_i32_0 : i32, i32, i32
  }
  func.func @transform_5(%arg0: i32) -> (i32, i32, i32) {
    %c0_i32 = arith.constant 0 : i32
    %c0_i32_0 = arith.constant 0 : i32
    %c0_i32_1 = arith.constant 0 : i32
    return %arg0, %c0_i32, %c0_i32_0 : i32, i32, i32
  }
}

module attributes {stable_mosaic.version = 11 : i64} {
  func.func @_bn_relu_kernel(%arg0: i32, %arg1: memref<1024x128xbf16, #tpu.memory_space<vmem>>, %arg2: memref<1x128xf32, #tpu.memory_space<vmem>>, %arg3: memref<1x128xf32, #tpu.memory_space<vmem>>, %arg4: memref<1024x128xf32, #tpu.memory_space<vmem>>) attributes {dimension_semantics = [#tpu.dimension_semantics<parallel>], iteration_bounds = array<i64: 1>, scalar_prefetch = 0 : i64, scratch_operands = 0 : i64, tpu.core_type = #tpu.core_type<tc>, window_params = [{transform_indices = @transform_0, window_bounds = array<i64: 1024, 128>}, {pipeline_mode = #tpu.pipeline_mode<synchronous>, transform_indices = @transform_1, window_bounds = array<i64: 1, 128>}, {pipeline_mode = #tpu.pipeline_mode<synchronous>, transform_indices = @transform_2, window_bounds = array<i64: 1, 128>}, {transform_indices = @transform_3, window_bounds = array<i64: 1024, 128>}]} {
    %c0 = arith.constant 0 : index
    %c0_0 = arith.constant 0 : index
    %0 = vector.load %arg1[%c0, %c0_0] : memref<1024x128xbf16, #tpu.memory_space<vmem>>, vector<1024x128xbf16>
    %1 = arith.extf %0 : vector<1024x128xbf16> to vector<1024x128xf32>
    %c0_1 = arith.constant 0 : index
    %c0_2 = arith.constant 0 : index
    %2 = vector.load %arg2[%c0_1, %c0_2] : memref<1x128xf32, #tpu.memory_space<vmem>>, vector<1x128xf32>
    %3 = vector.broadcast %2 : vector<1x128xf32> to vector<1024x128xf32>
    %4 = arith.mulf %1, %3 : vector<1024x128xf32>
    %c0_3 = arith.constant 0 : index
    %c0_4 = arith.constant 0 : index
    %5 = vector.load %arg3[%c0_3, %c0_4] : memref<1x128xf32, #tpu.memory_space<vmem>>, vector<1x128xf32>
    %6 = vector.broadcast %5 : vector<1x128xf32> to vector<1024x128xf32>
    %7 = arith.addf %4, %6 : vector<1024x128xf32>
    %cst = arith.constant 0.000000e+00 : f32
    %8 = vector.broadcast %cst : f32 to vector<1024x128xf32>
    %9 = arith.maximumf %7, %8 : vector<1024x128xf32>
    %c0_5 = arith.constant 0 : index
    %c0_6 = arith.constant 0 : index
    %10 = vector.load %arg4[%c0_5, %c0_6] : memref<1024x128xf32, #tpu.memory_space<vmem>>, vector<1024x128xf32>
    tpu.vector_store %arg4[%c0_5, %c0_6], %9 {strides = array<i32>} : memref<1024x128xf32, #tpu.memory_space<vmem>>, vector<1024x128xf32>,
    return
  }
  func.func @transform_0(%arg0: i32) -> (i32, i32) {
    %c0_i32 = arith.constant 0 : i32
    %c0_i32_0 = arith.constant 0 : i32
    return %arg0, %c0_i32 : i32, i32
  }
  func.func @transform_1(%arg0: i32) -> (i32, i32) {
    %c0_i32 = arith.constant 0 : i32
    %c0_i32_0 = arith.constant 0 : i32
    %c0_i32_1 = arith.constant 0 : i32
    return %c0_i32, %c0_i32_0 : i32, i32
  }
  func.func @transform_2(%arg0: i32) -> (i32, i32) {
    %c0_i32 = arith.constant 0 : i32
    %c0_i32_0 = arith.constant 0 : i32
    %c0_i32_1 = arith.constant 0 : i32
    return %c0_i32, %c0_i32_0 : i32, i32
  }
  func.func @transform_3(%arg0: i32) -> (i32, i32) {
    %c0_i32 = arith.constant 0 : i32
    %c0_i32_0 = arith.constant 0 : i32
    return %arg0, %c0_i32 : i32, i32
  }
}

</mosaic_0001>

<llo_original>
// kernel: _lambda_.7
$region0: #{_lambda_.7}
  #allocation0 [shape = 'u32[]', space=smem, size = 0x4, offset = 0x4, fixed_abs, tag = 'smem constant byte address 0x4 - core index']
  #allocation1 [shape = 'u32[72,128]{1,0:T(1,128)}', space=vmem, size = 0x9000, scoped, tag = 'internal scratch']
  %s0 = inlined_call_operand.vmem [shape: f32[1,1,128], index: 0, kind: input, shape index: {}]
  %s1 = inlined_call_operand.vmem [shape: f32[1,1,128], index: 1, kind: input, shape index: {}]
  %s2 = inlined_call_operand.vmem [shape: f32[1,128], index: 2, kind: input, shape index: {}]
  %s3 = inlined_call_operand.vmem [shape: f32[1,128], index: 3, kind: input, shape index: {}]
  %s4 = inlined_call_operand.vmem [shape: f32[1,128], index: 4, kind: output, shape index: {0}]
  %s5 = inlined_call_operand.vmem [shape: f32[1,128], index: 5, kind: output, shape index: {1}]
  %6 = xla_tuple %s4, %s5
  %s7 = sld [smem:[#allocation0]]
  $region34: #{_lambda_.7} parent=0
    _
  %s9 = ssub.s32 1, %s7
  %s10 = scalar_select 0, %s9, %s7
  // Predicated region
  $region2: #{_lambda_.7} parent=0 // pred_check
    _
  $region3: #{_lambda_.7} parent=0 // pred_check_branch
    %12 = sbr.rel (0) target = $region5
  $region4: #{_lambda_.7} parent=0 // pred_region
    _
  $region5: #{_lambda_.7} parent=0 // pred_fallthru
    _
  // Predicated region
  $region6: #{_lambda_.7} parent=0 // pred_check
    _
  $region7: #{_lambda_.7} parent=0 // pred_check_branch
    %14 = sbr.rel (0) target = $region9
  $region8: #{_lambda_.7} parent=0 // pred_region
    _
  $region9: #{_lambda_.7} parent=0 // pred_fallthru
    _
  // Predicated region
  $region10: #{_lambda_.7} parent=0 // pred_check
    _
  $region11: #{_lambda_.7} parent=0 // pred_check_branch
    %16 = sbr.rel (0) target = $region13
  $region12: #{_lambda_.7} parent=0 // pred_region
    _
  $region13: #{_lambda_.7} parent=0 // pred_fallthru
    _
  // Predicated region
  $region14: #{_lambda_.7} parent=0 // pred_check
    _
  $region15: #{_lambda_.7} parent=0 // pred_check_branch
    %18 = sbr.rel (0) target = $region17
  $region16: #{_lambda_.7} parent=0 // pred_region
    _
  $region17: #{_lambda_.7} parent=0 // pred_fallthru
    _
  %v19 = vld [vmem:[%s0] sm:$0x1]
  %v20 = vadd.f32 %v19, 0.0
  %v21 = vmul.f32 %v20, 0.0009765625
  %v22 = vld [vmem:[%s1] sm:$0x1]
  %v23 = vadd.f32 %v22, 0.0
  %v24 = vmul.f32 %v23, 0.0009765625
  %v25 = vmul.f32 %v21, %v21
  %v26 = vsub.f32 %v24, %v25
  %v27 = vmax.f32 %v26, 0.0
  %v28 = vadd.f32 %v27, 1e-05
  %v29 = vrsqrt.pop %v28
  %v30 = vmul.f32 %v29, %v28
  %v31 = vmul.f32 %v30, %v29
  %v32 = vmul.f32 0.5, %v31
  %v33 = vsub.f32 1.5, %v32
  %v34 = vmul.f32 %v29, %v33
  %vm35 = vweird.f32 %v28
  %vm36 = vweird.f32 %v29
  %vm37 = vmor %vm35, %vm36
  %v38 = vsel %vm37, %v29, %v34
  %v39 = vld [vmem:[%s2] sm:$0x1]
  %v40 = vmul.f32 %v39, %v38
  %41 = vst [vmem:[%s4] sm:$0x1] %v40
  %v42 = vld [vmem:[%s3] sm:$0x1]
  %v43 = vmul.f32 %v21, %v40
  %v44 = vsub.f32 %v42, %v43
  %45 = vst [vmem:[%s5] sm:$0x1] %v44
  // Predicated region
  $region18: #{_lambda_.7} parent=0 // pred_check
    _
  $region19: #{_lambda_.7} parent=0 // pred_check_branch
    %47 = sbr.rel (0) target = $region21
  $region20: #{_lambda_.7} parent=0 // pred_region
    _
  $region21: #{_lambda_.7} parent=0 // pred_fallthru
    _
  // Predicated region
  $region22: #{_lambda_.7} parent=0 // pred_check
    _
  $region23: #{_lambda_.7} parent=0 // pred_check_branch
    %49 = sbr.rel (0) target = $region25
  $region24: #{_lambda_.7} parent=0 // pred_region
    _
  $region25: #{_lambda_.7} parent=0 // pred_fallthru
    _
  // Predicated region
  $region26: #{_lambda_.7} parent=0 // pred_check
    _
  $region27: #{_lambda_.7} parent=0 // pred_check_branch
    %51 = sbr.rel (0) target = $region29
  $region28: #{_lambda_.7} parent=0 // pred_region
    _
  $region29: #{_lambda_.7} parent=0 // pred_fallthru
    _
  // Predicated region
  $region30: #{_lambda_.7} parent=0 // pred_check
    _
  $region31: #{_lambda_.7} parent=0 // pred_check_branch
    %53 = sbr.rel (0) target = $region33
  $region32: #{_lambda_.7} parent=0 // pred_region
    _
  $region33: #{_lambda_.7} parent=0 // pred_fallthru
    _

// kernel: _lambda_.6
$region0: #{_lambda_.6}
  #allocation0 [shape = 'u32[]', space=smem, size = 0x4, offset = 0x4, fixed_abs, tag = 'smem constant byte address 0x4 - core index']
  #allocation1 [shape = 'u32[72,128]{1,0:T(1,128)}', space=vmem, size = 0x9000, scoped, tag = 'internal scratch']
  %s0 = inlined_call_operand.vmem [shape: bf16[1024,128], index: 0, kind: input, shape index: {}]
  %s1 = inlined_call_operand.vmem [shape: bf16[128,128], index: 1, kind: input, shape index: {}]
  %s2 = inlined_call_operand.vmem [shape: f32[1,128], index: 2, kind: input, shape index: {}]
  %s3 = inlined_call_operand.vmem [shape: bf16[1024,128], index: 3, kind: output, shape index: {0}]
  %s4 = inlined_call_operand.vmem [shape: f32[1,1,128], index: 4, kind: output, shape index: {1}]
  %s5 = inlined_call_operand.vmem [shape: f32[1,1,128], index: 5, kind: output, shape index: {2}]
  %6 = xla_tuple %s3, %s4, %s5
  %s7 = sld [smem:[#allocation0]]
  $region38: #{_lambda_.6} parent=0
    _
  %s9 = ssub.s32 1, %s7
  %s10 = scalar_select 0, %s9, %s7
  // Predicated region
  $region2: #{_lambda_.6} parent=0 // pred_check
    _
  $region3: #{_lambda_.6} parent=0 // pred_check_branch
    %12 = sbr.rel (0) target = $region5
  $region4: #{_lambda_.6} parent=0 // pred_region
    _
  $region5: #{_lambda_.6} parent=0 // pred_fallthru
    _
  // Predicated region
  $region6: #{_lambda_.6} parent=0 // pred_check
    _
  $region7: #{_lambda_.6} parent=0 // pred_check_branch
    %14 = sbr.rel (0) target = $region9
  $region8: #{_lambda_.6} parent=0 // pred_region
    _
  $region9: #{_lambda_.6} parent=0 // pred_fallthru
    _
  // Predicated region
  $region10: #{_lambda_.6} parent=0 // pred_check
    _
  $region11: #{_lambda_.6} parent=0 // pred_check_branch
    %16 = sbr.rel (0) target = $region13
  $region12: #{_lambda_.6} parent=0 // pred_region
    _
  $region13: #{_lambda_.6} parent=0 // pred_fallthru
    _
  %v17 = vld [vmem:[%s0] sm:$0xf]
  %v18 = vld [vmem:[%s0 + $0x4] sm:$0xf]
  %v19 = vld [vmem:[%s0 + $0x8] sm:$0xf]
  %v20 = vld [vmem:[%s0 + $0xc] sm:$0xf]
  %v21 = vld [vmem:[%s0 + $0x10] sm:$0xf]
  %v22 = vld [vmem:[%s0 + $0x14] sm:$0xf]
  %v23 = vld [vmem:[%s0 + $0x18] sm:$0xf]
  %v24 = vld [vmem:[%s0 + $0x1c] sm:$0xf]
  %v25 = vld [vmem:[%s0 + $0x20] sm:$0xf]
  %v26 = vld [vmem:[%s0 + $0x24] sm:$0xf]
  %v27 = vld [vmem:[%s0 + $0x28] sm:$0xf]
  %v28 = vld [vmem:[%s0 + $0x2c] sm:$0xf]
  %v29 = vld [vmem:[%s0 + $0x30] sm:$0xf]
  %v30 = vld [vmem:[%s0 + $0x34] sm:$0xf]
  %v31 = vld [vmem:[%s0 + $0x38] sm:$0xf]
  %v32 = vld [vmem:[%s0 + $0x3c] sm:$0xf]
  %v33 = vld [vmem:[%s0 + $0x40] sm:$0xf]
  %v34 = vld [vmem:[%s0 + $0x44] sm:$0xf]
  %v35 = vld [vmem:[%s0 + $0x48] sm:$0xf]
  %v36 = vld [vmem:[%s0 + $0x4c] sm:$0xf]
  %v37 = vld [vmem:[%s0 + $0x50] sm:$0xf]
  %v38 = vld [vmem:[%s0 + $0x54] sm:$0xf]
  %v39 = vld [vmem:[%s0 + $0x58] sm:$0xf]
  %v40 = vld [vmem:[%s0 + $0x5c] sm:$0xf]
  %v41 = vld [vmem:[%s0 + $0x60] sm:$0xf]
  %v42 = vld [vmem:[%s0 + $0x64] sm:$0xf]
  %v43 = vld [vmem:[%s0 + $0x68] sm:$0xf]
  %v44 = vld [vmem:[%s0 + $0x6c] sm:$0xf]
  %v45 = vld [vmem:[%s0 + $0x70] sm:$0xf]
  %v46 = vld [vmem:[%s0 + $0x74] sm:$0xf]
  %v47 = vld [vmem:[%s0 + $0x78] sm:$0xf]
  %v48 = vld [vmem:[%s0 + $0x7c] sm:$0xf]
  %v49 = vld [vmem:[%s0 + $0x80] sm:$0xf]
  %v50 = vld [vmem:[%s0 + $0x84] sm:$0xf]
  %v51 = vld [vmem:[%s0 + $0x88] sm:$0xf]
  %v52 = vld [vmem:[%s0 + $0x8c] sm:$0xf]
  %v53 = vld [vmem:[%s0 + $0x90] sm:$0xf]
  %v54 = vld [vmem:[%s0 + $0x94] sm:$0xf]
  %v55 = vld [vmem:[%s0 + $0x98] sm:$0xf]
  %v56 = vld [vmem:[%s0 + $0x9c] sm:$0xf]
  %v57 = vld [vmem:[%s0 + $0xa0] sm:$0xf]
  %v58 = vld [vmem:[%s0 + $0xa4] sm:$0xf]
  %v59 = vld [vmem:[%s0 + $0xa8] sm:$0xf]
  %v60 = vld [vmem:[%s0 + $0xac] sm:$0xf]
  %v61 = vld [vmem:[%s0 + $0xb0] sm:$0xf]
  %v62 = vld [vmem:[%s0 + $0xb4] sm:$0xf]
  %v63 = vld [vmem:[%s0 + $0xb8] sm:$0xf]
  %v64 = vld [vmem:[%s0 + $0xbc] sm:$0xf]
  %v65 = vld [vmem:[%s0 + $0xc0] sm:$0xf]
  %v66 = vld [vmem:[%s0 + $0xc4] sm:$0xf]
  %v67 = vld [vmem:[%s0 + $0xc8] sm:$0xf]
  %v68 = vld [vmem:[%s0 + $0xcc] sm:$0xf]
  %v69 = vld [vmem:[%s0 + $0xd0] sm:$0xf]
  %v70 = vld [vmem:[%s0 + $0xd4] sm:$0xf]
  %v71 = vld [vmem:[%s0 + $0xd8] sm:$0xf]
  %v72 = vld [vmem:[%s0 + $0xdc] sm:$0xf]
  %v73 = vld [vmem:[%s0 + $0xe0] sm:$0xf]
  %v74 = vld [vmem:[%s0 + $0xe4] sm:$0xf]
  %v75 = vld [vmem:[%s0 + $0xe8] sm:$0xf]
  %v76 = vld [vmem:[%s0 + $0xec] sm:$0xf]
  %v77 = vld [vmem:[%s0 + $0xf0] sm:$0xf]
  %v78 = vld [vmem:[%s0 + $0xf4] sm:$0xf]
  %v79 = vld [vmem:[%s0 + $0xf8] sm:$0xf]
  %v80 = vld [vmem:[%s0 + $0xfc] sm:$0xf]
  %v81 = vld [vmem:[%s0 + $0x100] sm:$0xf]
  %v82 = vld [vmem:[%s0 + $0x104] sm:$0xf]
  %v83 = vld [vmem:[%s0 + $0x108] sm:$0xf]
  %v84 = vld [vmem:[%s0 + $0x10c] sm:$0xf]
  %v85 = vld [vmem:[%s0 + $0x110] sm:$0xf]
  %v86 = vld [vmem:[%s0 + $0x114] sm:$0xf]
  %v87 = vld [vmem:[%s0 + $0x118] sm:$0xf]
  %v88 = vld [vmem:[%s0 + $0x11c] sm:$0xf]
  %v89 = vld [vmem:[%s0 + $0x120] sm:$0xf]
  %v90 = vld [vmem:[%s0 + $0x124] sm:$0xf]
  %v91 = vld [vmem:[%s0 + $0x128] sm:$0xf]
  %v92 = vld [vmem:[%s0 + $0x12c] sm:$0xf]
  %v93 = vld [vmem:[%s0 + $0x130] sm:$0xf]
  %v94 = vld [vmem:[%s0 + $0x134] sm:$0xf]
  %v95 = vld [vmem:[%s0 + $0x138] sm:$0xf]
  %v96 = vld [vmem:[%s0 + $0x13c] sm:$0xf]
  %v97 = vld [vmem:[%s0 + $0x140] sm:$0xf]
  %v98 = vld [vmem:[%s0 + $0x144] sm:$0xf]
  %v99 = vld [vmem:[%s0 + $0x148] sm:$0xf]
  %v100 = vld [vmem:[%s0 + $0x14c] sm:$0xf]
  %v101 = vld [vmem:[%s0 + $0x150] sm:$0xf]
  %v102 = vld [vmem:[%s0 + $0x154] sm:$0xf]
  %v103 = vld [vmem:[%s0 + $0x158] sm:$0xf]
  %v104 = vld [vmem:[%s0 + $0x15c] sm:$0xf]
  %v105 = vld [vmem:[%s0 + $0x160] sm:$0xf]
  %v106 = vld [vmem:[%s0 + $0x164] sm:$0xf]
  %v107 = vld [vmem:[%s0 + $0x168] sm:$0xf]
  %v108 = vld [vmem:[%s0 + $0x16c] sm:$0xf]
  %v109 = vld [vmem:[%s0 + $0x170] sm:$0xf]
  %v110 = vld [vmem:[%s0 + $0x174] sm:$0xf]
  %v111 = vld [vmem:[%s0 + $0x178] sm:$0xf]
  %v112 = vld [vmem:[%s0 + $0x17c] sm:$0xf]
  %v113 = vld [vmem:[%s0 + $0x180] sm:$0xf]
  %v114 = vld [vmem:[%s0 + $0x184] sm:$0xf]
  %v115 = vld [vmem:[%s0 + $0x188] sm:$0xf]
  %v116 = vld [vmem:[%s0 + $0x18c] sm:$0xf]
  %v117 = vld [vmem:[%s0 + $0x190] sm:$0xf]
  %v118 = vld [vmem:[%s0 + $0x194] sm:$0xf]
  %v119 = vld [vmem:[%s0 + $0x198] sm:$0xf]
  %v120 = vld [vmem:[%s0 + $0x19c] sm:$0xf]
  %v121 = vld [vmem:[%s0 + $0x1a0] sm:$0xf]
  %v122 = vld [vmem:[%s0 + $0x1a4] sm:$0xf]
  %v123 = vld [vmem:[%s0 + $0x1a8] sm:$0xf]
  %v124 = vld [vmem:[%s0 + $0x1ac] sm:$0xf]
  %v125 = vld [vmem:[%s0 + $0x1b0] sm:$0xf]
  %v126 = vld [vmem:[%s0 + $0x1b4] sm:$0xf]
  %v127 = vld [vmem:[%s0 + $0x1b8] sm:$0xf]
  %v128 = vld [vmem:[%s0 + $0x1bc] sm:$0xf]
  %v129 = vld [vmem:[%s0 + $0x1c0] sm:$0xf]
  %v130 = vld [vmem:[%s0 + $0x1c4] sm:$0xf]
  %v131 = vld [vmem:[%s0 + $0x1c8] sm:$0xf]
  %v132 = vld [vmem:[%s0 + $0x1cc] sm:$0xf]
  %v133 = vld [vmem:[%s0 + $0x1d0] sm:$0xf]
  %v134 = vld [vmem:[%s0 + $0x1d4] sm:$0xf]
  %v135 = vld [vmem:[%s0 + $0x1d8] sm:$0xf]
  %v136 = vld [vmem:[%s0 + $0x1dc] sm:$0xf]
  %v137 = vld [vmem:[%s0 + $0x1e0] sm:$0xf]
  %v138 = vld [vmem:[%s0 + $0x1e4] sm:$0xf]
  %v139 = vld [vmem:[%s0 + $0x1e8] sm:$0xf]
  %v140 = vld [vmem:[%s0 + $0x1ec] sm:$0xf]
  %v141 = vld [vmem:[%s0 + $0x1f0] sm:$0xf]
  %v142 = vld [vmem:[%s0 + $0x1f4] sm:$0xf]
  %v143 = vld [vmem:[%s0 + $0x1f8] sm:$0xf]
  %v144 = vld [vmem:[%s0 + $0x1fc] sm:$0xf]
  %v145 = vld [vmem:[%s1] sm:$0xf]
  %v146 = vld [vmem:[%s1 + $0x4] sm:$0xf]
  %v147 = vld [vmem:[%s1 + $0x8] sm:$0xf]
  %v148 = vld [vmem:[%s1 + $0xc] sm:$0xf]
  %v149 = vld [vmem:[%s1 + $0x10] sm:$0xf]
  %v150 = vld [vmem:[%s1 + $0x14] sm:$0xf]
  %v151 = vld [vmem:[%s1 + $0x18] sm:$0xf]
  %v152 = vld [vmem:[%s1 + $0x1c] sm:$0xf]
  %v153 = vld [vmem:[%s1 + $0x20] sm:$0xf]
  %v154 = vld [vmem:[%s1 + $0x24] sm:$0xf]
  %v155 = vld [vmem:[%s1 + $0x28] sm:$0xf]
  %v156 = vld [vmem:[%s1 + $0x2c] sm:$0xf]
  %v157 = vld [vmem:[%s1 + $0x30] sm:$0xf]
  %v158 = vld [vmem:[%s1 + $0x34] sm:$0xf]
  %v159 = vld [vmem:[%s1 + $0x38] sm:$0xf]
  %v160 = vld [vmem:[%s1 + $0x3c] sm:$0xf]
  %v161 = vld [vmem:[%s2] sm:$0x1]
  %v163 = vperm.slane %v161, 0
  %v293 = vunpack.c.l.b16 %v17
  %v294 = vunpack.c.l.b16 %v18
  %v295 = vunpack.c.l.b16 %v19
  %v296 = vunpack.c.l.b16 %v20
  %v297 = vunpack.c.l.b16 %v21
  %v298 = vunpack.c.l.b16 %v22
  %v299 = vunpack.c.l.b16 %v23
  %v300 = vunpack.c.l.b16 %v24
  %v301 = vunpack.c.l.b16 %v25
  %v302 = vunpack.c.l.b16 %v26
  %v303 = vunpack.c.l.b16 %v27
  %v304 = vunpack.c.l.b16 %v28
  %v305 = vunpack.c.l.b16 %v29
  %v306 = vunpack.c.l.b16 %v30
  %v307 = vunpack.c.l.b16 %v31
  %v308 = vunpack.c.l.b16 %v32
  %v309 = vunpack.c.l.b16 %v33
  %v310 = vunpack.c.l.b16 %v34
  %v311 = vunpack.c.l.b16 %v35
  %v312 = vunpack.c.l.b16 %v36
  %v313 = vunpack.c.l.b16 %v37
  %v314 = vunpack.c.l.b16 %v38
  %v315 = vunpack.c.l.b16 %v39
  %v316 = vunpack.c.l.b16 %v40
  %v317 = vunpack.c.l.b16 %v41
  %v318 = vunpack.c.l.b16 %v42
  %v319 = vunpack.c.l.b16 %v43
  %v320 = vunpack.c.l.b16 %v44
  %v321 = vunpack.c.l.b16 %v45
  %v322 = vunpack.c.l.b16 %v46
  %v323 = vunpack.c.l.b16 %v47
  %v324 = vunpack.c.l.b16 %v48
  %v325 = vunpack.c.l.b16 %v49
  %v326 = vunpack.c.l.b16 %v50
  %v327 = vunpack.c.l.b16 %v51
  %v328 = vunpack.c.l.b16 %v52
  %v329 = vunpack.c.l.b16 %v53
  %v330 = vunpack.c.l.b16 %v54
  %v331 = vunpack.c.l.b16 %v55
  %v332 = vunpack.c.l.b16 %v56
  %v333 = vunpack.c.l.b16 %v57
  %v334 = vunpack.c.l.b16 %v58
  %v335 = vunpack.c.l.b16 %v59
  %v336 = vunpack.c.l.b16 %v60
  %v337 = vunpack.c.l.b16 %v61
  %v338 = vunpack.c.l.b16 %v62
  %v339 = vunpack.c.l.b16 %v63
  %v340 = vunpack.c.l.b16 %v64
  %v341 = vunpack.c.l.b16 %v65
  %v342 = vunpack.c.l.b16 %v66
  %v343 = vunpack.c.l.b16 %v67
  %v344 = vunpack.c.l.b16 %v68
  %v345 = vunpack.c.l.b16 %v69
  %v346 = vunpack.c.l.b16 %v70
  %v347 = vunpack.c.l.b16 %v71
  %v348 = vunpack.c.l.b16 %v72
  %v349 = vunpack.c.l.b16 %v73
  %v350 = vunpack.c.l.b16 %v74
  %v351 = vunpack.c.l.b16 %v75
  %v352 = vunpack.c.l.b16 %v76
  %v353 = vunpack.c.l.b16 %v77
  %v354 = vunpack.c.l.b16 %v78
  %v355 = vunpack.c.l.b16 %v79
  %v356 = vunpack.c.l.b16 %v80
  %v357 = vunpack.c.l.b16 %v81
  %v358 = vunpack.c.l.b16 %v82
  %v359 = vunpack.c.l.b16 %v83
  %v360 = vunpack.c.l.b16 %v84
  %v361 = vunpack.c.l.b16 %v85
  %v362 = vunpack.c.l.b16 %v86
  %v363 = vunpack.c.l.b16 %v87
  %v364 = vunpack.c.l.b16 %v88
  %v365 = vunpack.c.l.b16 %v89
  %v366 = vunpack.c.l.b16 %v90
  %v367 = vunpack.c.l.b16 %v91
  %v368 = vunpack.c.l.b16 %v92
  %v369 = vunpack.c.l.b16 %v93
  %v370 = vunpack.c.l.b16 %v94
  %v371 = vunpack.c.l.b16 %v95
  %v372 = vunpack.c.l.b16 %v96
  %v373 = vunpack.c.l.b16 %v97
  %v374 = vunpack.c.l.b16 %v98
  %v375 = vunpack.c.l.b16 %v99
  %v376 = vunpack.c.l.b16 %v100
  %v377 = vunpack.c.l.b16 %v101
  %v378 = vunpack.c.l.b16 %v102
  %v379 = vunpack.c.l.b16 %v103
  %v380 = vunpack.c.l.b16 %v104
  %v381 = vunpack.c.l.b16 %v105
  %v382 = vunpack.c.l.b16 %v106
  %v383 = vunpack.c.l.b16 %v107
  %v384 = vunpack.c.l.b16 %v108
  %v385 = vunpack.c.l.b16 %v109
  %v386 = vunpack.c.l.b16 %v110
  %v387 = vunpack.c.l.b16 %v111
  %v388 = vunpack.c.l.b16 %v112
  %v389 = vunpack.c.l.b16 %v113
  %v390 = vunpack.c.l.b16 %v114
  %v391 = vunpack.c.l.b16 %v115
  %v392 = vunpack.c.l.b16 %v116
  %v393 = vunpack.c.l.b16 %v117
  %v394 = vunpack.c.l.b16 %v118
  %v395 = vunpack.c.l.b16 %v119
  %v396 = vunpack.c.l.b16 %v120
  %v397 = vunpack.c.l.b16 %v121
  %v398 = vunpack.c.l.b16 %v122
  %v399 = vunpack.c.l.b16 %v123
  %v400 = vunpack.c.l.b16 %v124
  %v401 = vunpack.c.l.b16 %v125
  %v402 = vunpack.c.l.b16 %v126
  %v403 = vunpack.c.l.b16 %v127
  %v404 = vunpack.c.l.b16 %v128
  %v405 = vunpack.c.l.b16 %v129
  %v406 = vunpack.c.l.b16 %v130
  %v407 = vunpack.c.l.b16 %v131
  %v408 = vunpack.c.l.b16 %v132
  %v409 = vunpack.c.l.b16 %v133
  %v410 = vunpack.c.l.b16 %v134
  %v411 = vunpack.c.l.b16 %v135
  %v412 = vunpack.c.l.b16 %v136
  %v413 = vunpack.c.l.b16 %v137
  %v414 = vunpack.c.l.b16 %v138
  %v415 = vunpack.c.l.b16 %v139
  %v416 = vunpack.c.l.b16 %v140
  %v417 = vunpack.c.l.b16 %v141
  %v418 = vunpack.c.l.b16 %v142
  %v419 = vunpack.c.l.b16 %v143
  %v420 = vunpack.c.l.b16 %v144
  %v421 = vpack.c.b16 %v294, %v293
  %v422 = vpack.c.b16 %v296, %v295
  %v423 = vpack.c.b16 %v298, %v297
  %v424 = vpack.c.b16 %v300, %v299
  %v425 = vpack.c.b16 %v302, %v301
  %v426 = vpack.c.b16 %v304, %v303
  %v427 = vpack.c.b16 %v306, %v305
  %v428 = vpack.c.b16 %v308, %v307
  %v429 = vpack.c.b16 %v310, %v309
  %v430 = vpack.c.b16 %v312, %v311
  %v431 = vpack.c.b16 %v314, %v313
  %v432 = vpack.c.b16 %v316, %v315
  %v433 = vpack.c.b16 %v318, %v317
  %v434 = vpack.c.b16 %v320, %v319
  %v435 = vpack.c.b16 %v322, %v321
  %v436 = vpack.c.b16 %v324, %v323
  %v437 = vpack.c.b16 %v326, %v325
  %v438 = vpack.c.b16 %v328, %v327
  %v439 = vpack.c.b16 %v330, %v329
  %v440 = vpack.c.b16 %v332, %v331
  %v441 = vpack.c.b16 %v334, %v333
  %v442 = vpack.c.b16 %v336, %v335
  %v443 = vpack.c.b16 %v338, %v337
  %v444 = vpack.c.b16 %v340, %v339
  %v445 = vpack.c.b16 %v342, %v341
  %v446 = vpack.c.b16 %v344, %v343
  %v447 = vpack.c.b16 %v346, %v345
  %v448 = vpack.c.b16 %v348, %v347
  %v449 = vpack.c.b16 %v350, %v349
  %v450 = vpack.c.b16 %v352, %v351
  %v451 = vpack.c.b16 %v354, %v353
  %v452 = vpack.c.b16 %v356, %v355
  %v453 = vpack.c.b16 %v358, %v357
  %v454 = vpack.c.b16 %v360, %v359
  %v455 = vpack.c.b16 %v362, %v361
  %v456 = vpack.c.b16 %v364, %v363
  %v457 = vpack.c.b16 %v366, %v365
  %v458 = vpack.c.b16 %v368, %v367
  %v459 = vpack.c.b16 %v370, %v369
  %v460 = vpack.c.b16 %v372, %v371
  %v461 = vpack.c.b16 %v374, %v373
  %v462 = vpack.c.b16 %v376, %v375
  %v463 = vpack.c.b16 %v378, %v377
  %v464 = vpack.c.b16 %v380, %v379
  %v465 = vpack.c.b16 %v382, %v381
  %v466 = vpack.c.b16 %v384, %v383
  %v467 = vpack.c.b16 %v386, %v385
  %v468 = vpack.c.b16 %v388, %v387
  %v469 = vpack.c.b16 %v390, %v389
  %v470 = vpack.c.b16 %v392, %v391
  %v471 = vpack.c.b16 %v394, %v393
  %v472 = vpack.c.b16 %v396, %v395
  %v473 = vpack.c.b16 %v398, %v397
  %v474 = vpack.c.b16 %v400, %v399
  %v475 = vpack.c.b16 %v402, %v401
  %v476 = vpack.c.b16 %v404, %v403
  %v477 = vpack.c.b16 %v406, %v405
  %v478 = vpack.c.b16 %v408, %v407
  %v479 = vpack.c.b16 %v410, %v409
  %v480 = vpack.c.b16 %v412, %v411
  %v481 = vpack.c.b16 %v414, %v413
  %v482 = vpack.c.b16 %v416, %v415
  %v483 = vpack.c.b16 %v418, %v417
  %v484 = vpack.c.b16 %v420, %v419
  %v565 = vunpack.c.l.b16 %v145
  %v566 = vunpack.c.l.b16 %v146
  %v567 = vunpack.c.l.b16 %v147
  %v568 = vunpack.c.l.b16 %v148
  %v569 = vunpack.c.l.b16 %v149
  %v570 = vunpack.c.l.b16 %v150
  %v571 = vunpack.c.l.b16 %v151
  %v572 = vunpack.c.l.b16 %v152
  %v573 = vunpack.c.l.b16 %v153
  %v574 = vunpack.c.l.b16 %v154
  %v575 = vunpack.c.l.b16 %v155
  %v576 = vunpack.c.l.b16 %v156
  %v577 = vunpack.c.l.b16 %v157
  %v578 = vunpack.c.l.b16 %v158
  %v579 = vunpack.c.l.b16 %v159
  %v580 = vunpack.c.l.b16 %v160
  %v581 = vpack.c.b16 %v566, %v565
  %v582 = vpack.c.b16 %v568, %v567
  %v583 = vpack.c.b16 %v570, %v569
  %v584 = vpack.c.b16 %v572, %v571
  %v585 = vpack.c.b16 %v574, %v573
  %v586 = vpack.c.b16 %v576, %v575
  %v587 = vpack.c.b16 %v578, %v577
  %v588 = vpack.c.b16 %v580, %v579
  %597 = vmatpush.bf16.msra.mxu0 %v588
  %598 = vmatpush.bf16.msra.mxu0 %v587
  %599 = vmatpush.bf16.msra.mxu0 %v586
  %600 = vmatpush.bf16.msra.mxu0 %v585
  %601 = vmatpush.bf16.msra.mxu0 %v584
  %602 = vmatpush.bf16.msra.mxu0 %v583
  %603 = vmatpush.bf16.msra.mxu0 %v582
  %604 = vmatpush.bf16.msra.mxu0 %v581
  %605 = vmatmul.bf16.gmra.mxu0 %v421
  %v606 = vpop.f32.mrf.mxu0
  %v607 = vadd.f32 %v163, %v606
  %v608 = vpop.f32.mrf.mxu0
  %v609 = vadd.f32 %v163, %v608
  %610 = vmatmul.bf16.gmra.mxu0 %v422
  %v611 = vpop.f32.mrf.mxu0
  %v612 = vadd.f32 %v163, %v611
  %v613 = vpop.f32.mrf.mxu0
  %v614 = vadd.f32 %v163, %v613
  %615 = vmatmul.bf16.gmra.mxu0 %v423
  %v616 = vpop.f32.mrf.mxu0
  %v617 = vadd.f32 %v163, %v616
  %v618 = vpop.f32.mrf.mxu0
  %v619 = vadd.f32 %v163, %v618
  %620 = vmatmul.bf16.gmra.mxu0 %v424
  %v621 = vpop.f32.mrf.mxu0
  %v622 = vadd.f32 %v163, %v621
  %v623 = vpop.f32.mrf.mxu0
  %v624 = vadd.f32 %v163, %v623
  %625 = vmatmul.bf16.gmra.mxu0 %v425
  %v626 = vpop.f32.mrf.mxu0
  %v627 = vadd.f32 %v163, %v626
  %v628 = vpop.f32.mrf.mxu0
  %v629 = vadd.f32 %v163, %v628
  %630 = vmatmul.bf16.gmra.mxu0 %v426
  %v631 = vpop.f32.mrf.mxu0
  %v632 = vadd.f32 %v163, %v631
  %v633 = vpop.f32.mrf.mxu0
  %v634 = vadd.f32 %v163, %v633
  %635 = vmatmul.bf16.gmra.mxu0 %v427
  %v636 = vpop.f32.mrf.mxu0
  %v637 = vadd.f32 %v163, %v636
  %v638 = vpop.f32.mrf.mxu0
  %v639 = vadd.f32 %v163, %v638
  %640 = vmatmul.bf16.gmra.mxu0 %v428
  %v641 = vpop.f32.mrf.mxu0
  %v642 = vadd.f32 %v163, %v641
  %v643 = vpop.f32.mrf.mxu0
  %v644 = vadd.f32 %v163, %v643
  %645 = vmatmul.bf16.gmra.mxu0 %v429
  %v646 = vpop.f32.mrf.mxu0
  %v647 = vadd.f32 %v163, %v646
  %v648 = vpop.f32.mrf.mxu0
  %v649 = vadd.f32 %v163, %v648
  %650 = vmatmul.bf16.gmra.mxu0 %v430
  %v651 = vpop.f32.mrf.mxu0
  %v652 = vadd.f32 %v163, %v651
  %v653 = vpop.f32.mrf.mxu0
  %v654 = vadd.f32 %v163, %v653
  %655 = vmatmul.bf16.gmra.mxu0 %v431
  %v656 = vpop.f32.mrf.mxu0
  %v657 = vadd.f32 %v163, %v656
  %v658 = vpop.f32.mrf.mxu0
  %v659 = vadd.f32 %v163, %v658
  %660 = vmatmul.bf16.gmra.mxu0 %v432
  %v661 = vpop.f32.mrf.mxu0
  %v662 = vadd.f32 %v163, %v661
  %v663 = vpop.f32.mrf.mxu0
  %v664 = vadd.f32 %v163, %v663
  %665 = vmatmul.bf16.gmra.mxu0 %v433
  %v666 = vpop.f32.mrf.mxu0
  %v667 = vadd.f32 %v163, %v666
  %v668 = vpop.f32.mrf.mxu0
  %v669 = vadd.f32 %v163, %v668
  %670 = vmatmul.bf16.gmra.mxu0 %v434
  %v671 = vpop.f32.mrf.mxu0
  %v672 = vadd.f32 %v163, %v671
  %v673 = vpop.f32.mrf.mxu0
  %v674 = vadd.f32 %v163, %v673
  %675 = vmatmul.bf16.gmra.mxu0 %v435
  %v676 = vpop.f32.mrf.mxu0
  %v677 = vadd.f32 %v163, %v676
  %v678 = vpop.f32.mrf.mxu0
  %v679 = vadd.f32 %v163, %v678
  %680 = vmatmul.bf16.gmra.mxu0 %v436
  %v681 = vpop.f32.mrf.mxu0
  %v682 = vadd.f32 %v163, %v681
  %v683 = vpop.f32.mrf.mxu0
  %v684 = vadd.f32 %v163, %v683
  %685 = vmatmul.bf16.gmra.mxu0 %v437
  %v686 = vpop.f32.mrf.mxu0
  %v687 = vadd.f32 %v163, %v686
  %v688 = vpop.f32.mrf.mxu0
  %v689 = vadd.f32 %v163, %v688
  %690 = vmatmul.bf16.gmra.mxu0 %v438
  %v691 = vpop.f32.mrf.mxu0
  %v692 = vadd.f32 %v163, %v691
  %v693 = vpop.f32.mrf.mxu0
  %v694 = vadd.f32 %v163, %v693
  %695 = vmatmul.bf16.gmra.mxu0 %v439
  %v696 = vpop.f32.mrf.mxu0
  %v697 = vadd.f32 %v163, %v696
  %v698 = vpop.f32.mrf.mxu0
  %v699 = vadd.f32 %v163, %v698
  %700 = vmatmul.bf16.gmra.mxu0 %v440
  %v701 = vpop.f32.mrf.mxu0
  %v702 = vadd.f32 %v163, %v701
  %v703 = vpop.f32.mrf.mxu0
  %v704 = vadd.f32 %v163, %v703
  %705 = vmatmul.bf16.gmra.mxu0 %v441
  %v706 = vpop.f32.mrf.mxu0
  %v707 = vadd.f32 %v163, %v706
  %v708 = vpop.f32.mrf.mxu0
  %v709 = vadd.f32 %v163, %v708
  %710 = vmatmul.bf16.gmra.mxu0 %v442
  %v711 = vpop.f32.mrf.mxu0
  %v712 = vadd.f32 %v163, %v711
  %v713 = vpop.f32.mrf.mxu0
  %v714 = vadd.f32 %v163, %v713
  %715 = vmatmul.bf16.gmra.mxu0 %v443
  %v716 = vpop.f32.mrf.mxu0
  %v717 = vadd.f32 %v163, %v716
  %v718 = vpop.f32.mrf.mxu0
  %v719 = vadd.f32 %v163, %v718
  %720 = vmatmul.bf16.gmra.mxu0 %v444
  %v721 = vpop.f32.mrf.mxu0
  %v722 = vadd.f32 %v163, %v721
  %v723 = vpop.f32.mrf.mxu0
  %v724 = vadd.f32 %v163, %v723
  %725 = vmatmul.bf16.gmra.mxu0 %v445
  %v726 = vpop.f32.mrf.mxu0
  %v727 = vadd.f32 %v163, %v726
  %v728 = vpop.f32.mrf.mxu0
  %v729 = vadd.f32 %v163, %v728
  %730 = vmatmul.bf16.gmra.mxu0 %v446
  %v731 = vpop.f32.mrf.mxu0
  %v732 = vadd.f32 %v163, %v731
  %v733 = vpop.f32.mrf.mxu0
  %v734 = vadd.f32 %v163, %v733
  %735 = vmatmul.bf16.gmra.mxu0 %v447
  %v736 = vpop.f32.mrf.mxu0
  %v737 = vadd.f32 %v163, %v736
  %v738 = vpop.f32.mrf.mxu0
  %v739 = vadd.f32 %v163, %v738
  %740 = vmatmul.bf16.gmra.mxu0 %v448
  %v741 = vpop.f32.mrf.mxu0
  %v742 = vadd.f32 %v163, %v741
  %v743 = vpop.f32.mrf.mxu0
  %v744 = vadd.f32 %v163, %v743
  %745 = vmatmul.bf16.gmra.mxu0 %v449
  %v746 = vpop.f32.mrf.mxu0
  %v747 = vadd.f32 %v163, %v746
  %v748 = vpop.f32.mrf.mxu0
  %v749 = vadd.f32 %v163, %v748
  %750 = vmatmul.bf16.gmra.mxu0 %v450
  %v751 = vpop.f32.mrf.mxu0
  %v752 = vadd.f32 %v163, %v751
  %v753 = vpop.f32.mrf.mxu0
  %v754 = vadd.f32 %v163, %v753
  %755 = vmatmul.bf16.gmra.mxu0 %v451
  %v756 = vpop.f32.mrf.mxu0
  %v757 = vadd.f32 %v163, %v756
  %v758 = vpop.f32.mrf.mxu0
  %v759 = vadd.f32 %v163, %v758
  %760 = vmatmul.bf16.gmra.mxu0 %v452
  %v761 = vpop.f32.mrf.mxu0
  %v762 = vadd.f32 %v163, %v761
  %v763 = vpop.f32.mrf.mxu0
  %v764 = vadd.f32 %v163, %v763
  %765 = vmatmul.bf16.gmra.mxu0 %v453
  %v766 = vpop.f32.mrf.mxu0
  %v767 = vadd.f32 %v163, %v766
  %v768 = vpop.f32.mrf.mxu0
  %v769 = vadd.f32 %v163, %v768
  %770 = vmatmul.bf16.gmra.mxu0 %v454
  %v771 = vpop.f32.mrf.mxu0
  %v772 = vadd.f32 %v163, %v771
  %v773 = vpop.f32.mrf.mxu0
  %v774 = vadd.f32 %v163, %v773
  %775 = vmatmul.bf16.gmra.mxu0 %v455
  %v776 = vpop.f32.mrf.mxu0
  %v777 = vadd.f32 %v163, %v776
  %v778 = vpop.f32.mrf.mxu0
  %v779 = vadd.f32 %v163, %v778
  %780 = vmatmul.bf16.gmra.mxu0 %v456
  %v781 = vpop.f32.mrf.mxu0
  %v782 = vadd.f32 %v163, %v781
  %v783 = vpop.f32.mrf.mxu0
  %v784 = vadd.f32 %v163, %v783
  %785 = vmatmul.bf16.gmra.mxu0 %v457
  %v786 = vpop.f32.mrf.mxu0
  %v787 = vadd.f32 %v163, %v786
  %v788 = vpop.f32.mrf.mxu0
  %v789 = vadd.f32 %v163, %v788
  %790 = vmatmul.bf16.gmra.mxu0 %v458
  %v791 = vpop.f32.mrf.mxu0
  %v792 = vadd.f32 %v163, %v791
  %v793 = vpop.f32.mrf.mxu0
  %v794 = vadd.f32 %v163, %v793
  %795 = vmatmul.bf16.gmra.mxu0 %v459
  %v796 = vpop.f32.mrf.mxu0
  %v797 = vadd.f32 %v163, %v796
  %v798 = vpop.f32.mrf.mxu0
  %v799 = vadd.f32 %v163, %v798
  %800 = vmatmul.bf16.gmra.mxu0 %v460
  %v801 = vpop.f32.mrf.mxu0
  %v802 = vadd.f32 %v163, %v801
  %v803 = vpop.f32.mrf.mxu0
  %v804 = vadd.f32 %v163, %v803
  %805 = vmatmul.bf16.gmra.mxu0 %v461
  %v806 = vpop.f32.mrf.mxu0
  %v807 = vadd.f32 %v163, %v806
  %v808 = vpop.f32.mrf.mxu0
  %v809 = vadd.f32 %v163, %v808
  %810 = vmatmul.bf16.gmra.mxu0 %v462
  %v811 = vpop.f32.mrf.mxu0
  %v812 = vadd.f32 %v163, %v811
  %v813 = vpop.f32.mrf.mxu0
  %v814 = vadd.f32 %v163, %v813
  %815 = vmatmul.bf16.gmra.mxu0 %v463
  %v816 = vpop.f32.mrf.mxu0
  %v817 = vadd.f32 %v163, %v816
  %v818 = vpop.f32.mrf.mxu0
  %v819 = vadd.f32 %v163, %v818
  %820 = vmatmul.bf16.gmra.mxu0 %v464
  %v821 = vpop.f32.mrf.mxu0
  %v822 = vadd.f32 %v163, %v821
  %v823 = vpop.f32.mrf.mxu0
  %v824 = vadd.f32 %v163, %v823
  %825 = vmatmul.bf16.gmra.mxu0 %v465
  %v826 = vpop.f32.mrf.mxu0
  %v827 = vadd.f32 %v163, %v826
  %v828 = vpop.f32.mrf.mxu0
  %v829 = vadd.f32 %v163, %v828
  %830 = vmatmul.bf16.gmra.mxu0 %v466
  %v831 = vpop.f32.mrf.mxu0
  %v832 = vadd.f32 %v163, %v831
  %v833 = vpop.f32.mrf.mxu0
  %v834 = vadd.f32 %v163, %v833
  %835 = vmatmul.bf16.gmra.mxu0 %v467
  %v836 = vpop.f32.mrf.mxu0
  %v837 = vadd.f32 %v163, %v836
  %v838 = vpop.f32.mrf.mxu0
  %v839 = vadd.f32 %v163, %v838
  %840 = vmatmul.bf16.gmra.mxu0 %v468
  %v841 = vpop.f32.mrf.mxu0
  %v842 = vadd.f32 %v163, %v841
  %v843 = vpop.f32.mrf.mxu0
  %v844 = vadd.f32 %v163, %v843
  %845 = vmatmul.bf16.gmra.mxu0 %v469
  %v846 = vpop.f32.mrf.mxu0
  %v847 = vadd.f32 %v163, %v846
  %v848 = vpop.f32.mrf.mxu0
  %v849 = vadd.f32 %v163, %v848
  %850 = vmatmul.bf16.gmra.mxu0 %v470
  %v851 = vpop.f32.mrf.mxu0
  %v852 = vadd.f32 %v163, %v851
  %v853 = vpop.f32.mrf.mxu0
  %v854 = vadd.f32 %v163, %v853
  %855 = vmatmul.bf16.gmra.mxu0 %v471
  %v856 = vpop.f32.mrf.mxu0
  %v857 = vadd.f32 %v163, %v856
  %v858 = vpop.f32.mrf.mxu0
  %v859 = vadd.f32 %v163, %v858
  %860 = vmatmul.bf16.gmra.mxu0 %v472
  %v861 = vpop.f32.mrf.mxu0
  %v862 = vadd.f32 %v163, %v861
  %v863 = vpop.f32.mrf.mxu0
  %v864 = vadd.f32 %v163, %v863
  %865 = vmatmul.bf16.gmra.mxu0 %v473
  %v866 = vpop.f32.mrf.mxu0
  %v867 = vadd.f32 %v163, %v866
  %v868 = vpop.f32.mrf.mxu0
  %v869 = vadd.f32 %v163, %v868
  %870 = vmatmul.bf16.gmra.mxu0 %v474
  %v871 = vpop.f32.mrf.mxu0
  %v872 = vadd.f32 %v163, %v871
  %v873 = vpop.f32.mrf.mxu0
  %v874 = vadd.f32 %v163, %v873
  %875 = vmatmul.bf16.gmra.mxu0 %v475
  %v876 = vpop.f32.mrf.mxu0
  %v877 = vadd.f32 %v163, %v876
  %v878 = vpop.f32.mrf.mxu0
  %v879 = vadd.f32 %v163, %v878
  %880 = vmatmul.bf16.gmra.mxu0 %v476
  %v881 = vpop.f32.mrf.mxu0
  %v882 = vadd.f32 %v163, %v881
  %v883 = vpop.f32.mrf.mxu0
  %v884 = vadd.f32 %v163, %v883
  %885 = vmatmul.bf16.gmra.mxu0 %v477
  %v886 = vpop.f32.mrf.mxu0
  %v887 = vadd.f32 %v163, %v886
  %v888 = vpop.f32.mrf.mxu0
  %v889 = vadd.f32 %v163, %v888
  %890 = vmatmul.bf16.gmra.mxu0 %v478
  %v891 = vpop.f32.mrf.mxu0
  %v892 = vadd.f32 %v163, %v891
  %v893 = vpop.f32.mrf.mxu0
  %v894 = vadd.f32 %v163, %v893
  %895 = vmatmul.bf16.gmra.mxu0 %v479
  %v896 = vpop.f32.mrf.mxu0
  %v897 = vadd.f32 %v163, %v896
  %v898 = vpop.f32.mrf.mxu0
  %v899 = vadd.f32 %v163, %v898
  %900 = vmatmul.bf16.gmra.mxu0 %v480
  %v901 = vpop.f32.mrf.mxu0
  %v902 = vadd.f32 %v163, %v901
  %v903 = vpop.f32.mrf.mxu0
  %v904 = vadd.f32 %v163, %v903
  %905 = vmatmul.bf16.gmra.mxu0 %v481
  %v906 = vpop.f32.mrf.mxu0
  %v907 = vadd.f32 %v163, %v906
  %v908 = vpop.f32.mrf.mxu0
  %v909 = vadd.f32 %v163, %v908
  %910 = vmatmul.bf16.gmra.mxu0 %v482
  %v911 = vpop.f32.mrf.mxu0
  %v912 = vadd.f32 %v163, %v911
  %v913 = vpop.f32.mrf.mxu0
  %v914 = vadd.f32 %v163, %v913
  %915 = vmatmul.bf16.gmra.mxu0 %v483
  %v916 = vpop.f32.mrf.mxu0
  %v917 = vadd.f32 %v163, %v916
  %v918 = vpop.f32.mrf.mxu0
  %v919 = vadd.f32 %v163, %v918
  %920 = vmatmul.bf16.gmra.mxu0 %v484
  %v921 = vpop.f32.mrf.mxu0
  %v922 = vadd.f32 %v163, %v921
  %v923 = vpop.f32.mrf.mxu0
  %v924 = vadd.f32 %v163, %v923
  %925 = vdwg.mxu0
  %v926 = vpack.c.bf16 %v607, %v607
  %v927 = vpack.c.bf16 %v609, %v609
  %v928 = vpack.c.bf16 %v612, %v612
  %v929 = vpack.c.bf16 %v614, %v614
  %v930 = vpack.c.bf16 %v617, %v617
  %v931 = vpack.c.bf16 %v619, %v619
  %v932 = vpack.c.bf16 %v622, %v622
  %v933 = vpack.c.bf16 %v624, %v624
  %v934 = vpack.c.bf16 %v627, %v627
  %v935 = vpack.c.bf16 %v629, %v629
  %v936 = vpack.c.bf16 %v632, %v632
  %v937 = vpack.c.bf16 %v634, %v634
  %v938 = vpack.c.bf16 %v637, %v637
  %v939 = vpack.c.bf16 %v639, %v639
  %v940 = vpack.c.bf16 %v642, %v642
  %v941 = vpack.c.bf16 %v644, %v644
  %v942 = vpack.c.bf16 %v647, %v647
  %v943 = vpack.c.bf16 %v649, %v649
  %v944 = vpack.c.bf16 %v652, %v652
  %v945 = vpack.c.bf16 %v654, %v654
  %v946 = vpack.c.bf16 %v657, %v657
  %v947 = vpack.c.bf16 %v659, %v659
  %v948 = vpack.c.bf16 %v662, %v662
  %v949 = vpack.c.bf16 %v664, %v664
  %v950 = vpack.c.bf16 %v667, %v667
  %v951 = vpack.c.bf16 %v669, %v669
  %v952 = vpack.c.bf16 %v672, %v672
  %v953 = vpack.c.bf16 %v674, %v674
  %v954 = vpack.c.bf16 %v677, %v677
  %v955 = vpack.c.bf16 %v679, %v679
  %v956 = vpack.c.bf16 %v682, %v682
  %v957 = vpack.c.bf16 %v684, %v684
  %v958 = vpack.c.bf16 %v687, %v687
  %v959 = vpack.c.bf16 %v689, %v689
  %v960 = vpack.c.bf16 %v692, %v692
  %v961 = vpack.c.bf16 %v694, %v694
  %v962 = vpack.c.bf16 %v697, %v697
  %v963 = vpack.c.bf16 %v699, %v699
  %v964 = vpack.c.bf16 %v702, %v702
  %v965 = vpack.c.bf16 %v704, %v704
  %v966 = vpack.c.bf16 %v707, %v707
  %v967 = vpack.c.bf16 %v709, %v709
  %v968 = vpack.c.bf16 %v712, %v712
  %v969 = vpack.c.bf16 %v714, %v714
  %v970 = vpack.c.bf16 %v717, %v717
  %v971 = vpack.c.bf16 %v719, %v719
  %v972 = vpack.c.bf16 %v722, %v722
  %v973 = vpack.c.bf16 %v724, %v724
  %v974 = vpack.c.bf16 %v727, %v727
  %v975 = vpack.c.bf16 %v729, %v729
  %v976 = vpack.c.bf16 %v732, %v732
  %v977 = vpack.c.bf16 %v734, %v734
  %v978 = vpack.c.bf16 %v737, %v737
  %v979 = vpack.c.bf16 %v739, %v739
  %v980 = vpack.c.bf16 %v742, %v742
  %v981 = vpack.c.bf16 %v744, %v744
  %v982 = vpack.c.bf16 %v747, %v747
  %v983 = vpack.c.bf16 %v749, %v749
  %v984 = vpack.c.bf16 %v752, %v752
  %v985 = vpack.c.bf16 %v754, %v754
  %v986 = vpack.c.bf16 %v757, %v757
  %v987 = vpack.c.bf16 %v759, %v759
  %v988 = vpack.c.bf16 %v762, %v762
  %v989 = vpack.c.bf16 %v764, %v764
  %v990 = vpack.c.bf16 %v767, %v767
  %v991 = vpack.c.bf16 %v769, %v769
  %v992 = vpack.c.bf16 %v772, %v772
  %v993 = vpack.c.bf16 %v774, %v774
  %v994 = vpack.c.bf16 %v777, %v777
  %v995 = vpack.c.bf16 %v779, %v779
  %v996 = vpack.c.bf16 %v782, %v782
  %v997 = vpack.c.bf16 %v784, %v784
  %v998 = vpack.c.bf16 %v787, %v787
  %v999 = vpack.c.bf16 %v789, %v789
  %v1000 = vpack.c.bf16 %v792, %v792
  %v1001 = vpack.c.bf16 %v794, %v794
  %v1002 = vpack.c.bf16 %v797, %v797
  %v1003 = vpack.c.bf16 %v799, %v799
  %v1004 = vpack.c.bf16 %v802, %v802
  %v1005 = vpack.c.bf16 %v804, %v804
  %v1006 = vpack.c.bf16 %v807, %v807
  %v1007 = vpack.c.bf16 %v809, %v809
  %v1008 = vpack.c.bf16 %v812, %v812
  %v1009 = vpack.c.bf16 %v814, %v814
  %v1010 = vpack.c.bf16 %v817, %v817
  %v1011 = vpack.c.bf16 %v819, %v819
  %v1012 = vpack.c.bf16 %v822, %v822
  %v1013 = vpack.c.bf16 %v824, %v824
  %v1014 = vpack.c.bf16 %v827, %v827
  %v1015 = vpack.c.bf16 %v829, %v829
  %v1016 = vpack.c.bf16 %v832, %v832
  %v1017 = vpack.c.bf16 %v834, %v834
  %v1018 = vpack.c.bf16 %v837, %v837
  %v1019 = vpack.c.bf16 %v839, %v839
  %v1020 = vpack.c.bf16 %v842, %v842
  %v1021 = vpack.c.bf16 %v844, %v844
  %v1022 = vpack.c.bf16 %v847, %v847
  %v1023 = vpack.c.bf16 %v849, %v849
  %v1024 = vpack.c.bf16 %v852, %v852
  %v1025 = vpack.c.bf16 %v854, %v854
  %v1026 = vpack.c.bf16 %v857, %v857
  %v1027 = vpack.c.bf16 %v859, %v859
  %v1028 = vpack.c.bf16 %v862, %v862
  %v1029 = vpack.c.bf16 %v864, %v864
  %v1030 = vpack.c.bf16 %v867, %v867
  %v1031 = vpack.c.bf16 %v869, %v869
  %v1032 = vpack.c.bf16 %v872, %v872
  %v1033 = vpack.c.bf16 %v874, %v874
  %v1034 = vpack.c.bf16 %v877, %v877
  %v1035 = vpack.c.bf16 %v879, %v879
  %v1036 = vpack.c.bf16 %v882, %v882
  %v1037 = vpack.c.bf16 %v884, %v884
  %v1038 = vpack.c.bf16 %v887, %v887
  %v1039 = vpack.c.bf16 %v889, %v889
  %v1040 = vpack.c.bf16 %v892, %v892
  %v1041 = vpack.c.bf16 %v894, %v894
  %v1042 = vpack.c.bf16 %v897, %v897
  %v1043 = vpack.c.bf16 %v899, %v899
  %v1044 = vpack.c.bf16 %v902, %v902
  %v1045 = vpack.c.bf16 %v904, %v904
  %v1046 = vpack.c.bf16 %v907, %v907
  %v1047 = vpack.c.bf16 %v909, %v909
  %v1048 = vpack.c.bf16 %v912, %v912
  %v1049 = vpack.c.bf16 %v914, %v914
  %v1050 = vpack.c.bf16 %v917, %v917
  %v1051 = vpack.c.bf16 %v919, %v919
  %v1052 = vpack.c.bf16 %v922, %v922
  %v1053 = vpack.c.bf16 %v924, %v924
  %1054 = vst [vmem:[%s3] sm:$0xf] %v926
  %1055 = vst [vmem:[%s3 + $0x4] sm:$0xf] %v927
  %1056 = vst [vmem:[%s3 + $0x8] sm:$0xf] %v928
  %1057 = vst [vmem:[%s3 + $0xc] sm:$0xf] %v929
  %1058 = vst [vmem:[%s3 + $0x10] sm:$0xf] %v930
  %1059 = vst [vmem:[%s3 + $0x14] sm:$0xf] %v931
  %1060 = vst [vmem:[%s3 + $0x18] sm:$0xf] %v932
  %1061 = vst [vmem:[%s3 + $0x1c] sm:$0xf] %v933
  %1062 = vst [vmem:[%s3 + $0x20] sm:$0xf] %v934
  %1063 = vst [vmem:[%s3 + $0x24] sm:$0xf] %v935
  %1064 = vst [vmem:[%s3 + $0x28] sm:$0xf] %v936
  %1065 = vst [vmem:[%s3 + $0x2c] sm:$0xf] %v937
  %1066 = vst [vmem:[%s3 + $0x30] sm:$0xf] %v938
  %1067 = vst [vmem:[%s3 + $0x34] sm:$0xf] %v939
  %1068 = vst [vmem:[%s3 + $0x38] sm:$0xf] %v940
  %1069 = vst [vmem:[%s3 + $0x3c] sm:$0xf] %v941
  %1070 = vst [vmem:[%s3 + $0x40] sm:$0xf] %v942
  %1071 = vst [vmem:[%s3 + $0x44] sm:$0xf] %v943
  %1072 = vst [vmem:[%s3 + $0x48] sm:$0xf] %v944
  %1073 = vst [vmem:[%s3 + $0x4c] sm:$0xf] %v945
  %1074 = vst [vmem:[%s3 + $0x50] sm:$0xf] %v946
  %1075 = vst [vmem:[%s3 + $0x54] sm:$0xf] %v947
  %1076 = vst [vmem:[%s3 + $0x58] sm:$0xf] %v948
  %1077 = vst [vmem:[%s3 + $0x5c] sm:$0xf] %v949
  %1078 = vst [vmem:[%s3 + $0x60] sm:$0xf] %v950
  %1079 = vst [vmem:[%s3 + $0x64] sm:$0xf] %v951
  %1080 = vst [vmem:[%s3 + $0x68] sm:$0xf] %v952
  %1081 = vst [vmem:[%s3 + $0x6c] sm:$0xf] %v953
  %1082 = vst [vmem:[%s3 + $0x70] sm:$0xf] %v954
  %1083 = vst [vmem:[%s3 + $0x74] sm:$0xf] %v955
  %1084 = vst [vmem:[%s3 + $0x78] sm:$0xf] %v956
  %1085 = vst [vmem:[%s3 + $0x7c] sm:$0xf] %v957
  %1086 = vst [vmem:[%s3 + $0x80] sm:$0xf] %v958
  %1087 = vst [vmem:[%s3 + $0x84] sm:$0xf] %v959
  %1088 = vst [vmem:[%s3 + $0x88] sm:$0xf] %v960
  %1089 = vst [vmem:[%s3 + $0x8c] sm:$0xf] %v961
  %1090 = vst [vmem:[%s3 + $0x90] sm:$0xf] %v962
  %1091 = vst [vmem:[%s3 + $0x94] sm:$0xf] %v963
  %1092 = vst [vmem:[%s3 + $0x98] sm:$0xf] %v964
  %1093 = vst [vmem:[%s3 + $0x9c] sm:$0xf] %v965
  %1094 = vst [vmem:[%s3 + $0xa0] sm:$0xf] %v966
  %1095 = vst [vmem:[%s3 + $0xa4] sm:$0xf] %v967
  %1096 = vst [vmem:[%s3 + $0xa8] sm:$0xf] %v968
  %1097 = vst [vmem:[%s3 + $0xac] sm:$0xf] %v969
  %1098 = vst [vmem:[%s3 + $0xb0] sm:$0xf] %v970
  %1099 = vst [vmem:[%s3 + $0xb4] sm:$0xf] %v971
  %1100 = vst [vmem:[%s3 + $0xb8] sm:$0xf] %v972
  %1101 = vst [vmem:[%s3 + $0xbc] sm:$0xf] %v973
  %1102 = vst [vmem:[%s3 + $0xc0] sm:$0xf] %v974
  %1103 = vst [vmem:[%s3 + $0xc4] sm:$0xf] %v975
  %1104 = vst [vmem:[%s3 + $0xc8] sm:$0xf] %v976
  %1105 = vst [vmem:[%s3 + $0xcc] sm:$0xf] %v977
  %1106 = vst [vmem:[%s3 + $0xd0] sm:$0xf] %v978
  %1107 = vst [vmem:[%s3 + $0xd4] sm:$0xf] %v979
  %1108 = vst [vmem:[%s3 + $0xd8] sm:$0xf] %v980
  %1109 = vst [vmem:[%s3 + $0xdc] sm:$0xf] %v981
  %1110 = vst [vmem:[%s3 + $0xe0] sm:$0xf] %v982
  %1111 = vst [vmem:[%s3 + $0xe4] sm:$0xf] %v983
  %1112 = vst [vmem:[%s3 + $0xe8] sm:$0xf] %v984
  %1113 = vst [vmem:[%s3 + $0xec] sm:$0xf] %v985
  %1114 = vst [vmem:[%s3 + $0xf0] sm:$0xf] %v986
  %1115 = vst [vmem:[%s3 + $0xf4] sm:$0xf] %v987
  %1116 = vst [vmem:[%s3 + $0xf8] sm:$0xf] %v988
  %1117 = vst [vmem:[%s3 + $0xfc] sm:$0xf] %v989
  %1118 = vst [vmem:[%s3 + $0x100] sm:$0xf] %v990
  %1119 = vst [vmem:[%s3 + $0x104] sm:$0xf] %v991
  %1120 = vst [vmem:[%s3 + $0x108] sm:$0xf] %v992
  %1121 = vst [vmem:[%s3 + $0x10c] sm:$0xf] %v993
  %1122 = vst [vmem:[%s3 + $0x110] sm:$0xf] %v994
  %1123 = vst [vmem:[%s3 + $0x114] sm:$0xf] %v995
  %1124 = vst [vmem:[%s3 + $0x118] sm:$0xf] %v996
  %1125 = vst [vmem:[%s3 + $0x11c] sm:$0xf] %v997
  %1126 = vst [vmem:[%s3 + $0x120] sm:$0xf] %v998
  %1127 = vst [vmem:[%s3 + $0x124] sm:$0xf] %v999
  %1128 = vst [vmem:[%s3 + $0x128] sm:$0xf] %v1000
  %1129 = vst [vmem:[%s3 + $0x12c] sm:$0xf] %v1001
  %1130 = vst [vmem:[%s3 + $0x130] sm:$0xf] %v1002
  %1131 = vst [vmem:[%s3 + $0x134] sm:$0xf] %v1003
  %1132 = vst [vmem:[%s3 + $0x138] sm:$0xf] %v1004
  %1133 = vst [vmem:[%s3 + $0x13c] sm:$0xf] %v1005
  %1134 = vst [vmem:[%s3 + $0x140] sm:$0xf] %v1006
  %1135 = vst [vmem:[%s3 + $0x144] sm:$0xf] %v1007
  %1136 = vst [vmem:[%s3 + $0x148] sm:$0xf] %v1008
  %1137 = vst [vmem:[%s3 + $0x14c] sm:$0xf] %v1009
  %1138 = vst [vmem:[%s3 + $0x150] sm:$0xf] %v1010
  %1139 = vst [vmem:[%s3 + $0x154] sm:$0xf] %v1011
  %1140 = vst [vmem:[%s3 + $0x158] sm:$0xf] %v1012
  %1141 = vst [vmem:[%s3 + $0x15c] sm:$0xf] %v1013
  %1142 = vst [vmem:[%s3 + $0x160] sm:$0xf] %v1014
  %1143 = vst [vmem:[%s3 + $0x164] sm:$0xf] %v1015
  %1144 = vst [vmem:[%s3 + $0x168] sm:$0xf] %v1016
  %1145 = vst [vmem:[%s3 + $0x16c] sm:$0xf] %v1017
  %1146 = vst [vmem:[%s3 + $0x170] sm:$0xf] %v1018
  %1147 = vst [vmem:[%s3 + $0x174] sm:$0xf] %v1019
  %1148 = vst [vmem:[%s3 + $0x178] sm:$0xf] %v1020
  %1149 = vst [vmem:[%s3 + $0x17c] sm:$0xf] %v1021
  %1150 = vst [vmem:[%s3 + $0x180] sm:$0xf] %v1022
  %1151 = vst [vmem:[%s3 + $0x184] sm:$0xf] %v1023
  %1152 = vst [vmem:[%s3 + $0x188] sm:$0xf] %v1024
  %1153 = vst [vmem:[%s3 + $0x18c] sm:$0xf] %v1025
  %1154 = vst [vmem:[%s3 + $0x190] sm:$0xf] %v1026
  %1155 = vst [vmem:[%s3 + $0x194] sm:$0xf] %v1027
  %1156 = vst [vmem:[%s3 + $0x198] sm:$0xf] %v1028
  %1157 = vst [vmem:[%s3 + $0x19c] sm:$0xf] %v1029
  %1158 = vst [vmem:[%s3 + $0x1a0] sm:$0xf] %v1030
  %1159 = vst [vmem:[%s3 + $0x1a4] sm:$0xf] %v1031
  %1160 = vst [vmem:[%s3 + $0x1a8] sm:$0xf] %v1032
  %1161 = vst [vmem:[%s3 + $0x1ac] sm:$0xf] %v1033
  %1162 = vst [vmem:[%s3 + $0x1b0] sm:$0xf] %v1034
  %1163 = vst [vmem:[%s3 + $0x1b4] sm:$0xf] %v1035
  %1164 = vst [vmem:[%s3 + $0x1b8] sm:$0xf] %v1036
  %1165 = vst [vmem:[%s3 + $0x1bc] sm:$0xf] %v1037
  %1166 = vst [vmem:[%s3 + $0x1c0] sm:$0xf] %v1038
  %1167 = vst [vmem:[%s3 + $0x1c4] sm:$0xf] %v1039
  %1168 = vst [vmem:[%s3 + $0x1c8] sm:$0xf] %v1040
  %1169 = vst [vmem:[%s3 + $0x1cc] sm:$0xf] %v1041
  %1170 = vst [vmem:[%s3 + $0x1d0] sm:$0xf] %v1042
  %1171 = vst [vmem:[%s3 + $0x1d4] sm:$0xf] %v1043
  %1172 = vst [vmem:[%s3 + $0x1d8] sm:$0xf] %v1044
  %1173 = vst [vmem:[%s3 + $0x1dc] sm:$0xf] %v1045
  %1174 = vst [vmem:[%s3 + $0x1e0] sm:$0xf] %v1046
  %1175 = vst [vmem:[%s3 + $0x1e4] sm:$0xf] %v1047
  %1176 = vst [vmem:[%s3 + $0x1e8] sm:$0xf] %v1048
  %1177 = vst [vmem:[%s3 + $0x1ec] sm:$0xf] %v1049
  %1178 = vst [vmem:[%s3 + $0x1f0] sm:$0xf] %v1050
  %1179 = vst [vmem:[%s3 + $0x1f4] sm:$0xf] %v1051
  %1180 = vst [vmem:[%s3 + $0x1f8] sm:$0xf] %v1052
  %1181 = vst [vmem:[%s3 + $0x1fc] sm:$0xf] %v1053
  %v1182 = vadd.f32 %v607, %v609
  %v1183 = vadd.f32 %v1182, %v612
  %v1184 = vadd.f32 %v1183, %v614
  %v1185 = vadd.f32 %v1184, %v617
  %v1186 = vadd.f32 %v1185, %v619
  %v1187 = vadd.f32 %v1186, %v622
  %v1188 = vadd.f32 %v1187, %v624
  %v1189 = vadd.f32 %v1188, %v627
  %v1190 = vadd.f32 %v1189, %v629
  %v1191 = vadd.f32 %v1190, %v632
  %v1192 = vadd.f32 %v1191, %v634
  %v1193 = vadd.f32 %v1192, %v637
  %v1194 = vadd.f32 %v1193, %v639
  %v1195 = vadd.f32 %v1194, %v642
  %v1196 = vadd.f32 %v1195, %v644
  %v1197 = vadd.f32 %v1196, %v647
  %v1198 = vadd.f32 %v1197, %v649
  %v1199 = vadd.f32 %v1198, %v652
  %v1200 = vadd.f32 %v1199, %v654
  %v1201 = vadd.f32 %v1200, %v657
  %v1202 = vadd.f32 %v1201, %v659
  %v1203 = vadd.f32 %v1202, %v662
  %v1204 = vadd.f32 %v1203, %v664
  %v1205 = vadd.f32 %v1204, %v667
  %v1206 = vadd.f32 %v1205, %v669
  %v1207 = vadd.f32 %v1206, %v672
  %v1208 = vadd.f32 %v1207, %v674
  %v1209 = vadd.f32 %v1208, %v677
  %v1210 = vadd.f32 %v1209, %v679
  %v1211 = vadd.f32 %v1210, %v682
  %v1212 = vadd.f32 %v1211, %v684
  %v1213 = vadd.f32 %v1212, %v687
  %v1214 = vadd.f32 %v1213, %v689
  %v1215 = vadd.f32 %v1214, %v692
  %v1216 = vadd.f32 %v1215, %v694
  %v1217 = vadd.f32 %v1216, %v697
  %v1218 = vadd.f32 %v1217, %v699
  %v1219 = vadd.f32 %v1218, %v702
  %v1220 = vadd.f32 %v1219, %v704
  %v1221 = vadd.f32 %v1220, %v707
  %v1222 = vadd.f32 %v1221, %v709
  %v1223 = vadd.f32 %v1222, %v712
  %v1224 = vadd.f32 %v1223, %v714
  %v1225 = vadd.f32 %v1224, %v717
  %v1226 = vadd.f32 %v1225, %v719
  %v1227 = vadd.f32 %v1226, %v722
  %v1228 = vadd.f32 %v1227, %v724
  %v1229 = vadd.f32 %v1228, %v727
  %v1230 = vadd.f32 %v1229, %v729
  %v1231 = vadd.f32 %v1230, %v732
  %v1232 = vadd.f32 %v1231, %v734
  %v1233 = vadd.f32 %v1232, %v737
  %v1234 = vadd.f32 %v1233, %v739
  %v1235 = vadd.f32 %v1234, %v742
  %v1236 = vadd.f32 %v1235, %v744
  %v1237 = vadd.f32 %v1236, %v747
  %v1238 = vadd.f32 %v1237, %v749
  %v1239 = vadd.f32 %v1238, %v752
  %v1240 = vadd.f32 %v1239, %v754
  %v1241 = vadd.f32 %v1240, %v757
  %v1242 = vadd.f32 %v1241, %v759
  %v1243 = vadd.f32 %v1242, %v762
  %v1244 = vadd.f32 %v1243, %v764
  %v1245 = vadd.f32 %v1244, %v767
  %v1246 = vadd.f32 %v1245, %v769
  %v1247 = vadd.f32 %v1246, %v772
  %v1248 = vadd.f32 %v1247, %v774
  %v1249 = vadd.f32 %v1248, %v777
  %v1250 = vadd.f32 %v1249, %v779
  %v1251 = vadd.f32 %v1250, %v782
  %v1252 = vadd.f32 %v1251, %v784
  %v1253 = vadd.f32 %v1252, %v787
  %v1254 = vadd.f32 %v1253, %v789
  %v1255 = vadd.f32 %v1254, %v792
  %v1256 = vadd.f32 %v1255, %v794
  %v1257 = vadd.f32 %v1256, %v797
  %v1258 = vadd.f32 %v1257, %v799
  %v1259 = vadd.f32 %v1258, %v802
  %v1260 = vadd.f32 %v1259, %v804
  %v1261 = vadd.f32 %v1260, %v807
  %v1262 = vadd.f32 %v1261, %v809
  %v1263 = vadd.f32 %v1262, %v812
  %v1264 = vadd.f32 %v1263, %v814
  %v1265 = vadd.f32 %v1264, %v817
  %v1266 = vadd.f32 %v1265, %v819
  %v1267 = vadd.f32 %v1266, %v822
  %v1268 = vadd.f32 %v1267, %v824
  %v1269 = vadd.f32 %v1268, %v827
  %v1270 = vadd.f32 %v1269, %v829
  %v1271 = vadd.f32 %v1270, %v832
  %v1272 = vadd.f32 %v1271, %v834
  %v1273 = vadd.f32 %v1272, %v837
  %v1274 = vadd.f32 %v1273, %v839
  %v1275 = vadd.f32 %v1274, %v842
  %v1276 = vadd.f32 %v1275, %v844
  %v1277 = vadd.f32 %v1276, %v847
  %v1278 = vadd.f32 %v1277, %v849
  %v1279 = vadd.f32 %v1278, %v852
  %v1280 = vadd.f32 %v1279, %v854
  %v1281 = vadd.f32 %v1280, %v857
  %v1282 = vadd.f32 %v1281, %v859
  %v1283 = vadd.f32 %v1282, %v862
  %v1284 = vadd.f32 %v1283, %v864
  %v1285 = vadd.f32 %v1284, %v867
  %v1286 = vadd.f32 %v1285, %v869
  %v1287 = vadd.f32 %v1286, %v872
  %v1288 = vadd.f32 %v1287, %v874
  %v1289 = vadd.f32 %v1288, %v877
  %v1290 = vadd.f32 %v1289, %v879
  %v1291 = vadd.f32 %v1290, %v882
  %v1292 = vadd.f32 %v1291, %v884
  %v1293 = vadd.f32 %v1292, %v887
  %v1294 = vadd.f32 %v1293, %v889
  %v1295 = vadd.f32 %v1294, %v892
  %v1296 = vadd.f32 %v1295, %v894
  %v1297 = vadd.f32 %v1296, %v897
  %v1298 = vadd.f32 %v1297, %v899
  %v1299 = vadd.f32 %v1298, %v902
  %v1300 = vadd.f32 %v1299, %v904
  %v1301 = vadd.f32 %v1300, %v907
  %v1302 = vadd.f32 %v1301, %v909
  %v1303 = vadd.f32 %v1302, %v912
  %v1304 = vadd.f32 %v1303, %v914
  %v1305 = vadd.f32 %v1304, %v917
  %v1306 = vadd.f32 %v1305, %v919
  %v1307 = vadd.f32 %v1306, %v922
  %v1308 = vadd.f32 %v1307, %v924
  %v1309 = vrot.slane %v1308, 4
  %v1310 = vadd.f32 %v1308, %v1309
  %v1311 = vrot.slane %v1310, 2
  %v1312 = vadd.f32 %v1310, %v1311
  %v1313 = vrot.slane %v1312, 1
  %v1314 = vadd.f32 %v1312, %v1313
  %v1315 = vmul.f32 %v607, %v607
  %v1316 = vmul.f32 %v609, %v609
  %v1317 = vmul.f32 %v612, %v612
  %v1318 = vmul.f32 %v614, %v614
  %v1319 = vmul.f32 %v617, %v617
  %v1320 = vmul.f32 %v619, %v619
  %v1321 = vmul.f32 %v622, %v622
  %v1322 = vmul.f32 %v624, %v624
  %v1323 = vmul.f32 %v627, %v627
  %v1324 = vmul.f32 %v629, %v629
  %v1325 = vmul.f32 %v632, %v632
  %v1326 = vmul.f32 %v634, %v634
  %v1327 = vmul.f32 %v637, %v637
  %v1328 = vmul.f32 %v639, %v639
  %v1329 = vmul.f32 %v642, %v642
  %v1330 = vmul.f32 %v644, %v644
  %v1331 = vmul.f32 %v647, %v647
  %v1332 = vmul.f32 %v649, %v649
  %v1333 = vmul.f32 %v652, %v652
  %v1334 = vmul.f32 %v654, %v654
  %v1335 = vmul.f32 %v657, %v657
  %v1336 = vmul.f32 %v659, %v659
  %v1337 = vmul.f32 %v662, %v662
  %v1338 = vmul.f32 %v664, %v664
  %v1339 = vmul.f32 %v667, %v667
  %v1340 = vmul.f32 %v669, %v669
  %v1341 = vmul.f32 %v672, %v672
  %v1342 = vmul.f32 %v674, %v674
  %v1343 = vmul.f32 %v677, %v677
  %v1344 = vmul.f32 %v679, %v679
  %v1345 = vmul.f32 %v682, %v682
  %v1346 = vmul.f32 %v684, %v684
  %v1347 = vmul.f32 %v687, %v687
  %v1348 = vmul.f32 %v689, %v689
  %v1349 = vmul.f32 %v692, %v692
  %v1350 = vmul.f32 %v694, %v694
  %v1351 = vmul.f32 %v697, %v697
  %v1352 = vmul.f32 %v699, %v699
  %v1353 = vmul.f32 %v702, %v702
  %v1354 = vmul.f32 %v704, %v704
  %v1355 = vmul.f32 %v707, %v707
  %v1356 = vmul.f32 %v709, %v709
  %v1357 = vmul.f32 %v712, %v712
  %v1358 = vmul.f32 %v714, %v714
  %v1359 = vmul.f32 %v717, %v717
  %v1360 = vmul.f32 %v719, %v719
  %v1361 = vmul.f32 %v722, %v722
  %v1362 = vmul.f32 %v724, %v724
  %v1363 = vmul.f32 %v727, %v727
  %v1364 = vmul.f32 %v729, %v729
  %v1365 = vmul.f32 %v732, %v732
  %v1366 = vmul.f32 %v734, %v734
  %v1367 = vmul.f32 %v737, %v737
  %v1368 = vmul.f32 %v739, %v739
  %v1369 = vmul.f32 %v742, %v742
  %v1370 = vmul.f32 %v744, %v744
  %v1371 = vmul.f32 %v747, %v747
  %v1372 = vmul.f32 %v749, %v749
  %v1373 = vmul.f32 %v752, %v752
  %v1374 = vmul.f32 %v754, %v754
  %v1375 = vmul.f32 %v757, %v757
  %v1376 = vmul.f32 %v759, %v759
  %v1377 = vmul.f32 %v762, %v762
  %v1378 = vmul.f32 %v764, %v764
  %v1379 = vmul.f32 %v767, %v767
  %v1380 = vmul.f32 %v769, %v769
  %v1381 = vmul.f32 %v772, %v772
  %v1382 = vmul.f32 %v774, %v774
  %v1383 = vmul.f32 %v777, %v777
  %v1384 = vmul.f32 %v779, %v779
  %v1385 = vmul.f32 %v782, %v782
  %v1386 = vmul.f32 %v784, %v784
  %v1387 = vmul.f32 %v787, %v787
  %v1388 = vmul.f32 %v789, %v789
  %v1389 = vmul.f32 %v792, %v792
  %v1390 = vmul.f32 %v794, %v794
  %v1391 = vmul.f32 %v797, %v797
  %v1392 = vmul.f32 %v799, %v799
  %v1393 = vmul.f32 %v802, %v802
  %v1394 = vmul.f32 %v804, %v804
  %v1395 = vmul.f32 %v807, %v807
  %v1396 = vmul.f32 %v809, %v809
  %v1397 = vmul.f32 %v812, %v812
  %v1398 = vmul.f32 %v814, %v814
  %v1399 = vmul.f32 %v817, %v817
  %v1400 = vmul.f32 %v819, %v819
  %v1401 = vmul.f32 %v822, %v822
  %v1402 = vmul.f32 %v824, %v824
  %v1403 = vmul.f32 %v827, %v827
  %v1404 = vmul.f32 %v829, %v829
  %v1405 = vmul.f32 %v832, %v832
  %v1406 = vmul.f32 %v834, %v834
  %v1407 = vmul.f32 %v837, %v837
  %v1408 = vmul.f32 %v839, %v839
  %v1409 = vmul.f32 %v842, %v842
  %v1410 = vmul.f32 %v844, %v844
  %v1411 = vmul.f32 %v847, %v847
  %v1412 = vmul.f32 %v849, %v849
  %v1413 = vmul.f32 %v852, %v852
  %v1414 = vmul.f32 %v854, %v854
  %v1415 = vmul.f32 %v857, %v857
  %v1416 = vmul.f32 %v859, %v859
  %v1417 = vmul.f32 %v862, %v862
  %v1418 = vmul.f32 %v864, %v864
  %v1419 = vmul.f32 %v867, %v867
  %v1420 = vmul.f32 %v869, %v869
  %v1421 = vmul.f32 %v872, %v872
  %v1422 = vmul.f32 %v874, %v874
  %v1423 = vmul.f32 %v877, %v877
  %v1424 = vmul.f32 %v879, %v879
  %v1425 = vmul.f32 %v882, %v882
  %v1426 = vmul.f32 %v884, %v884
  %v1427 = vmul.f32 %v887, %v887
  %v1428 = vmul.f32 %v889, %v889
  %v1429 = vmul.f32 %v892, %v892
  %v1430 = vmul.f32 %v894, %v894
  %v1431 = vmul.f32 %v897, %v897
  %v1432 = vmul.f32 %v899, %v899
  %v1433 = vmul.f32 %v902, %v902
  %v1434 = vmul.f32 %v904, %v904
  %v1435 = vmul.f32 %v907, %v907
  %v1436 = vmul.f32 %v909, %v909
  %v1437 = vmul.f32 %v912, %v912
  %v1438 = vmul.f32 %v914, %v914
  %v1439 = vmul.f32 %v917, %v917
  %v1440 = vmul.f32 %v919, %v919
  %v1441 = vmul.f32 %v922, %v922
  %v1442 = vmul.f32 %v924, %v924
  %v1443 = vadd.f32 %v1315, %v1316
  %v1444 = vadd.f32 %v1443, %v1317
  %v1445 = vadd.f32 %v1444, %v1318
  %v1446 = vadd.f32 %v1445, %v1319
  %v1447 = vadd.f32 %v1446, %v1320
  %v1448 = vadd.f32 %v1447, %v1321
  %v1449 = vadd.f32 %v1448, %v1322
  %v1450 = vadd.f32 %v1449, %v1323
  %v1451 = vadd.f32 %v1450, %v1324
  %v1452 = vadd.f32 %v1451, %v1325
  %v1453 = vadd.f32 %v1452, %v1326
  %v1454 = vadd.f32 %v1453, %v1327
  %v1455 = vadd.f32 %v1454, %v1328
  %v1456 = vadd.f32 %v1455, %v1329
  %v1457 = vadd.f32 %v1456, %v1330
  %v1458 = vadd.f32 %v1457, %v1331
  %v1459 = vadd.f32 %v1458, %v1332
  %v1460 = vadd.f32 %v1459, %v1333
  %v1461 = vadd.f32 %v1460, %v1334
  %v1462 = vadd.f32 %v1461, %v1335
  %v1463 = vadd.f32 %v1462, %v1336
  %v1464 = vadd.f32 %v1463, %v1337
  %v1465 = vadd.f32 %v1464, %v1338
  %v1466 = vadd.f32 %v1465, %v1339
  %v1467 = vadd.f32 %v1466, %v1340
  %v1468 = vadd.f32 %v1467, %v1341
  %v1469 = vadd.f32 %v1468, %v1342
  %v1470 = vadd.f32 %v1469, %v1343
  %v1471 = vadd.f32 %v1470, %v1344
  %v1472 = vadd.f32 %v1471, %v1345
  %v1473 = vadd.f32 %v1472, %v1346
  %v1474 = vadd.f32 %v1473, %v1347
  %v1475 = vadd.f32 %v1474, %v1348
  %v1476 = vadd.f32 %v1475, %v1349
  %v1477 = vadd.f32 %v1476, %v1350
  %v1478 = vadd.f32 %v1477, %v1351
  %v1479 = vadd.f32 %v1478, %v1352
  %v1480 = vadd.f32 %v1479, %v1353
  %v1481 = vadd.f32 %v1480, %v1354
  %v1482 = vadd.f32 %v1481, %v1355
  %v1483 = vadd.f32 %v1482, %v1356
  %v1484 = vadd.f32 %v1483, %v1357
  %v1485 = vadd.f32 %v1484, %v1358
  %v1486 = vadd.f32 %v1485, %v1359
  %v1487 = vadd.f32 %v1486, %v1360
  %v1488 = vadd.f32 %v1487, %v1361
  %v1489 = vadd.f32 %v1488, %v1362
  %v1490 = vadd.f32 %v1489, %v1363
  %v1491 = vadd.f32 %v1490, %v1364
  %v1492 = vadd.f32 %v1491, %v1365
  %v1493 = vadd.f32 %v1492, %v1366
  %v1494 = vadd.f32 %v1493, %v1367
  %v1495 = vadd.f32 %v1494, %v1368
  %v1496 = vadd.f32 %v1495, %v1369
  %v1497 = vadd.f32 %v1496, %v1370
  %v1498 = vadd.f32 %v1497, %v1371
  %v1499 = vadd.f32 %v1498, %v1372
  %v1500 = vadd.f32 %v1499, %v1373
  %v1501 = vadd.f32 %v1500, %v1374
  %v1502 = vadd.f32 %v1501, %v1375
  %v1503 = vadd.f32 %v1502, %v1376
  %v1504 = vadd.f32 %v1503, %v1377
  %v1505 = vadd.f32 %v1504, %v1378
  %v1506 = vadd.f32 %v1505, %v1379
  %v1507 = vadd.f32 %v1506, %v1380
  %v1508 = vadd.f32 %v1507, %v1381
  %v1509 = vadd.f32 %v1508, %v1382
  %v1510 = vadd.f32 %v1509, %v1383
  %v1511 = vadd.f32 %v1510, %v1384
  %v1512 = vadd.f32 %v1511, %v1385
  %v1513 = vadd.f32 %v1512, %v1386
  %v1514 = vadd.f32 %v1513, %v1387
  %v1515 = vadd.f32 %v1514, %v1388
  %v1516 = vadd.f32 %v1515, %v1389
  %v1517 = vadd.f32 %v1516, %v1390
  %v1518 = vadd.f32 %v1517, %v1391
  %v1519 = vadd.f32 %v1518, %v1392
  %v1520 = vadd.f32 %v1519, %v1393
  %v1521 = vadd.f32 %v1520, %v1394
  %v1522 = vadd.f32 %v1521, %v1395
  %v1523 = vadd.f32 %v1522, %v1396
  %v1524 = vadd.f32 %v1523, %v1397
  %v1525 = vadd.f32 %v1524, %v1398
  %v1526 = vadd.f32 %v1525, %v1399
  %v1527 = vadd.f32 %v1526, %v1400
  %v1528 = vadd.f32 %v1527, %v1401
  %v1529 = vadd.f32 %v1528, %v1402
  %v1530 = vadd.f32 %v1529, %v1403
  %v1531 = vadd.f32 %v1530, %v1404
  %v1532 = vadd.f32 %v1531, %v1405
  %v1533 = vadd.f32 %v1532, %v1406
  %v1534 = vadd.f32 %v1533, %v1407
  %v1535 = vadd.f32 %v1534, %v1408
  %v1536 = vadd.f32 %v1535, %v1409
  %v1537 = vadd.f32 %v1536, %v1410
  %v1538 = vadd.f32 %v1537, %v1411
  %v1539 = vadd.f32 %v1538, %v1412
  %v1540 = vadd.f32 %v1539, %v1413
  %v1541 = vadd.f32 %v1540, %v1414
  %v1542 = vadd.f32 %v1541, %v1415
  %v1543 = vadd.f32 %v1542, %v1416
  %v1544 = vadd.f32 %v1543, %v1417
  %v1545 = vadd.f32 %v1544, %v1418
  %v1546 = vadd.f32 %v1545, %v1419
  %v1547 = vadd.f32 %v1546, %v1420
  %v1548 = vadd.f32 %v1547, %v1421
  %v1549 = vadd.f32 %v1548, %v1422
  %v1550 = vadd.f32 %v1549, %v1423
  %v1551 = vadd.f32 %v1550, %v1424
  %v1552 = vadd.f32 %v1551, %v1425
  %v1553 = vadd.f32 %v1552, %v1426
  %v1554 = vadd.f32 %v1553, %v1427
  %v1555 = vadd.f32 %v1554, %v1428
  %v1556 = vadd.f32 %v1555, %v1429
  %v1557 = vadd.f32 %v1556, %v1430
  %v1558 = vadd.f32 %v1557, %v1431
  %v1559 = vadd.f32 %v1558, %v1432
  %v1560 = vadd.f32 %v1559, %v1433
  %v1561 = vadd.f32 %v1560, %v1434
  %v1562 = vadd.f32 %v1561, %v1435
  %v1563 = vadd.f32 %v1562, %v1436
  %v1564 = vadd.f32 %v1563, %v1437
  %v1565 = vadd.f32 %v1564, %v1438
  %v1566 = vadd.f32 %v1565, %v1439
  %v1567 = vadd.f32 %v1566, %v1440
  %v1568 = vadd.f32 %v1567, %v1441
  %v1569 = vadd.f32 %v1568, %v1442
  %v1570 = vrot.slane %v1569, 4
  %v1571 = vadd.f32 %v1569, %v1570
  %v1572 = vrot.slane %v1571, 2
  %v1573 = vadd.f32 %v1571, %v1572
  %v1574 = vrot.slane %v1573, 1
  %v1575 = vadd.f32 %v1573, %v1574
  %1576 = vst [vmem:[%s4] sm:$0x1] %v1314
  %1577 = vst [vmem:[%s5] sm:$0x1] %v1575
  // Predicated region
  $region14: #{_lambda_.6} parent=0 // pred_check
    _
  $region15: #{_lambda_.6} parent=0 // pred_check_branch
    %1579 = sbr.rel (0) target = $region17
  $region16: #{_lambda_.6} parent=0 // pred_region
    _
  $region17: #{_lambda_.6} parent=0 // pred_fallthru
    _
  // Predicated region
  $region18: #{_lambda_.6} parent=0 // pred_check
    _
  $region19: #{_lambda_.6} parent=0 // pred_check_branch
    %1581 = sbr.rel (0) target = $region21
  $region20: #{_lambda_.6} parent=0 // pred_region
    _
  $region21: #{_lambda_.6} parent=0 // pred_fallthru
    _
  // Predicated region
  $region22: #{_lambda_.6} parent=0 // pred_check
    _
  $region23: #{_lambda_.6} parent=0 // pred_check_branch
    %1583 = sbr.rel (0) target = $region25
  $region24: #{_lambda_.6} parent=0 // pred_region
    _
  $region25: #{_lambda_.6} parent=0 // pred_fallthru
    _
  // Predicated region
  $region26: #{_lambda_.6} parent=0 // pred_check
    _
  $region27: #{_lambda_.6} parent=0 // pred_check_branch
    %1585 = sbr.rel (0) target = $region29
  $region28: #{_lambda_.6} parent=0 // pred_region
    _
  $region29: #{_lambda_.6} parent=0 // pred_fallthru
    _
  // Predicated region
  $region30: #{_lambda_.6} parent=0 // pred_check
    _
  $region31: #{_lambda_.6} parent=0 // pred_check_branch
    %1587 = sbr.rel (0) target = $region33
  $region32: #{_lambda_.6} parent=0 // pred_region
    _
  $region33: #{_lambda_.6} parent=0 // pred_fallthru
    _
  // Predicated region
  $region34: #{_lambda_.6} parent=0 // pred_check
    _
  $region35: #{_lambda_.6} parent=0 // pred_check_branch
    %1589 = sbr.rel (0) target = $region37
  $region36: #{_lambda_.6} parent=0 // pred_region
    _
  $region37: #{_lambda_.6} parent=0 // pred_fallthru
    _

// kernel: _lambda_.8
$region0: #{_lambda_.8}
  #allocation0 [shape = 'u32[]', space=smem, size = 0x4, offset = 0x4, fixed_abs, tag = 'smem constant byte address 0x4 - core index']
  #allocation1 [shape = 'u32[72,128]{1,0:T(1,128)}', space=vmem, size = 0x9000, scoped, tag = 'internal scratch']
  %s0 = inlined_call_operand.vmem [shape: bf16[1024,128], index: 0, kind: input, shape index: {}]
  %s1 = inlined_call_operand.vmem [shape: f32[1,128], index: 1, kind: input, shape index: {}]
  %s2 = inlined_call_operand.vmem [shape: f32[1,128], index: 2, kind: input, shape index: {}]
  %s3 = inlined_call_operand.vmem [shape: bf16[1024,128], index: 3, kind: output, shape index: {}]
  %s4 = sld [smem:[#allocation0]]
  $region22: #{_lambda_.8} parent=0
    _
  %s6 = ssub.s32 1, %s4
  %s7 = scalar_select 0, %s6, %s4
  // Predicated region
  $region2: #{_lambda_.8} parent=0 // pred_check
    _
  $region3: #{_lambda_.8} parent=0 // pred_check_branch
    %9 = sbr.rel (0) target = $region5
  $region4: #{_lambda_.8} parent=0 // pred_region
    _
  $region5: #{_lambda_.8} parent=0 // pred_fallthru
    _
  // Predicated region
  $region6: #{_lambda_.8} parent=0 // pred_check
    _
  $region7: #{_lambda_.8} parent=0 // pred_check_branch
    %11 = sbr.rel (0) target = $region9
  $region8: #{_lambda_.8} parent=0 // pred_region
    _
  $region9: #{_lambda_.8} parent=0 // pred_fallthru
    _
  // Predicated region
  $region10: #{_lambda_.8} parent=0 // pred_check
    _
  $region11: #{_lambda_.8} parent=0 // pred_check_branch
    %13 = sbr.rel (0) target = $region13
  $region12: #{_lambda_.8} parent=0 // pred_region
    _
  $region13: #{_lambda_.8} parent=0 // pred_fallthru
    _
  %v14 = vld [vmem:[%s0] sm:$0xf]
  %v15 = vld [vmem:[%s0 + $0x4] sm:$0xf]
  %v16 = vld [vmem:[%s0 + $0x8] sm:$0xf]
  %v17 = vld [vmem:[%s0 + $0xc] sm:$0xf]
  %v18 = vld [vmem:[%s0 + $0x10] sm:$0xf]
  %v19 = vld [vmem:[%s0 + $0x14] sm:$0xf]
  %v20 = vld [vmem:[%s0 + $0x18] sm:$0xf]
  %v21 = vld [vmem:[%s0 + $0x1c] sm:$0xf]
  %v22 = vld [vmem:[%s0 + $0x20] sm:$0xf]
  %v23 = vld [vmem:[%s0 + $0x24] sm:$0xf]
  %v24 = vld [vmem:[%s0 + $0x28] sm:$0xf]
  %v25 = vld [vmem:[%s0 + $0x2c] sm:$0xf]
  %v26 = vld [vmem:[%s0 + $0x30] sm:$0xf]
  %v27 = vld [vmem:[%s0 + $0x34] sm:$0xf]
  %v28 = vld [vmem:[%s0 + $0x38] sm:$0xf]
  %v29 = vld [vmem:[%s0 + $0x3c] sm:$0xf]
  %v30 = vld [vmem:[%s0 + $0x40] sm:$0xf]
  %v31 = vld [vmem:[%s0 + $0x44] sm:$0xf]
  %v32 = vld [vmem:[%s0 + $0x48] sm:$0xf]
  %v33 = vld [vmem:[%s0 + $0x4c] sm:$0xf]
  %v34 = vld [vmem:[%s0 + $0x50] sm:$0xf]
  %v35 = vld [vmem:[%s0 + $0x54] sm:$0xf]
  %v36 = vld [vmem:[%s0 + $0x58] sm:$0xf]
  %v37 = vld [vmem:[%s0 + $0x5c] sm:$0xf]
  %v38 = vld [vmem:[%s0 + $0x60] sm:$0xf]
  %v39 = vld [vmem:[%s0 + $0x64] sm:$0xf]
  %v40 = vld [vmem:[%s0 + $0x68] sm:$0xf]
  %v41 = vld [vmem:[%s0 + $0x6c] sm:$0xf]
  %v42 = vld [vmem:[%s0 + $0x70] sm:$0xf]
  %v43 = vld [vmem:[%s0 + $0x74] sm:$0xf]
  %v44 = vld [vmem:[%s0 + $0x78] sm:$0xf]
  %v45 = vld [vmem:[%s0 + $0x7c] sm:$0xf]
  %v46 = vld [vmem:[%s0 + $0x80] sm:$0xf]
  %v47 = vld [vmem:[%s0 + $0x84] sm:$0xf]
  %v48 = vld [vmem:[%s0 + $0x88] sm:$0xf]
  %v49 = vld [vmem:[%s0 + $0x8c] sm:$0xf]
  %v50 = vld [vmem:[%s0 + $0x90] sm:$0xf]
  %v51 = vld [vmem:[%s0 + $0x94] sm:$0xf]
  %v52 = vld [vmem:[%s0 + $0x98] sm:$0xf]
  %v53 = vld [vmem:[%s0 + $0x9c] sm:$0xf]
  %v54 = vld [vmem:[%s0 + $0xa0] sm:$0xf]
  %v55 = vld [vmem:[%s0 + $0xa4] sm:$0xf]
  %v56 = vld [vmem:[%s0 + $0xa8] sm:$0xf]
  %v57 = vld [vmem:[%s0 + $0xac] sm:$0xf]
  %v58 = vld [vmem:[%s0 + $0xb0] sm:$0xf]
  %v59 = vld [vmem:[%s0 + $0xb4] sm:$0xf]
  %v60 = vld [vmem:[%s0 + $0xb8] sm:$0xf]
  %v61 = vld [vmem:[%s0 + $0xbc] sm:$0xf]
  %v62 = vld [vmem:[%s0 + $0xc0] sm:$0xf]
  %v63 = vld [vmem:[%s0 + $0xc4] sm:$0xf]
  %v64 = vld [vmem:[%s0 + $0xc8] sm:$0xf]
  %v65 = vld [vmem:[%s0 + $0xcc] sm:$0xf]
  %v66 = vld [vmem:[%s0 + $0xd0] sm:$0xf]
  %v67 = vld [vmem:[%s0 + $0xd4] sm:$0xf]
  %v68 = vld [vmem:[%s0 + $0xd8] sm:$0xf]
  %v69 = vld [vmem:[%s0 + $0xdc] sm:$0xf]
  %v70 = vld [vmem:[%s0 + $0xe0] sm:$0xf]
  %v71 = vld [vmem:[%s0 + $0xe4] sm:$0xf]
  %v72 = vld [vmem:[%s0 + $0xe8] sm:$0xf]
  %v73 = vld [vmem:[%s0 + $0xec] sm:$0xf]
  %v74 = vld [vmem:[%s0 + $0xf0] sm:$0xf]
  %v75 = vld [vmem:[%s0 + $0xf4] sm:$0xf]
  %v76 = vld [vmem:[%s0 + $0xf8] sm:$0xf]
  %v77 = vld [vmem:[%s0 + $0xfc] sm:$0xf]
  %v78 = vld [vmem:[%s0 + $0x100] sm:$0xf]
  %v79 = vld [vmem:[%s0 + $0x104] sm:$0xf]
  %v80 = vld [vmem:[%s0 + $0x108] sm:$0xf]
  %v81 = vld [vmem:[%s0 + $0x10c] sm:$0xf]
  %v82 = vld [vmem:[%s0 + $0x110] sm:$0xf]
  %v83 = vld [vmem:[%s0 + $0x114] sm:$0xf]
  %v84 = vld [vmem:[%s0 + $0x118] sm:$0xf]
  %v85 = vld [vmem:[%s0 + $0x11c] sm:$0xf]
  %v86 = vld [vmem:[%s0 + $0x120] sm:$0xf]
  %v87 = vld [vmem:[%s0 + $0x124] sm:$0xf]
  %v88 = vld [vmem:[%s0 + $0x128] sm:$0xf]
  %v89 = vld [vmem:[%s0 + $0x12c] sm:$0xf]
  %v90 = vld [vmem:[%s0 + $0x130] sm:$0xf]
  %v91 = vld [vmem:[%s0 + $0x134] sm:$0xf]
  %v92 = vld [vmem:[%s0 + $0x138] sm:$0xf]
  %v93 = vld [vmem:[%s0 + $0x13c] sm:$0xf]
  %v94 = vld [vmem:[%s0 + $0x140] sm:$0xf]
  %v95 = vld [vmem:[%s0 + $0x144] sm:$0xf]
  %v96 = vld [vmem:[%s0 + $0x148] sm:$0xf]
  %v97 = vld [vmem:[%s0 + $0x14c] sm:$0xf]
  %v98 = vld [vmem:[%s0 + $0x150] sm:$0xf]
  %v99 = vld [vmem:[%s0 + $0x154] sm:$0xf]
  %v100 = vld [vmem:[%s0 + $0x158] sm:$0xf]
  %v101 = vld [vmem:[%s0 + $0x15c] sm:$0xf]
  %v102 = vld [vmem:[%s0 + $0x160] sm:$0xf]
  %v103 = vld [vmem:[%s0 + $0x164] sm:$0xf]
  %v104 = vld [vmem:[%s0 + $0x168] sm:$0xf]
  %v105 = vld [vmem:[%s0 + $0x16c] sm:$0xf]
  %v106 = vld [vmem:[%s0 + $0x170] sm:$0xf]
  %v107 = vld [vmem:[%s0 + $0x174] sm:$0xf]
  %v108 = vld [vmem:[%s0 + $0x178] sm:$0xf]
  %v109 = vld [vmem:[%s0 + $0x17c] sm:$0xf]
  %v110 = vld [vmem:[%s0 + $0x180] sm:$0xf]
  %v111 = vld [vmem:[%s0 + $0x184] sm:$0xf]
  %v112 = vld [vmem:[%s0 + $0x188] sm:$0xf]
  %v113 = vld [vmem:[%s0 + $0x18c] sm:$0xf]
  %v114 = vld [vmem:[%s0 + $0x190] sm:$0xf]
  %v115 = vld [vmem:[%s0 + $0x194] sm:$0xf]
  %v116 = vld [vmem:[%s0 + $0x198] sm:$0xf]
  %v117 = vld [vmem:[%s0 + $0x19c] sm:$0xf]
  %v118 = vld [vmem:[%s0 + $0x1a0] sm:$0xf]
  %v119 = vld [vmem:[%s0 + $0x1a4] sm:$0xf]
  %v120 = vld [vmem:[%s0 + $0x1a8] sm:$0xf]
  %v121 = vld [vmem:[%s0 + $0x1ac] sm:$0xf]
  %v122 = vld [vmem:[%s0 + $0x1b0] sm:$0xf]
  %v123 = vld [vmem:[%s0 + $0x1b4] sm:$0xf]
  %v124 = vld [vmem:[%s0 + $0x1b8] sm:$0xf]
  %v125 = vld [vmem:[%s0 + $0x1bc] sm:$0xf]
  %v126 = vld [vmem:[%s0 + $0x1c0] sm:$0xf]
  %v127 = vld [vmem:[%s0 + $0x1c4] sm:$0xf]
  %v128 = vld [vmem:[%s0 + $0x1c8] sm:$0xf]
  %v129 = vld [vmem:[%s0 + $0x1cc] sm:$0xf]
  %v130 = vld [vmem:[%s0 + $0x1d0] sm:$0xf]
  %v131 = vld [vmem:[%s0 + $0x1d4] sm:$0xf]
  %v132 = vld [vmem:[%s0 + $0x1d8] sm:$0xf]
  %v133 = vld [vmem:[%s0 + $0x1dc] sm:$0xf]
  %v134 = vld [vmem:[%s0 + $0x1e0] sm:$0xf]
  %v135 = vld [vmem:[%s0 + $0x1e4] sm:$0xf]
  %v136 = vld [vmem:[%s0 + $0x1e8] sm:$0xf]
  %v137 = vld [vmem:[%s0 + $0x1ec] sm:$0xf]
  %v138 = vld [vmem:[%s0 + $0x1f0] sm:$0xf]
  %v139 = vld [vmem:[%s0 + $0x1f4] sm:$0xf]
  %v140 = vld [vmem:[%s0 + $0x1f8] sm:$0xf]
  %v141 = vld [vmem:[%s0 + $0x1fc] sm:$0xf]
  %v142 = vunpack.c.l.bf16 %v14
  %v143 = vunpack.c.l.bf16 %v15
  %v144 = vunpack.c.l.bf16 %v16
  %v145 = vunpack.c.l.bf16 %v17
  %v146 = vunpack.c.l.bf16 %v18
  %v147 = vunpack.c.l.bf16 %v19
  %v148 = vunpack.c.l.bf16 %v20
  %v149 = vunpack.c.l.bf16 %v21
  %v150 = vunpack.c.l.bf16 %v22
  %v151 = vunpack.c.l.bf16 %v23
  %v152 = vunpack.c.l.bf16 %v24
  %v153 = vunpack.c.l.bf16 %v25
  %v154 = vunpack.c.l.bf16 %v26
  %v155 = vunpack.c.l.bf16 %v27
  %v156 = vunpack.c.l.bf16 %v28
  %v157 = vunpack.c.l.bf16 %v29
  %v158 = vunpack.c.l.bf16 %v30
  %v159 = vunpack.c.l.bf16 %v31
  %v160 = vunpack.c.l.bf16 %v32
  %v161 = vunpack.c.l.bf16 %v33
  %v162 = vunpack.c.l.bf16 %v34
  %v163 = vunpack.c.l.bf16 %v35
  %v164 = vunpack.c.l.bf16 %v36
  %v165 = vunpack.c.l.bf16 %v37
  %v166 = vunpack.c.l.bf16 %v38
  %v167 = vunpack.c.l.bf16 %v39
  %v168 = vunpack.c.l.bf16 %v40
  %v169 = vunpack.c.l.bf16 %v41
  %v170 = vunpack.c.l.bf16 %v42
  %v171 = vunpack.c.l.bf16 %v43
  %v172 = vunpack.c.l.bf16 %v44
  %v173 = vunpack.c.l.bf16 %v45
  %v174 = vunpack.c.l.bf16 %v46
  %v175 = vunpack.c.l.bf16 %v47
  %v176 = vunpack.c.l.bf16 %v48
  %v177 = vunpack.c.l.bf16 %v49
  %v178 = vunpack.c.l.bf16 %v50
  %v179 = vunpack.c.l.bf16 %v51
  %v180 = vunpack.c.l.bf16 %v52
  %v181 = vunpack.c.l.bf16 %v53
  %v182 = vunpack.c.l.bf16 %v54
  %v183 = vunpack.c.l.bf16 %v55
  %v184 = vunpack.c.l.bf16 %v56
  %v185 = vunpack.c.l.bf16 %v57
  %v186 = vunpack.c.l.bf16 %v58
  %v187 = vunpack.c.l.bf16 %v59
  %v188 = vunpack.c.l.bf16 %v60
  %v189 = vunpack.c.l.bf16 %v61
  %v190 = vunpack.c.l.bf16 %v62
  %v191 = vunpack.c.l.bf16 %v63
  %v192 = vunpack.c.l.bf16 %v64
  %v193 = vunpack.c.l.bf16 %v65
  %v194 = vunpack.c.l.bf16 %v66
  %v195 = vunpack.c.l.bf16 %v67
  %v196 = vunpack.c.l.bf16 %v68
  %v197 = vunpack.c.l.bf16 %v69
  %v198 = vunpack.c.l.bf16 %v70
  %v199 = vunpack.c.l.bf16 %v71
  %v200 = vunpack.c.l.bf16 %v72
  %v201 = vunpack.c.l.bf16 %v73
  %v202 = vunpack.c.l.bf16 %v74
  %v203 = vunpack.c.l.bf16 %v75
  %v204 = vunpack.c.l.bf16 %v76
  %v205 = vunpack.c.l.bf16 %v77
  %v206 = vunpack.c.l.bf16 %v78
  %v207 = vunpack.c.l.bf16 %v79
  %v208 = vunpack.c.l.bf16 %v80
  %v209 = vunpack.c.l.bf16 %v81
  %v210 = vunpack.c.l.bf16 %v82
  %v211 = vunpack.c.l.bf16 %v83
  %v212 = vunpack.c.l.bf16 %v84
  %v213 = vunpack.c.l.bf16 %v85
  %v214 = vunpack.c.l.bf16 %v86
  %v215 = vunpack.c.l.bf16 %v87
  %v216 = vunpack.c.l.bf16 %v88
  %v217 = vunpack.c.l.bf16 %v89
  %v218 = vunpack.c.l.bf16 %v90
  %v219 = vunpack.c.l.bf16 %v91
  %v220 = vunpack.c.l.bf16 %v92
  %v221 = vunpack.c.l.bf16 %v93
  %v222 = vunpack.c.l.bf16 %v94
  %v223 = vunpack.c.l.bf16 %v95
  %v224 = vunpack.c.l.bf16 %v96
  %v225 = vunpack.c.l.bf16 %v97
  %v226 = vunpack.c.l.bf16 %v98
  %v227 = vunpack.c.l.bf16 %v99
  %v228 = vunpack.c.l.bf16 %v100
  %v229 = vunpack.c.l.bf16 %v101
  %v230 = vunpack.c.l.bf16 %v102
  %v231 = vunpack.c.l.bf16 %v103
  %v232 = vunpack.c.l.bf16 %v104
  %v233 = vunpack.c.l.bf16 %v105
  %v234 = vunpack.c.l.bf16 %v106
  %v235 = vunpack.c.l.bf16 %v107
  %v236 = vunpack.c.l.bf16 %v108
  %v237 = vunpack.c.l.bf16 %v109
  %v238 = vunpack.c.l.bf16 %v110
  %v239 = vunpack.c.l.bf16 %v111
  %v240 = vunpack.c.l.bf16 %v112
  %v241 = vunpack.c.l.bf16 %v113
  %v242 = vunpack.c.l.bf16 %v114
  %v243 = vunpack.c.l.bf16 %v115
  %v244 = vunpack.c.l.bf16 %v116
  %v245 = vunpack.c.l.bf16 %v117
  %v246 = vunpack.c.l.bf16 %v118
  %v247 = vunpack.c.l.bf16 %v119
  %v248 = vunpack.c.l.bf16 %v120
  %v249 = vunpack.c.l.bf16 %v121
  %v250 = vunpack.c.l.bf16 %v122
  %v251 = vunpack.c.l.bf16 %v123
  %v252 = vunpack.c.l.bf16 %v124
  %v253 = vunpack.c.l.bf16 %v125
  %v254 = vunpack.c.l.bf16 %v126
  %v255 = vunpack.c.l.bf16 %v127
  %v256 = vunpack.c.l.bf16 %v128
  %v257 = vunpack.c.l.bf16 %v129
  %v258 = vunpack.c.l.bf16 %v130
  %v259 = vunpack.c.l.bf16 %v131
  %v260 = vunpack.c.l.bf16 %v132
  %v261 = vunpack.c.l.bf16 %v133
  %v262 = vunpack.c.l.bf16 %v134
  %v263 = vunpack.c.l.bf16 %v135
  %v264 = vunpack.c.l.bf16 %v136
  %v265 = vunpack.c.l.bf16 %v137
  %v266 = vunpack.c.l.bf16 %v138
  %v267 = vunpack.c.l.bf16 %v139
  %v268 = vunpack.c.l.bf16 %v140
  %v269 = vunpack.c.l.bf16 %v141
  %v270 = vld [vmem:[%s1] sm:$0x1]
  %v272 = vperm.slane %v270, 0
  %v274 = vmul.f32 %v142, %v272
  %v275 = vmul.f32 %v143, %v272
  %v276 = vmul.f32 %v144, %v272
  %v277 = vmul.f32 %v145, %v272
  %v278 = vmul.f32 %v146, %v272
  %v279 = vmul.f32 %v147, %v272
  %v280 = vmul.f32 %v148, %v272
  %v281 = vmul.f32 %v149, %v272
  %v282 = vmul.f32 %v150, %v272
  %v283 = vmul.f32 %v151, %v272
  %v284 = vmul.f32 %v152, %v272
  %v285 = vmul.f32 %v153, %v272
  %v286 = vmul.f32 %v154, %v272
  %v287 = vmul.f32 %v155, %v272
  %v288 = vmul.f32 %v156, %v272
  %v289 = vmul.f32 %v157, %v272
  %v290 = vmul.f32 %v158, %v272
  %v291 = vmul.f32 %v159, %v272
  %v292 = vmul.f32 %v160, %v272
  %v293 = vmul.f32 %v161, %v272
  %v294 = vmul.f32 %v162, %v272
  %v295 = vmul.f32 %v163, %v272
  %v296 = vmul.f32 %v164, %v272
  %v297 = vmul.f32 %v165, %v272
  %v298 = vmul.f32 %v166, %v272
  %v299 = vmul.f32 %v167, %v272
  %v300 = vmul.f32 %v168, %v272
  %v301 = vmul.f32 %v169, %v272
  %v302 = vmul.f32 %v170, %v272
  %v303 = vmul.f32 %v171, %v272
  %v304 = vmul.f32 %v172, %v272
  %v305 = vmul.f32 %v173, %v272
  %v306 = vmul.f32 %v174, %v272
  %v307 = vmul.f32 %v175, %v272
  %v308 = vmul.f32 %v176, %v272
  %v309 = vmul.f32 %v177, %v272
  %v310 = vmul.f32 %v178, %v272
  %v311 = vmul.f32 %v179, %v272
  %v312 = vmul.f32 %v180, %v272
  %v313 = vmul.f32 %v181, %v272
  %v314 = vmul.f32 %v182, %v272
  %v315 = vmul.f32 %v183, %v272
  %v316 = vmul.f32 %v184, %v272
  %v317 = vmul.f32 %v185, %v272
  %v318 = vmul.f32 %v186, %v272
  %v319 = vmul.f32 %v187, %v272
  %v320 = vmul.f32 %v188, %v272
  %v321 = vmul.f32 %v189, %v272
  %v322 = vmul.f32 %v190, %v272
  %v323 = vmul.f32 %v191, %v272
  %v324 = vmul.f32 %v192, %v272
  %v325 = vmul.f32 %v193, %v272
  %v326 = vmul.f32 %v194, %v272
  %v327 = vmul.f32 %v195, %v272
  %v328 = vmul.f32 %v196, %v272
  %v329 = vmul.f32 %v197, %v272
  %v330 = vmul.f32 %v198, %v272
  %v331 = vmul.f32 %v199, %v272
  %v332 = vmul.f32 %v200, %v272
  %v333 = vmul.f32 %v201, %v272
  %v334 = vmul.f32 %v202, %v272
  %v335 = vmul.f32 %v203, %v272
  %v336 = vmul.f32 %v204, %v272
  %v337 = vmul.f32 %v205, %v272
  %v338 = vmul.f32 %v206, %v272
  %v339 = vmul.f32 %v207, %v272
  %v340 = vmul.f32 %v208, %v272
  %v341 = vmul.f32 %v209, %v272
  %v342 = vmul.f32 %v210, %v272
  %v343 = vmul.f32 %v211, %v272
  %v344 = vmul.f32 %v212, %v272
  %v345 = vmul.f32 %v213, %v272
  %v346 = vmul.f32 %v214, %v272
  %v347 = vmul.f32 %v215, %v272
  %v348 = vmul.f32 %v216, %v272
  %v349 = vmul.f32 %v217, %v272
  %v350 = vmul.f32 %v218, %v272
  %v351 = vmul.f32 %v219, %v272
  %v352 = vmul.f32 %v220, %v272
  %v353 = vmul.f32 %v221, %v272
  %v354 = vmul.f32 %v222, %v272
  %v355 = vmul.f32 %v223, %v272
  %v356 = vmul.f32 %v224, %v272
  %v357 = vmul.f32 %v225, %v272
  %v358 = vmul.f32 %v226, %v272
  %v359 = vmul.f32 %v227, %v272
  %v360 = vmul.f32 %v228, %v272
  %v361 = vmul.f32 %v229, %v272
  %v362 = vmul.f32 %v230, %v272
  %v363 = vmul.f32 %v231, %v272
  %v364 = vmul.f32 %v232, %v272
  %v365 = vmul.f32 %v233, %v272
  %v366 = vmul.f32 %v234, %v272
  %v367 = vmul.f32 %v235, %v272
  %v368 = vmul.f32 %v236, %v272
  %v369 = vmul.f32 %v237, %v272
  %v370 = vmul.f32 %v238, %v272
  %v371 = vmul.f32 %v239, %v272
  %v372 = vmul.f32 %v240, %v272
  %v373 = vmul.f32 %v241, %v272
  %v374 = vmul.f32 %v242, %v272
  %v375 = vmul.f32 %v243, %v272
  %v376 = vmul.f32 %v244, %v272
  %v377 = vmul.f32 %v245, %v272
  %v378 = vmul.f32 %v246, %v272
  %v379 = vmul.f32 %v247, %v272
  %v380 = vmul.f32 %v248, %v272
  %v381 = vmul.f32 %v249, %v272
  %v382 = vmul.f32 %v250, %v272
  %v383 = vmul.f32 %v251, %v272
  %v384 = vmul.f32 %v252, %v272
  %v385 = vmul.f32 %v253, %v272
  %v386 = vmul.f32 %v254, %v272
  %v387 = vmul.f32 %v255, %v272
  %v388 = vmul.f32 %v256, %v272
  %v389 = vmul.f32 %v257, %v272
  %v390 = vmul.f32 %v258, %v272
  %v391 = vmul.f32 %v259, %v272
  %v392 = vmul.f32 %v260, %v272
  %v393 = vmul.f32 %v261, %v272
  %v394 = vmul.f32 %v262, %v272
  %v395 = vmul.f32 %v263, %v272
  %v396 = vmul.f32 %v264, %v272
  %v397 = vmul.f32 %v265, %v272
  %v398 = vmul.f32 %v266, %v272
  %v399 = vmul.f32 %v267, %v272
  %v400 = vmul.f32 %v268, %v272
  %v401 = vmul.f32 %v269, %v272
  %v402 = vld [vmem:[%s2] sm:$0x1]
  %v404 = vperm.slane %v402, 0
  %v406 = vadd.f32 %v274, %v404
  %v407 = vadd.f32 %v275, %v404
  %v408 = vadd.f32 %v276, %v404
  %v409 = vadd.f32 %v277, %v404
  %v410 = vadd.f32 %v278, %v404
  %v411 = vadd.f32 %v279, %v404
  %v412 = vadd.f32 %v280, %v404
  %v413 = vadd.f32 %v281, %v404
  %v414 = vadd.f32 %v282, %v404
  %v415 = vadd.f32 %v283, %v404
  %v416 = vadd.f32 %v284, %v404
  %v417 = vadd.f32 %v285, %v404
  %v418 = vadd.f32 %v286, %v404
  %v419 = vadd.f32 %v287, %v404
  %v420 = vadd.f32 %v288, %v404
  %v421 = vadd.f32 %v289, %v404
  %v422 = vadd.f32 %v290, %v404
  %v423 = vadd.f32 %v291, %v404
  %v424 = vadd.f32 %v292, %v404
  %v425 = vadd.f32 %v293, %v404
  %v426 = vadd.f32 %v294, %v404
  %v427 = vadd.f32 %v295, %v404
  %v428 = vadd.f32 %v296, %v404
  %v429 = vadd.f32 %v297, %v404
  %v430 = vadd.f32 %v298, %v404
  %v431 = vadd.f32 %v299, %v404
  %v432 = vadd.f32 %v300, %v404
  %v433 = vadd.f32 %v301, %v404
  %v434 = vadd.f32 %v302, %v404
  %v435 = vadd.f32 %v303, %v404
  %v436 = vadd.f32 %v304, %v404
  %v437 = vadd.f32 %v305, %v404
  %v438 = vadd.f32 %v306, %v404
  %v439 = vadd.f32 %v307, %v404
  %v440 = vadd.f32 %v308, %v404
  %v441 = vadd.f32 %v309, %v404
  %v442 = vadd.f32 %v310, %v404
  %v443 = vadd.f32 %v311, %v404
  %v444 = vadd.f32 %v312, %v404
  %v445 = vadd.f32 %v313, %v404
  %v446 = vadd.f32 %v314, %v404
  %v447 = vadd.f32 %v315, %v404
  %v448 = vadd.f32 %v316, %v404
  %v449 = vadd.f32 %v317, %v404
  %v450 = vadd.f32 %v318, %v404
  %v451 = vadd.f32 %v319, %v404
  %v452 = vadd.f32 %v320, %v404
  %v453 = vadd.f32 %v321, %v404
  %v454 = vadd.f32 %v322, %v404
  %v455 = vadd.f32 %v323, %v404
  %v456 = vadd.f32 %v324, %v404
  %v457 = vadd.f32 %v325, %v404
  %v458 = vadd.f32 %v326, %v404
  %v459 = vadd.f32 %v327, %v404
  %v460 = vadd.f32 %v328, %v404
  %v461 = vadd.f32 %v329, %v404
  %v462 = vadd.f32 %v330, %v404
  %v463 = vadd.f32 %v331, %v404
  %v464 = vadd.f32 %v332, %v404
  %v465 = vadd.f32 %v333, %v404
  %v466 = vadd.f32 %v334, %v404
  %v467 = vadd.f32 %v335, %v404
  %v468 = vadd.f32 %v336, %v404
  %v469 = vadd.f32 %v337, %v404
  %v470 = vadd.f32 %v338, %v404
  %v471 = vadd.f32 %v339, %v404
  %v472 = vadd.f32 %v340, %v404
  %v473 = vadd.f32 %v341, %v404
  %v474 = vadd.f32 %v342, %v404
  %v475 = vadd.f32 %v343, %v404
  %v476 = vadd.f32 %v344, %v404
  %v477 = vadd.f32 %v345, %v404
  %v478 = vadd.f32 %v346, %v404
  %v479 = vadd.f32 %v347, %v404
  %v480 = vadd.f32 %v348, %v404
  %v481 = vadd.f32 %v349, %v404
  %v482 = vadd.f32 %v350, %v404
  %v483 = vadd.f32 %v351, %v404
  %v484 = vadd.f32 %v352, %v404
  %v485 = vadd.f32 %v353, %v404
  %v486 = vadd.f32 %v354, %v404
  %v487 = vadd.f32 %v355, %v404
  %v488 = vadd.f32 %v356, %v404
  %v489 = vadd.f32 %v357, %v404
  %v490 = vadd.f32 %v358, %v404
  %v491 = vadd.f32 %v359, %v404
  %v492 = vadd.f32 %v360, %v404
  %v493 = vadd.f32 %v361, %v404
  %v494 = vadd.f32 %v362, %v404
  %v495 = vadd.f32 %v363, %v404
  %v496 = vadd.f32 %v364, %v404
  %v497 = vadd.f32 %v365, %v404
  %v498 = vadd.f32 %v366, %v404
  %v499 = vadd.f32 %v367, %v404
  %v500 = vadd.f32 %v368, %v404
  %v501 = vadd.f32 %v369, %v404
  %v502 = vadd.f32 %v370, %v404
  %v503 = vadd.f32 %v371, %v404
  %v504 = vadd.f32 %v372, %v404
  %v505 = vadd.f32 %v373, %v404
  %v506 = vadd.f32 %v374, %v404
  %v507 = vadd.f32 %v375, %v404
  %v508 = vadd.f32 %v376, %v404
  %v509 = vadd.f32 %v377, %v404
  %v510 = vadd.f32 %v378, %v404
  %v511 = vadd.f32 %v379, %v404
  %v512 = vadd.f32 %v380, %v404
  %v513 = vadd.f32 %v381, %v404
  %v514 = vadd.f32 %v382, %v404
  %v515 = vadd.f32 %v383, %v404
  %v516 = vadd.f32 %v384, %v404
  %v517 = vadd.f32 %v385, %v404
  %v518 = vadd.f32 %v386, %v404
  %v519 = vadd.f32 %v387, %v404
  %v520 = vadd.f32 %v388, %v404
  %v521 = vadd.f32 %v389, %v404
  %v522 = vadd.f32 %v390, %v404
  %v523 = vadd.f32 %v391, %v404
  %v524 = vadd.f32 %v392, %v404
  %v525 = vadd.f32 %v393, %v404
  %v526 = vadd.f32 %v394, %v404
  %v527 = vadd.f32 %v395, %v404
  %v528 = vadd.f32 %v396, %v404
  %v529 = vadd.f32 %v397, %v404
  %v530 = vadd.f32 %v398, %v404
  %v531 = vadd.f32 %v399, %v404
  %v532 = vadd.f32 %v400, %v404
  %v533 = vadd.f32 %v401, %v404
  %v534 = vmax.f32 %v406, 0.0
  %v535 = vmax.f32 %v407, 0.0
  %v536 = vmax.f32 %v408, 0.0
  %v537 = vmax.f32 %v409, 0.0
  %v538 = vmax.f32 %v410, 0.0
  %v539 = vmax.f32 %v411, 0.0
  %v540 = vmax.f32 %v412, 0.0
  %v541 = vmax.f32 %v413, 0.0
  %v542 = vmax.f32 %v414, 0.0
  %v543 = vmax.f32 %v415, 0.0
  %v544 = vmax.f32 %v416, 0.0
  %v545 = vmax.f32 %v417, 0.0
  %v546 = vmax.f32 %v418, 0.0
  %v547 = vmax.f32 %v419, 0.0
  %v548 = vmax.f32 %v420, 0.0
  %v549 = vmax.f32 %v421, 0.0
  %v550 = vmax.f32 %v422, 0.0
  %v551 = vmax.f32 %v423, 0.0
  %v552 = vmax.f32 %v424, 0.0
  %v553 = vmax.f32 %v425, 0.0
  %v554 = vmax.f32 %v426, 0.0
  %v555 = vmax.f32 %v427, 0.0
  %v556 = vmax.f32 %v428, 0.0
  %v557 = vmax.f32 %v429, 0.0
  %v558 = vmax.f32 %v430, 0.0
  %v559 = vmax.f32 %v431, 0.0
  %v560 = vmax.f32 %v432, 0.0
  %v561 = vmax.f32 %v433, 0.0
  %v562 = vmax.f32 %v434, 0.0
  %v563 = vmax.f32 %v435, 0.0
  %v564 = vmax.f32 %v436, 0.0
  %v565 = vmax.f32 %v437, 0.0
  %v566 = vmax.f32 %v438, 0.0
  %v567 = vmax.f32 %v439, 0.0
  %v568 = vmax.f32 %v440, 0.0
  %v569 = vmax.f32 %v441, 0.0
  %v570 = vmax.f32 %v442, 0.0
  %v571 = vmax.f32 %v443, 0.0
  %v572 = vmax.f32 %v444, 0.0
  %v573 = vmax.f32 %v445, 0.0
  %v574 = vmax.f32 %v446, 0.0
  %v575 = vmax.f32 %v447, 0.0
  %v576 = vmax.f32 %v448, 0.0
  %v577 = vmax.f32 %v449, 0.0
  %v578 = vmax.f32 %v450, 0.0
  %v579 = vmax.f32 %v451, 0.0
  %v580 = vmax.f32 %v452, 0.0
  %v581 = vmax.f32 %v453, 0.0
  %v582 = vmax.f32 %v454, 0.0
  %v583 = vmax.f32 %v455, 0.0
  %v584 = vmax.f32 %v456, 0.0
  %v585 = vmax.f32 %v457, 0.0
  %v586 = vmax.f32 %v458, 0.0
  %v587 = vmax.f32 %v459, 0.0
  %v588 = vmax.f32 %v460, 0.0
  %v589 = vmax.f32 %v461, 0.0
  %v590 = vmax.f32 %v462, 0.0
  %v591 = vmax.f32 %v463, 0.0
  %v592 = vmax.f32 %v464, 0.0
  %v593 = vmax.f32 %v465, 0.0
  %v594 = vmax.f32 %v466, 0.0
  %v595 = vmax.f32 %v467, 0.0
  %v596 = vmax.f32 %v468, 0.0
  %v597 = vmax.f32 %v469, 0.0
  %v598 = vmax.f32 %v470, 0.0
  %v599 = vmax.f32 %v471, 0.0
  %v600 = vmax.f32 %v472, 0.0
  %v601 = vmax.f32 %v473, 0.0
  %v602 = vmax.f32 %v474, 0.0
  %v603 = vmax.f32 %v475, 0.0
  %v604 = vmax.f32 %v476, 0.0
  %v605 = vmax.f32 %v477, 0.0
  %v606 = vmax.f32 %v478, 0.0
  %v607 = vmax.f32 %v479, 0.0
  %v608 = vmax.f32 %v480, 0.0
  %v609 = vmax.f32 %v481, 0.0
  %v610 = vmax.f32 %v482, 0.0
  %v611 = vmax.f32 %v483, 0.0
  %v612 = vmax.f32 %v484, 0.0
  %v613 = vmax.f32 %v485, 0.0
  %v614 = vmax.f32 %v486, 0.0
  %v615 = vmax.f32 %v487, 0.0
  %v616 = vmax.f32 %v488, 0.0
  %v617 = vmax.f32 %v489, 0.0
  %v618 = vmax.f32 %v490, 0.0
  %v619 = vmax.f32 %v491, 0.0
  %v620 = vmax.f32 %v492, 0.0
  %v621 = vmax.f32 %v493, 0.0
  %v622 = vmax.f32 %v494, 0.0
  %v623 = vmax.f32 %v495, 0.0
  %v624 = vmax.f32 %v496, 0.0
  %v625 = vmax.f32 %v497, 0.0
  %v626 = vmax.f32 %v498, 0.0
  %v627 = vmax.f32 %v499, 0.0
  %v628 = vmax.f32 %v500, 0.0
  %v629 = vmax.f32 %v501, 0.0
  %v630 = vmax.f32 %v502, 0.0
  %v631 = vmax.f32 %v503, 0.0
  %v632 = vmax.f32 %v504, 0.0
  %v633 = vmax.f32 %v505, 0.0
  %v634 = vmax.f32 %v506, 0.0
  %v635 = vmax.f32 %v507, 0.0
  %v636 = vmax.f32 %v508, 0.0
  %v637 = vmax.f32 %v509, 0.0
  %v638 = vmax.f32 %v510, 0.0
  %v639 = vmax.f32 %v511, 0.0
  %v640 = vmax.f32 %v512, 0.0
  %v641 = vmax.f32 %v513, 0.0
  %v642 = vmax.f32 %v514, 0.0
  %v643 = vmax.f32 %v515, 0.0
  %v644 = vmax.f32 %v516, 0.0
  %v645 = vmax.f32 %v517, 0.0
  %v646 = vmax.f32 %v518, 0.0
  %v647 = vmax.f32 %v519, 0.0
  %v648 = vmax.f32 %v520, 0.0
  %v649 = vmax.f32 %v521, 0.0
  %v650 = vmax.f32 %v522, 0.0
  %v651 = vmax.f32 %v523, 0.0
  %v652 = vmax.f32 %v524, 0.0
  %v653 = vmax.f32 %v525, 0.0
  %v654 = vmax.f32 %v526, 0.0
  %v655 = vmax.f32 %v527, 0.0
  %v656 = vmax.f32 %v528, 0.0
  %v657 = vmax.f32 %v529, 0.0
  %v658 = vmax.f32 %v530, 0.0
  %v659 = vmax.f32 %v531, 0.0
  %v660 = vmax.f32 %v532, 0.0
  %v661 = vmax.f32 %v533, 0.0
  %v662 = vpack.c.bf16 %v534, %v534
  %v663 = vpack.c.bf16 %v535, %v535
  %v664 = vpack.c.bf16 %v536, %v536
  %v665 = vpack.c.bf16 %v537, %v537
  %v666 = vpack.c.bf16 %v538, %v538
  %v667 = vpack.c.bf16 %v539, %v539
  %v668 = vpack.c.bf16 %v540, %v540
  %v669 = vpack.c.bf16 %v541, %v541
  %v670 = vpack.c.bf16 %v542, %v542
  %v671 = vpack.c.bf16 %v543, %v543
  %v672 = vpack.c.bf16 %v544, %v544
  %v673 = vpack.c.bf16 %v545, %v545
  %v674 = vpack.c.bf16 %v546, %v546
  %v675 = vpack.c.bf16 %v547, %v547
  %v676 = vpack.c.bf16 %v548, %v548
  %v677 = vpack.c.bf16 %v549, %v549
  %v678 = vpack.c.bf16 %v550, %v550
  %v679 = vpack.c.bf16 %v551, %v551
  %v680 = vpack.c.bf16 %v552, %v552
  %v681 = vpack.c.bf16 %v553, %v553
  %v682 = vpack.c.bf16 %v554, %v554
  %v683 = vpack.c.bf16 %v555, %v555
  %v684 = vpack.c.bf16 %v556, %v556
  %v685 = vpack.c.bf16 %v557, %v557
  %v686 = vpack.c.bf16 %v558, %v558
  %v687 = vpack.c.bf16 %v559, %v559
  %v688 = vpack.c.bf16 %v560, %v560
  %v689 = vpack.c.bf16 %v561, %v561
  %v690 = vpack.c.bf16 %v562, %v562
  %v691 = vpack.c.bf16 %v563, %v563
  %v692 = vpack.c.bf16 %v564, %v564
  %v693 = vpack.c.bf16 %v565, %v565
  %v694 = vpack.c.bf16 %v566, %v566
  %v695 = vpack.c.bf16 %v567, %v567
  %v696 = vpack.c.bf16 %v568, %v568
  %v697 = vpack.c.bf16 %v569, %v569
  %v698 = vpack.c.bf16 %v570, %v570
  %v699 = vpack.c.bf16 %v571, %v571
  %v700 = vpack.c.bf16 %v572, %v572
  %v701 = vpack.c.bf16 %v573, %v573
  %v702 = vpack.c.bf16 %v574, %v574
  %v703 = vpack.c.bf16 %v575, %v575
  %v704 = vpack.c.bf16 %v576, %v576
  %v705 = vpack.c.bf16 %v577, %v577
  %v706 = vpack.c.bf16 %v578, %v578
  %v707 = vpack.c.bf16 %v579, %v579
  %v708 = vpack.c.bf16 %v580, %v580
  %v709 = vpack.c.bf16 %v581, %v581
  %v710 = vpack.c.bf16 %v582, %v582
  %v711 = vpack.c.bf16 %v583, %v583
  %v712 = vpack.c.bf16 %v584, %v584
  %v713 = vpack.c.bf16 %v585, %v585
  %v714 = vpack.c.bf16 %v586, %v586
  %v715 = vpack.c.bf16 %v587, %v587
  %v716 = vpack.c.bf16 %v588, %v588
  %v717 = vpack.c.bf16 %v589, %v589
  %v718 = vpack.c.bf16 %v590, %v590
  %v719 = vpack.c.bf16 %v591, %v591
  %v720 = vpack.c.bf16 %v592, %v592
  %v721 = vpack.c.bf16 %v593, %v593
  %v722 = vpack.c.bf16 %v594, %v594
  %v723 = vpack.c.bf16 %v595, %v595
  %v724 = vpack.c.bf16 %v596, %v596
  %v725 = vpack.c.bf16 %v597, %v597
  %v726 = vpack.c.bf16 %v598, %v598
  %v727 = vpack.c.bf16 %v599, %v599
  %v728 = vpack.c.bf16 %v600, %v600
  %v729 = vpack.c.bf16 %v601, %v601
  %v730 = vpack.c.bf16 %v602, %v602
  %v731 = vpack.c.bf16 %v603, %v603
  %v732 = vpack.c.bf16 %v604, %v604
  %v733 = vpack.c.bf16 %v605, %v605
  %v734 = vpack.c.bf16 %v606, %v606
  %v735 = vpack.c.bf16 %v607, %v607
  %v736 = vpack.c.bf16 %v608, %v608
  %v737 = vpack.c.bf16 %v609, %v609
  %v738 = vpack.c.bf16 %v610, %v610
  %v739 = vpack.c.bf16 %v611, %v611
  %v740 = vpack.c.bf16 %v612, %v612
  %v741 = vpack.c.bf16 %v613, %v613
  %v742 = vpack.c.bf16 %v614, %v614
  %v743 = vpack.c.bf16 %v615, %v615
  %v744 = vpack.c.bf16 %v616, %v616
  %v745 = vpack.c.bf16 %v617, %v617
  %v746 = vpack.c.bf16 %v618, %v618
  %v747 = vpack.c.bf16 %v619, %v619
  %v748 = vpack.c.bf16 %v620, %v620
  %v749 = vpack.c.bf16 %v621, %v621
  %v750 = vpack.c.bf16 %v622, %v622
  %v751 = vpack.c.bf16 %v623, %v623
  %v752 = vpack.c.bf16 %v624, %v624
  %v753 = vpack.c.bf16 %v625, %v625
  %v754 = vpack.c.bf16 %v626, %v626
  %v755 = vpack.c.bf16 %v627, %v627
  %v756 = vpack.c.bf16 %v628, %v628
  %v757 = vpack.c.bf16 %v629, %v629
  %v758 = vpack.c.bf16 %v630, %v630
  %v759 = vpack.c.bf16 %v631, %v631
  %v760 = vpack.c.bf16 %v632, %v632
  %v761 = vpack.c.bf16 %v633, %v633
  %v762 = vpack.c.bf16 %v634, %v634
  %v763 = vpack.c.bf16 %v635, %v635
  %v764 = vpack.c.bf16 %v636, %v636
  %v765 = vpack.c.bf16 %v637, %v637
  %v766 = vpack.c.bf16 %v638, %v638
  %v767 = vpack.c.bf16 %v639, %v639
  %v768 = vpack.c.bf16 %v640, %v640
  %v769 = vpack.c.bf16 %v641, %v641
  %v770 = vpack.c.bf16 %v642, %v642
  %v771 = vpack.c.bf16 %v643, %v643
  %v772 = vpack.c.bf16 %v644, %v644
  %v773 = vpack.c.bf16 %v645, %v645
  %v774 = vpack.c.bf16 %v646, %v646
  %v775 = vpack.c.bf16 %v647, %v647
  %v776 = vpack.c.bf16 %v648, %v648
  %v777 = vpack.c.bf16 %v649, %v649
  %v778 = vpack.c.bf16 %v650, %v650
  %v779 = vpack.c.bf16 %v651, %v651
  %v780 = vpack.c.bf16 %v652, %v652
  %v781 = vpack.c.bf16 %v653, %v653
  %v782 = vpack.c.bf16 %v654, %v654
  %v783 = vpack.c.bf16 %v655, %v655
  %v784 = vpack.c.bf16 %v656, %v656
  %v785 = vpack.c.bf16 %v657, %v657
  %v786 = vpack.c.bf16 %v658, %v658
  %v787 = vpack.c.bf16 %v659, %v659
  %v788 = vpack.c.bf16 %v660, %v660
  %v789 = vpack.c.bf16 %v661, %v661
  %790 = vst [vmem:[%s3] sm:$0xf] %v662
  %791 = vst [vmem:[%s3 + $0x4] sm:$0xf] %v663
  %792 = vst [vmem:[%s3 + $0x8] sm:$0xf] %v664
  %793 = vst [vmem:[%s3 + $0xc] sm:$0xf] %v665
  %794 = vst [vmem:[%s3 + $0x10] sm:$0xf] %v666
  %795 = vst [vmem:[%s3 + $0x14] sm:$0xf] %v667
  %796 = vst [vmem:[%s3 + $0x18] sm:$0xf] %v668
  %797 = vst [vmem:[%s3 + $0x1c] sm:$0xf] %v669
  %798 = vst [vmem:[%s3 + $0x20] sm:$0xf] %v670
  %799 = vst [vmem:[%s3 + $0x24] sm:$0xf] %v671
  %800 = vst [vmem:[%s3 + $0x28] sm:$0xf] %v672
  %801 = vst [vmem:[%s3 + $0x2c] sm:$0xf] %v673
  %802 = vst [vmem:[%s3 + $0x30] sm:$0xf] %v674
  %803 = vst [vmem:[%s3 + $0x34] sm:$0xf] %v675
  %804 = vst [vmem:[%s3 + $0x38] sm:$0xf] %v676
  %805 = vst [vmem:[%s3 + $0x3c] sm:$0xf] %v677
  %806 = vst [vmem:[%s3 + $0x40] sm:$0xf] %v678
  %807 = vst [vmem:[%s3 + $0x44] sm:$0xf] %v679
  %808 = vst [vmem:[%s3 + $0x48] sm:$0xf] %v680
  %809 = vst [vmem:[%s3 + $0x4c] sm:$0xf] %v681
  %810 = vst [vmem:[%s3 + $0x50] sm:$0xf] %v682
  %811 = vst [vmem:[%s3 + $0x54] sm:$0xf] %v683
  %812 = vst [vmem:[%s3 + $0x58] sm:$0xf] %v684
  %813 = vst [vmem:[%s3 + $0x5c] sm:$0xf] %v685
  %814 = vst [vmem:[%s3 + $0x60] sm:$0xf] %v686
  %815 = vst [vmem:[%s3 + $0x64] sm:$0xf] %v687
  %816 = vst [vmem:[%s3 + $0x68] sm:$0xf] %v688
  %817 = vst [vmem:[%s3 + $0x6c] sm:$0xf] %v689
  %818 = vst [vmem:[%s3 + $0x70] sm:$0xf] %v690
  %819 = vst [vmem:[%s3 + $0x74] sm:$0xf] %v691
  %820 = vst [vmem:[%s3 + $0x78] sm:$0xf] %v692
  %821 = vst [vmem:[%s3 + $0x7c] sm:$0xf] %v693
  %822 = vst [vmem:[%s3 + $0x80] sm:$0xf] %v694
  %823 = vst [vmem:[%s3 + $0x84] sm:$0xf] %v695
  %824 = vst [vmem:[%s3 + $0x88] sm:$0xf] %v696
  %825 = vst [vmem:[%s3 + $0x8c] sm:$0xf] %v697
  %826 = vst [vmem:[%s3 + $0x90] sm:$0xf] %v698
  %827 = vst [vmem:[%s3 + $0x94] sm:$0xf] %v699
  %828 = vst [vmem:[%s3 + $0x98] sm:$0xf] %v700
  %829 = vst [vmem:[%s3 + $0x9c] sm:$0xf] %v701
  %830 = vst [vmem:[%s3 + $0xa0] sm:$0xf] %v702
  %831 = vst [vmem:[%s3 + $0xa4] sm:$0xf] %v703
  %832 = vst [vmem:[%s3 + $0xa8] sm:$0xf] %v704
  %833 = vst [vmem:[%s3 + $0xac] sm:$0xf] %v705
  %834 = vst [vmem:[%s3 + $0xb0] sm:$0xf] %v706
  %835 = vst [vmem:[%s3 + $0xb4] sm:$0xf] %v707
  %836 = vst [vmem:[%s3 + $0xb8] sm:$0xf] %v708
  %837 = vst [vmem:[%s3 + $0xbc] sm:$0xf] %v709
  %838 = vst [vmem:[%s3 + $0xc0] sm:$0xf] %v710
  %839 = vst [vmem:[%s3 + $0xc4] sm:$0xf] %v711
  %840 = vst [vmem:[%s3 + $0xc8] sm:$0xf] %v712
  %841 = vst [vmem:[%s3 + $0xcc] sm:$0xf] %v713
  %842 = vst [vmem:[%s3 + $0xd0] sm:$0xf] %v714
  %843 = vst [vmem:[%s3 + $0xd4] sm:$0xf] %v715
  %844 = vst [vmem:[%s3 + $0xd8] sm:$0xf] %v716
  %845 = vst [vmem:[%s3 + $0xdc] sm:$0xf] %v717
  %846 = vst [vmem:[%s3 + $0xe0] sm:$0xf] %v718
  %847 = vst [vmem:[%s3 + $0xe4] sm:$0xf] %v719
  %848 = vst [vmem:[%s3 + $0xe8] sm:$0xf] %v720
  %849 = vst [vmem:[%s3 + $0xec] sm:$0xf] %v721
  %850 = vst [vmem:[%s3 + $0xf0] sm:$0xf] %v722
  %851 = vst [vmem:[%s3 + $0xf4] sm:$0xf] %v723
  %852 = vst [vmem:[%s3 + $0xf8] sm:$0xf] %v724
  %853 = vst [vmem:[%s3 + $0xfc] sm:$0xf] %v725
  %854 = vst [vmem:[%s3 + $0x100] sm:$0xf] %v726
  %855 = vst [vmem:[%s3 + $0x104] sm:$0xf] %v727
  %856 = vst [vmem:[%s3 + $0x108] sm:$0xf] %v728
  %857 = vst [vmem:[%s3 + $0x10c] sm:$0xf] %v729
  %858 = vst [vmem:[%s3 + $0x110] sm:$0xf] %v730
  %859 = vst [vmem:[%s3 + $0x114] sm:$0xf] %v731
  %860 = vst [vmem:[%s3 + $0x118] sm:$0xf] %v732
  %861 = vst [vmem:[%s3 + $0x11c] sm:$0xf] %v733
  %862 = vst [vmem:[%s3 + $0x120] sm:$0xf] %v734
  %863 = vst [vmem:[%s3 + $0x124] sm:$0xf] %v735
  %864 = vst [vmem:[%s3 + $0x128] sm:$0xf] %v736
  %865 = vst [vmem:[%s3 + $0x12c] sm:$0xf] %v737
  %866 = vst [vmem:[%s3 + $0x130] sm:$0xf] %v738
  %867 = vst [vmem:[%s3 + $0x134] sm:$0xf] %v739
  %868 = vst [vmem:[%s3 + $0x138] sm:$0xf] %v740
  %869 = vst [vmem:[%s3 + $0x13c] sm:$0xf] %v741
  %870 = vst [vmem:[%s3 + $0x140] sm:$0xf] %v742
  %871 = vst [vmem:[%s3 + $0x144] sm:$0xf] %v743
  %872 = vst [vmem:[%s3 + $0x148] sm:$0xf] %v744
  %873 = vst [vmem:[%s3 + $0x14c] sm:$0xf] %v745
  %874 = vst [vmem:[%s3 + $0x150] sm:$0xf] %v746
  %875 = vst [vmem:[%s3 + $0x154] sm:$0xf] %v747
  %876 = vst [vmem:[%s3 + $0x158] sm:$0xf] %v748
  %877 = vst [vmem:[%s3 + $0x15c] sm:$0xf] %v749
  %878 = vst [vmem:[%s3 + $0x160] sm:$0xf] %v750
  %879 = vst [vmem:[%s3 + $0x164] sm:$0xf] %v751
  %880 = vst [vmem:[%s3 + $0x168] sm:$0xf] %v752
  %881 = vst [vmem:[%s3 + $0x16c] sm:$0xf] %v753
  %882 = vst [vmem:[%s3 + $0x170] sm:$0xf] %v754
  %883 = vst [vmem:[%s3 + $0x174] sm:$0xf] %v755
  %884 = vst [vmem:[%s3 + $0x178] sm:$0xf] %v756
  %885 = vst [vmem:[%s3 + $0x17c] sm:$0xf] %v757
  %886 = vst [vmem:[%s3 + $0x180] sm:$0xf] %v758
  %887 = vst [vmem:[%s3 + $0x184] sm:$0xf] %v759
  %888 = vst [vmem:[%s3 + $0x188] sm:$0xf] %v760
  %889 = vst [vmem:[%s3 + $0x18c] sm:$0xf] %v761
  %890 = vst [vmem:[%s3 + $0x190] sm:$0xf] %v762
  %891 = vst [vmem:[%s3 + $0x194] sm:$0xf] %v763
  %892 = vst [vmem:[%s3 + $0x198] sm:$0xf] %v764
  %893 = vst [vmem:[%s3 + $0x19c] sm:$0xf] %v765
  %894 = vst [vmem:[%s3 + $0x1a0] sm:$0xf] %v766
  %895 = vst [vmem:[%s3 + $0x1a4] sm:$0xf] %v767
  %896 = vst [vmem:[%s3 + $0x1a8] sm:$0xf] %v768
  %897 = vst [vmem:[%s3 + $0x1ac] sm:$0xf] %v769
  %898 = vst [vmem:[%s3 + $0x1b0] sm:$0xf] %v770
  %899 = vst [vmem:[%s3 + $0x1b4] sm:$0xf] %v771
  %900 = vst [vmem:[%s3 + $0x1b8] sm:$0xf] %v772
  %901 = vst [vmem:[%s3 + $0x1bc] sm:$0xf] %v773
  %902 = vst [vmem:[%s3 + $0x1c0] sm:$0xf] %v774
  %903 = vst [vmem:[%s3 + $0x1c4] sm:$0xf] %v775
  %904 = vst [vmem:[%s3 + $0x1c8] sm:$0xf] %v776
  %905 = vst [vmem:[%s3 + $0x1cc] sm:$0xf] %v777
  %906 = vst [vmem:[%s3 + $0x1d0] sm:$0xf] %v778
  %907 = vst [vmem:[%s3 + $0x1d4] sm:$0xf] %v779
  %908 = vst [vmem:[%s3 + $0x1d8] sm:$0xf] %v780
  %909 = vst [vmem:[%s3 + $0x1dc] sm:$0xf] %v781
  %910 = vst [vmem:[%s3 + $0x1e0] sm:$0xf] %v782
  %911 = vst [vmem:[%s3 + $0x1e4] sm:$0xf] %v783
  %912 = vst [vmem:[%s3 + $0x1e8] sm:$0xf] %v784
  %913 = vst [vmem:[%s3 + $0x1ec] sm:$0xf] %v785
  %914 = vst [vmem:[%s3 + $0x1f0] sm:$0xf] %v786
  %915 = vst [vmem:[%s3 + $0x1f4] sm:$0xf] %v787
  %916 = vst [vmem:[%s3 + $0x1f8] sm:$0xf] %v788
  %917 = vst [vmem:[%s3 + $0x1fc] sm:$0xf] %v789
  // Predicated region
  $region14: #{_lambda_.8} parent=0 // pred_check
    _
  $region15: #{_lambda_.8} parent=0 // pred_check_branch
    %919 = sbr.rel (0) target = $region17
  $region16: #{_lambda_.8} parent=0 // pred_region
    _
  $region17: #{_lambda_.8} parent=0 // pred_fallthru
    _
  // Predicated region
  $region18: #{_lambda_.8} parent=0 // pred_check
    _
  $region19: #{_lambda_.8} parent=0 // pred_check_branch
    %921 = sbr.rel (0) target = $region21
  $region20: #{_lambda_.8} parent=0 // pred_region
    _
  $region21: #{_lambda_.8} parent=0 // pred_fallthru
    _

// kernel: _lambda_.11
$region0: #{_lambda_.11}
  #allocation0 [shape = 'u32[]', space=smem, size = 0x4, offset = 0x4, fixed_abs, tag = 'smem constant byte address 0x4 - core index']
  #allocation1 [shape = 'u32[72,128]{1,0:T(1,128)}', space=vmem, size = 0x9000, scoped, tag = 'internal scratch']
  %s0 = inlined_call_operand.vmem [shape: bf16[1024,128], index: 0, kind: input, shape index: {}]
  %s1 = inlined_call_operand.vmem [shape: f32[1,128], index: 1, kind: input, shape index: {}]
  %s2 = inlined_call_operand.vmem [shape: f32[1,128], index: 2, kind: input, shape index: {}]
  %s3 = inlined_call_operand.vmem [shape: f32[1024,128], index: 3, kind: output, shape index: {}]
  %s4 = sld [smem:[#allocation0]]
  $region22: #{_lambda_.11} parent=0
    _
  %s6 = ssub.s32 1, %s4
  %s7 = scalar_select 0, %s6, %s4
  // Predicated region
  $region2: #{_lambda_.11} parent=0 // pred_check
    _
  $region3: #{_lambda_.11} parent=0 // pred_check_branch
    %9 = sbr.rel (0) target = $region5
  $region4: #{_lambda_.11} parent=0 // pred_region
    _
  $region5: #{_lambda_.11} parent=0 // pred_fallthru
    _
  // Predicated region
  $region6: #{_lambda_.11} parent=0 // pred_check
    _
  $region7: #{_lambda_.11} parent=0 // pred_check_branch
    %11 = sbr.rel (0) target = $region9
  $region8: #{_lambda_.11} parent=0 // pred_region
    _
  $region9: #{_lambda_.11} parent=0 // pred_fallthru
    _
  // Predicated region
  $region10: #{_lambda_.11} parent=0 // pred_check
    _
  $region11: #{_lambda_.11} parent=0 // pred_check_branch
    %13 = sbr.rel (0) target = $region13
  $region12: #{_lambda_.11} parent=0 // pred_region
    _
  $region13: #{_lambda_.11} parent=0 // pred_fallthru
    _
  %v14 = vld [vmem:[%s0] sm:$0xf]
  %v15 = vld [vmem:[%s0 + $0x4] sm:$0xf]
  %v16 = vld [vmem:[%s0 + $0x8] sm:$0xf]
  %v17 = vld [vmem:[%s0 + $0xc] sm:$0xf]
  %v18 = vld [vmem:[%s0 + $0x10] sm:$0xf]
  %v19 = vld [vmem:[%s0 + $0x14] sm:$0xf]
  %v20 = vld [vmem:[%s0 + $0x18] sm:$0xf]
  %v21 = vld [vmem:[%s0 + $0x1c] sm:$0xf]
  %v22 = vld [vmem:[%s0 + $0x20] sm:$0xf]
  %v23 = vld [vmem:[%s0 + $0x24] sm:$0xf]
  %v24 = vld [vmem:[%s0 + $0x28] sm:$0xf]
  %v25 = vld [vmem:[%s0 + $0x2c] sm:$0xf]
  %v26 = vld [vmem:[%s0 + $0x30] sm:$0xf]
  %v27 = vld [vmem:[%s0 + $0x34] sm:$0xf]
  %v28 = vld [vmem:[%s0 + $0x38] sm:$0xf]
  %v29 = vld [vmem:[%s0 + $0x3c] sm:$0xf]
  %v30 = vld [vmem:[%s0 + $0x40] sm:$0xf]
  %v31 = vld [vmem:[%s0 + $0x44] sm:$0xf]
  %v32 = vld [vmem:[%s0 + $0x48] sm:$0xf]
  %v33 = vld [vmem:[%s0 + $0x4c] sm:$0xf]
  %v34 = vld [vmem:[%s0 + $0x50] sm:$0xf]
  %v35 = vld [vmem:[%s0 + $0x54] sm:$0xf]
  %v36 = vld [vmem:[%s0 + $0x58] sm:$0xf]
  %v37 = vld [vmem:[%s0 + $0x5c] sm:$0xf]
  %v38 = vld [vmem:[%s0 + $0x60] sm:$0xf]
  %v39 = vld [vmem:[%s0 + $0x64] sm:$0xf]
  %v40 = vld [vmem:[%s0 + $0x68] sm:$0xf]
  %v41 = vld [vmem:[%s0 + $0x6c] sm:$0xf]
  %v42 = vld [vmem:[%s0 + $0x70] sm:$0xf]
  %v43 = vld [vmem:[%s0 + $0x74] sm:$0xf]
  %v44 = vld [vmem:[%s0 + $0x78] sm:$0xf]
  %v45 = vld [vmem:[%s0 + $0x7c] sm:$0xf]
  %v46 = vld [vmem:[%s0 + $0x80] sm:$0xf]
  %v47 = vld [vmem:[%s0 + $0x84] sm:$0xf]
  %v48 = vld [vmem:[%s0 + $0x88] sm:$0xf]
  %v49 = vld [vmem:[%s0 + $0x8c] sm:$0xf]
  %v50 = vld [vmem:[%s0 + $0x90] sm:$0xf]
  %v51 = vld [vmem:[%s0 + $0x94] sm:$0xf]
  %v52 = vld [vmem:[%s0 + $0x98] sm:$0xf]
  %v53 = vld [vmem:[%s0 + $0x9c] sm:$0xf]
  %v54 = vld [vmem:[%s0 + $0xa0] sm:$0xf]
  %v55 = vld [vmem:[%s0 + $0xa4] sm:$0xf]
  %v56 = vld [vmem:[%s0 + $0xa8] sm:$0xf]
  %v57 = vld [vmem:[%s0 + $0xac] sm:$0xf]
  %v58 = vld [vmem:[%s0 + $0xb0] sm:$0xf]
  %v59 = vld [vmem:[%s0 + $0xb4] sm:$0xf]
  %v60 = vld [vmem:[%s0 + $0xb8] sm:$0xf]
  %v61 = vld [vmem:[%s0 + $0xbc] sm:$0xf]
  %v62 = vld [vmem:[%s0 + $0xc0] sm:$0xf]
  %v63 = vld [vmem:[%s0 + $0xc4] sm:$0xf]
  %v64 = vld [vmem:[%s0 + $0xc8] sm:$0xf]
  %v65 = vld [vmem:[%s0 + $0xcc] sm:$0xf]
  %v66 = vld [vmem:[%s0 + $0xd0] sm:$0xf]
  %v67 = vld [vmem:[%s0 + $0xd4] sm:$0xf]
  %v68 = vld [vmem:[%s0 + $0xd8] sm:$0xf]
  %v69 = vld [vmem:[%s0 + $0xdc] sm:$0xf]
  %v70 = vld [vmem:[%s0 + $0xe0] sm:$0xf]
  %v71 = vld [vmem:[%s0 + $0xe4] sm:$0xf]
  %v72 = vld [vmem:[%s0 + $0xe8] sm:$0xf]
  %v73 = vld [vmem:[%s0 + $0xec] sm:$0xf]
  %v74 = vld [vmem:[%s0 + $0xf0] sm:$0xf]
  %v75 = vld [vmem:[%s0 + $0xf4] sm:$0xf]
  %v76 = vld [vmem:[%s0 + $0xf8] sm:$0xf]
  %v77 = vld [vmem:[%s0 + $0xfc] sm:$0xf]
  %v78 = vld [vmem:[%s0 + $0x100] sm:$0xf]
  %v79 = vld [vmem:[%s0 + $0x104] sm:$0xf]
  %v80 = vld [vmem:[%s0 + $0x108] sm:$0xf]
  %v81 = vld [vmem:[%s0 + $0x10c] sm:$0xf]
  %v82 = vld [vmem:[%s0 + $0x110] sm:$0xf]
  %v83 = vld [vmem:[%s0 + $0x114] sm:$0xf]
  %v84 = vld [vmem:[%s0 + $0x118] sm:$0xf]
  %v85 = vld [vmem:[%s0 + $0x11c] sm:$0xf]
  %v86 = vld [vmem:[%s0 + $0x120] sm:$0xf]
  %v87 = vld [vmem:[%s0 + $0x124] sm:$0xf]
  %v88 = vld [vmem:[%s0 + $0x128] sm:$0xf]
  %v89 = vld [vmem:[%s0 + $0x12c] sm:$0xf]
  %v90 = vld [vmem:[%s0 + $0x130] sm:$0xf]
  %v91 = vld [vmem:[%s0 + $0x134] sm:$0xf]
  %v92 = vld [vmem:[%s0 + $0x138] sm:$0xf]
  %v93 = vld [vmem:[%s0 + $0x13c] sm:$0xf]
  %v94 = vld [vmem:[%s0 + $0x140] sm:$0xf]
  %v95 = vld [vmem:[%s0 + $0x144] sm:$0xf]
  %v96 = vld [vmem:[%s0 + $0x148] sm:$0xf]
  %v97 = vld [vmem:[%s0 + $0x14c] sm:$0xf]
  %v98 = vld [vmem:[%s0 + $0x150] sm:$0xf]
  %v99 = vld [vmem:[%s0 + $0x154] sm:$0xf]
  %v100 = vld [vmem:[%s0 + $0x158] sm:$0xf]
  %v101 = vld [vmem:[%s0 + $0x15c] sm:$0xf]
  %v102 = vld [vmem:[%s0 + $0x160] sm:$0xf]
  %v103 = vld [vmem:[%s0 + $0x164] sm:$0xf]
  %v104 = vld [vmem:[%s0 + $0x168] sm:$0xf]
  %v105 = vld [vmem:[%s0 + $0x16c] sm:$0xf]
  %v106 = vld [vmem:[%s0 + $0x170] sm:$0xf]
  %v107 = vld [vmem:[%s0 + $0x174] sm:$0xf]
  %v108 = vld [vmem:[%s0 + $0x178] sm:$0xf]
  %v109 = vld [vmem:[%s0 + $0x17c] sm:$0xf]
  %v110 = vld [vmem:[%s0 + $0x180] sm:$0xf]
  %v111 = vld [vmem:[%s0 + $0x184] sm:$0xf]
  %v112 = vld [vmem:[%s0 + $0x188] sm:$0xf]
  %v113 = vld [vmem:[%s0 + $0x18c] sm:$0xf]
  %v114 = vld [vmem:[%s0 + $0x190] sm:$0xf]
  %v115 = vld [vmem:[%s0 + $0x194] sm:$0xf]
  %v116 = vld [vmem:[%s0 + $0x198] sm:$0xf]
  %v117 = vld [vmem:[%s0 + $0x19c] sm:$0xf]
  %v118 = vld [vmem:[%s0 + $0x1a0] sm:$0xf]
  %v119 = vld [vmem:[%s0 + $0x1a4] sm:$0xf]
  %v120 = vld [vmem:[%s0 + $0x1a8] sm:$0xf]
  %v121 = vld [vmem:[%s0 + $0x1ac] sm:$0xf]
  %v122 = vld [vmem:[%s0 + $0x1b0] sm:$0xf]
  %v123 = vld [vmem:[%s0 + $0x1b4] sm:$0xf]
  %v124 = vld [vmem:[%s0 + $0x1b8] sm:$0xf]
  %v125 = vld [vmem:[%s0 + $0x1bc] sm:$0xf]
  %v126 = vld [vmem:[%s0 + $0x1c0] sm:$0xf]
  %v127 = vld [vmem:[%s0 + $0x1c4] sm:$0xf]
  %v128 = vld [vmem:[%s0 + $0x1c8] sm:$0xf]
  %v129 = vld [vmem:[%s0 + $0x1cc] sm:$0xf]
  %v130 = vld [vmem:[%s0 + $0x1d0] sm:$0xf]
  %v131 = vld [vmem:[%s0 + $0x1d4] sm:$0xf]
  %v132 = vld [vmem:[%s0 + $0x1d8] sm:$0xf]
  %v133 = vld [vmem:[%s0 + $0x1dc] sm:$0xf]
  %v134 = vld [vmem:[%s0 + $0x1e0] sm:$0xf]
  %v135 = vld [vmem:[%s0 + $0x1e4] sm:$0xf]
  %v136 = vld [vmem:[%s0 + $0x1e8] sm:$0xf]
  %v137 = vld [vmem:[%s0 + $0x1ec] sm:$0xf]
  %v138 = vld [vmem:[%s0 + $0x1f0] sm:$0xf]
  %v139 = vld [vmem:[%s0 + $0x1f4] sm:$0xf]
  %v140 = vld [vmem:[%s0 + $0x1f8] sm:$0xf]
  %v141 = vld [vmem:[%s0 + $0x1fc] sm:$0xf]
  %v142 = vunpack.c.l.bf16 %v14
  %v143 = vunpack.c.l.bf16 %v15
  %v144 = vunpack.c.l.bf16 %v16
  %v145 = vunpack.c.l.bf16 %v17
  %v146 = vunpack.c.l.bf16 %v18
  %v147 = vunpack.c.l.bf16 %v19
  %v148 = vunpack.c.l.bf16 %v20
  %v149 = vunpack.c.l.bf16 %v21
  %v150 = vunpack.c.l.bf16 %v22
  %v151 = vunpack.c.l.bf16 %v23
  %v152 = vunpack.c.l.bf16 %v24
  %v153 = vunpack.c.l.bf16 %v25
  %v154 = vunpack.c.l.bf16 %v26
  %v155 = vunpack.c.l.bf16 %v27
  %v156 = vunpack.c.l.bf16 %v28
  %v157 = vunpack.c.l.bf16 %v29
  %v158 = vunpack.c.l.bf16 %v30
  %v159 = vunpack.c.l.bf16 %v31
  %v160 = vunpack.c.l.bf16 %v32
  %v161 = vunpack.c.l.bf16 %v33
  %v162 = vunpack.c.l.bf16 %v34
  %v163 = vunpack.c.l.bf16 %v35
  %v164 = vunpack.c.l.bf16 %v36
  %v165 = vunpack.c.l.bf16 %v37
  %v166 = vunpack.c.l.bf16 %v38
  %v167 = vunpack.c.l.bf16 %v39
  %v168 = vunpack.c.l.bf16 %v40
  %v169 = vunpack.c.l.bf16 %v41
  %v170 = vunpack.c.l.bf16 %v42
  %v171 = vunpack.c.l.bf16 %v43
  %v172 = vunpack.c.l.bf16 %v44
  %v173 = vunpack.c.l.bf16 %v45
  %v174 = vunpack.c.l.bf16 %v46
  %v175 = vunpack.c.l.bf16 %v47
  %v176 = vunpack.c.l.bf16 %v48
  %v177 = vunpack.c.l.bf16 %v49
  %v178 = vunpack.c.l.bf16 %v50
  %v179 = vunpack.c.l.bf16 %v51
  %v180 = vunpack.c.l.bf16 %v52
  %v181 = vunpack.c.l.bf16 %v53
  %v182 = vunpack.c.l.bf16 %v54
  %v183 = vunpack.c.l.bf16 %v55
  %v184 = vunpack.c.l.bf16 %v56
  %v185 = vunpack.c.l.bf16 %v57
  %v186 = vunpack.c.l.bf16 %v58
  %v187 = vunpack.c.l.bf16 %v59
  %v188 = vunpack.c.l.bf16 %v60
  %v189 = vunpack.c.l.bf16 %v61
  %v190 = vunpack.c.l.bf16 %v62
  %v191 = vunpack.c.l.bf16 %v63
  %v192 = vunpack.c.l.bf16 %v64
  %v193 = vunpack.c.l.bf16 %v65
  %v194 = vunpack.c.l.bf16 %v66
  %v195 = vunpack.c.l.bf16 %v67
  %v196 = vunpack.c.l.bf16 %v68
  %v197 = vunpack.c.l.bf16 %v69
  %v198 = vunpack.c.l.bf16 %v70
  %v199 = vunpack.c.l.bf16 %v71
  %v200 = vunpack.c.l.bf16 %v72
  %v201 = vunpack.c.l.bf16 %v73
  %v202 = vunpack.c.l.bf16 %v74
  %v203 = vunpack.c.l.bf16 %v75
  %v204 = vunpack.c.l.bf16 %v76
  %v205 = vunpack.c.l.bf16 %v77
  %v206 = vunpack.c.l.bf16 %v78
  %v207 = vunpack.c.l.bf16 %v79
  %v208 = vunpack.c.l.bf16 %v80
  %v209 = vunpack.c.l.bf16 %v81
  %v210 = vunpack.c.l.bf16 %v82
  %v211 = vunpack.c.l.bf16 %v83
  %v212 = vunpack.c.l.bf16 %v84
  %v213 = vunpack.c.l.bf16 %v85
  %v214 = vunpack.c.l.bf16 %v86
  %v215 = vunpack.c.l.bf16 %v87
  %v216 = vunpack.c.l.bf16 %v88
  %v217 = vunpack.c.l.bf16 %v89
  %v218 = vunpack.c.l.bf16 %v90
  %v219 = vunpack.c.l.bf16 %v91
  %v220 = vunpack.c.l.bf16 %v92
  %v221 = vunpack.c.l.bf16 %v93
  %v222 = vunpack.c.l.bf16 %v94
  %v223 = vunpack.c.l.bf16 %v95
  %v224 = vunpack.c.l.bf16 %v96
  %v225 = vunpack.c.l.bf16 %v97
  %v226 = vunpack.c.l.bf16 %v98
  %v227 = vunpack.c.l.bf16 %v99
  %v228 = vunpack.c.l.bf16 %v100
  %v229 = vunpack.c.l.bf16 %v101
  %v230 = vunpack.c.l.bf16 %v102
  %v231 = vunpack.c.l.bf16 %v103
  %v232 = vunpack.c.l.bf16 %v104
  %v233 = vunpack.c.l.bf16 %v105
  %v234 = vunpack.c.l.bf16 %v106
  %v235 = vunpack.c.l.bf16 %v107
  %v236 = vunpack.c.l.bf16 %v108
  %v237 = vunpack.c.l.bf16 %v109
  %v238 = vunpack.c.l.bf16 %v110
  %v239 = vunpack.c.l.bf16 %v111
  %v240 = vunpack.c.l.bf16 %v112
  %v241 = vunpack.c.l.bf16 %v113
  %v242 = vunpack.c.l.bf16 %v114
  %v243 = vunpack.c.l.bf16 %v115
  %v244 = vunpack.c.l.bf16 %v116
  %v245 = vunpack.c.l.bf16 %v117
  %v246 = vunpack.c.l.bf16 %v118
  %v247 = vunpack.c.l.bf16 %v119
  %v248 = vunpack.c.l.bf16 %v120
  %v249 = vunpack.c.l.bf16 %v121
  %v250 = vunpack.c.l.bf16 %v122
  %v251 = vunpack.c.l.bf16 %v123
  %v252 = vunpack.c.l.bf16 %v124
  %v253 = vunpack.c.l.bf16 %v125
  %v254 = vunpack.c.l.bf16 %v126
  %v255 = vunpack.c.l.bf16 %v127
  %v256 = vunpack.c.l.bf16 %v128
  %v257 = vunpack.c.l.bf16 %v129
  %v258 = vunpack.c.l.bf16 %v130
  %v259 = vunpack.c.l.bf16 %v131
  %v260 = vunpack.c.l.bf16 %v132
  %v261 = vunpack.c.l.bf16 %v133
  %v262 = vunpack.c.l.bf16 %v134
  %v263 = vunpack.c.l.bf16 %v135
  %v264 = vunpack.c.l.bf16 %v136
  %v265 = vunpack.c.l.bf16 %v137
  %v266 = vunpack.c.l.bf16 %v138
  %v267 = vunpack.c.l.bf16 %v139
  %v268 = vunpack.c.l.bf16 %v140
  %v269 = vunpack.c.l.bf16 %v141
  %v270 = vld [vmem:[%s1] sm:$0x1]
  %v272 = vperm.slane %v270, 0
  %v274 = vmul.f32 %v142, %v272
  %v275 = vmul.f32 %v143, %v272
  %v276 = vmul.f32 %v144, %v272
  %v277 = vmul.f32 %v145, %v272
  %v278 = vmul.f32 %v146, %v272
  %v279 = vmul.f32 %v147, %v272
  %v280 = vmul.f32 %v148, %v272
  %v281 = vmul.f32 %v149, %v272
  %v282 = vmul.f32 %v150, %v272
  %v283 = vmul.f32 %v151, %v272
  %v284 = vmul.f32 %v152, %v272
  %v285 = vmul.f32 %v153, %v272
  %v286 = vmul.f32 %v154, %v272
  %v287 = vmul.f32 %v155, %v272
  %v288 = vmul.f32 %v156, %v272
  %v289 = vmul.f32 %v157, %v272
  %v290 = vmul.f32 %v158, %v272
  %v291 = vmul.f32 %v159, %v272
  %v292 = vmul.f32 %v160, %v272
  %v293 = vmul.f32 %v161, %v272
  %v294 = vmul.f32 %v162, %v272
  %v295 = vmul.f32 %v163, %v272
  %v296 = vmul.f32 %v164, %v272
  %v297 = vmul.f32 %v165, %v272
  %v298 = vmul.f32 %v166, %v272
  %v299 = vmul.f32 %v167, %v272
  %v300 = vmul.f32 %v168, %v272
  %v301 = vmul.f32 %v169, %v272
  %v302 = vmul.f32 %v170, %v272
  %v303 = vmul.f32 %v171, %v272
  %v304 = vmul.f32 %v172, %v272
  %v305 = vmul.f32 %v173, %v272
  %v306 = vmul.f32 %v174, %v272
  %v307 = vmul.f32 %v175, %v272
  %v308 = vmul.f32 %v176, %v272
  %v309 = vmul.f32 %v177, %v272
  %v310 = vmul.f32 %v178, %v272
  %v311 = vmul.f32 %v179, %v272
  %v312 = vmul.f32 %v180, %v272
  %v313 = vmul.f32 %v181, %v272
  %v314 = vmul.f32 %v182, %v272
  %v315 = vmul.f32 %v183, %v272
  %v316 = vmul.f32 %v184, %v272
  %v317 = vmul.f32 %v185, %v272
  %v318 = vmul.f32 %v186, %v272
  %v319 = vmul.f32 %v187, %v272
  %v320 = vmul.f32 %v188, %v272
  %v321 = vmul.f32 %v189, %v272
  %v322 = vmul.f32 %v190, %v272
  %v323 = vmul.f32 %v191, %v272
  %v324 = vmul.f32 %v192, %v272
  %v325 = vmul.f32 %v193, %v272
  %v326 = vmul.f32 %v194, %v272
  %v327 = vmul.f32 %v195, %v272
  %v328 = vmul.f32 %v196, %v272
  %v329 = vmul.f32 %v197, %v272
  %v330 = vmul.f32 %v198, %v272
  %v331 = vmul.f32 %v199, %v272
  %v332 = vmul.f32 %v200, %v272
  %v333 = vmul.f32 %v201, %v272
  %v334 = vmul.f32 %v202, %v272
  %v335 = vmul.f32 %v203, %v272
  %v336 = vmul.f32 %v204, %v272
  %v337 = vmul.f32 %v205, %v272
  %v338 = vmul.f32 %v206, %v272
  %v339 = vmul.f32 %v207, %v272
  %v340 = vmul.f32 %v208, %v272
  %v341 = vmul.f32 %v209, %v272
  %v342 = vmul.f32 %v210, %v272
  %v343 = vmul.f32 %v211, %v272
  %v344 = vmul.f32 %v212, %v272
  %v345 = vmul.f32 %v213, %v272
  %v346 = vmul.f32 %v214, %v272
  %v347 = vmul.f32 %v215, %v272
  %v348 = vmul.f32 %v216, %v272
  %v349 = vmul.f32 %v217, %v272
  %v350 = vmul.f32 %v218, %v272
  %v351 = vmul.f32 %v219, %v272
  %v352 = vmul.f32 %v220, %v272
  %v353 = vmul.f32 %v221, %v272
  %v354 = vmul.f32 %v222, %v272
  %v355 = vmul.f32 %v223, %v272
  %v356 = vmul.f32 %v224, %v272
  %v357 = vmul.f32 %v225, %v272
  %v358 = vmul.f32 %v226, %v272
  %v359 = vmul.f32 %v227, %v272
  %v360 = vmul.f32 %v228, %v272
  %v361 = vmul.f32 %v229, %v272
  %v362 = vmul.f32 %v230, %v272
  %v363 = vmul.f32 %v231, %v272
  %v364 = vmul.f32 %v232, %v272
  %v365 = vmul.f32 %v233, %v272
  %v366 = vmul.f32 %v234, %v272
  %v367 = vmul.f32 %v235, %v272
  %v368 = vmul.f32 %v236, %v272
  %v369 = vmul.f32 %v237, %v272
  %v370 = vmul.f32 %v238, %v272
  %v371 = vmul.f32 %v239, %v272
  %v372 = vmul.f32 %v240, %v272
  %v373 = vmul.f32 %v241, %v272
  %v374 = vmul.f32 %v242, %v272
  %v375 = vmul.f32 %v243, %v272
  %v376 = vmul.f32 %v244, %v272
  %v377 = vmul.f32 %v245, %v272
  %v378 = vmul.f32 %v246, %v272
  %v379 = vmul.f32 %v247, %v272
  %v380 = vmul.f32 %v248, %v272
  %v381 = vmul.f32 %v249, %v272
  %v382 = vmul.f32 %v250, %v272
  %v383 = vmul.f32 %v251, %v272
  %v384 = vmul.f32 %v252, %v272
  %v385 = vmul.f32 %v253, %v272
  %v386 = vmul.f32 %v254, %v272
  %v387 = vmul.f32 %v255, %v272
  %v388 = vmul.f32 %v256, %v272
  %v389 = vmul.f32 %v257, %v272
  %v390 = vmul.f32 %v258, %v272
  %v391 = vmul.f32 %v259, %v272
  %v392 = vmul.f32 %v260, %v272
  %v393 = vmul.f32 %v261, %v272
  %v394 = vmul.f32 %v262, %v272
  %v395 = vmul.f32 %v263, %v272
  %v396 = vmul.f32 %v264, %v272
  %v397 = vmul.f32 %v265, %v272
  %v398 = vmul.f32 %v266, %v272
  %v399 = vmul.f32 %v267, %v272
  %v400 = vmul.f32 %v268, %v272
  %v401 = vmul.f32 %v269, %v272
  %v402 = vld [vmem:[%s2] sm:$0x1]
  %v404 = vperm.slane %v402, 0
  %v406 = vadd.f32 %v274, %v404
  %v407 = vadd.f32 %v275, %v404
  %v408 = vadd.f32 %v276, %v404
  %v409 = vadd.f32 %v277, %v404
  %v410 = vadd.f32 %v278, %v404
  %v411 = vadd.f32 %v279, %v404
  %v412 = vadd.f32 %v280, %v404
  %v413 = vadd.f32 %v281, %v404
  %v414 = vadd.f32 %v282, %v404
  %v415 = vadd.f32 %v283, %v404
  %v416 = vadd.f32 %v284, %v404
  %v417 = vadd.f32 %v285, %v404
  %v418 = vadd.f32 %v286, %v404
  %v419 = vadd.f32 %v287, %v404
  %v420 = vadd.f32 %v288, %v404
  %v421 = vadd.f32 %v289, %v404
  %v422 = vadd.f32 %v290, %v404
  %v423 = vadd.f32 %v291, %v404
  %v424 = vadd.f32 %v292, %v404
  %v425 = vadd.f32 %v293, %v404
  %v426 = vadd.f32 %v294, %v404
  %v427 = vadd.f32 %v295, %v404
  %v428 = vadd.f32 %v296, %v404
  %v429 = vadd.f32 %v297, %v404
  %v430 = vadd.f32 %v298, %v404
  %v431 = vadd.f32 %v299, %v404
  %v432 = vadd.f32 %v300, %v404
  %v433 = vadd.f32 %v301, %v404
  %v434 = vadd.f32 %v302, %v404
  %v435 = vadd.f32 %v303, %v404
  %v436 = vadd.f32 %v304, %v404
  %v437 = vadd.f32 %v305, %v404
  %v438 = vadd.f32 %v306, %v404
  %v439 = vadd.f32 %v307, %v404
  %v440 = vadd.f32 %v308, %v404
  %v441 = vadd.f32 %v309, %v404
  %v442 = vadd.f32 %v310, %v404
  %v443 = vadd.f32 %v311, %v404
  %v444 = vadd.f32 %v312, %v404
  %v445 = vadd.f32 %v313, %v404
  %v446 = vadd.f32 %v314, %v404
  %v447 = vadd.f32 %v315, %v404
  %v448 = vadd.f32 %v316, %v404
  %v449 = vadd.f32 %v317, %v404
  %v450 = vadd.f32 %v318, %v404
  %v451 = vadd.f32 %v319, %v404
  %v452 = vadd.f32 %v320, %v404
  %v453 = vadd.f32 %v321, %v404
  %v454 = vadd.f32 %v322, %v404
  %v455 = vadd.f32 %v323, %v404
  %v456 = vadd.f32 %v324, %v404
  %v457 = vadd.f32 %v325, %v404
  %v458 = vadd.f32 %v326, %v404
  %v459 = vadd.f32 %v327, %v404
  %v460 = vadd.f32 %v328, %v404
  %v461 = vadd.f32 %v329, %v404
  %v462 = vadd.f32 %v330, %v404
  %v463 = vadd.f32 %v331, %v404
  %v464 = vadd.f32 %v332, %v404
  %v465 = vadd.f32 %v333, %v404
  %v466 = vadd.f32 %v334, %v404
  %v467 = vadd.f32 %v335, %v404
  %v468 = vadd.f32 %v336, %v404
  %v469 = vadd.f32 %v337, %v404
  %v470 = vadd.f32 %v338, %v404
  %v471 = vadd.f32 %v339, %v404
  %v472 = vadd.f32 %v340, %v404
  %v473 = vadd.f32 %v341, %v404
  %v474 = vadd.f32 %v342, %v404
  %v475 = vadd.f32 %v343, %v404
  %v476 = vadd.f32 %v344, %v404
  %v477 = vadd.f32 %v345, %v404
  %v478 = vadd.f32 %v346, %v404
  %v479 = vadd.f32 %v347, %v404
  %v480 = vadd.f32 %v348, %v404
  %v481 = vadd.f32 %v349, %v404
  %v482 = vadd.f32 %v350, %v404
  %v483 = vadd.f32 %v351, %v404
  %v484 = vadd.f32 %v352, %v404
  %v485 = vadd.f32 %v353, %v404
  %v486 = vadd.f32 %v354, %v404
  %v487 = vadd.f32 %v355, %v404
  %v488 = vadd.f32 %v356, %v404
  %v489 = vadd.f32 %v357, %v404
  %v490 = vadd.f32 %v358, %v404
  %v491 = vadd.f32 %v359, %v404
  %v492 = vadd.f32 %v360, %v404
  %v493 = vadd.f32 %v361, %v404
  %v494 = vadd.f32 %v362, %v404
  %v495 = vadd.f32 %v363, %v404
  %v496 = vadd.f32 %v364, %v404
  %v497 = vadd.f32 %v365, %v404
  %v498 = vadd.f32 %v366, %v404
  %v499 = vadd.f32 %v367, %v404
  %v500 = vadd.f32 %v368, %v404
  %v501 = vadd.f32 %v369, %v404
  %v502 = vadd.f32 %v370, %v404
  %v503 = vadd.f32 %v371, %v404
  %v504 = vadd.f32 %v372, %v404
  %v505 = vadd.f32 %v373, %v404
  %v506 = vadd.f32 %v374, %v404
  %v507 = vadd.f32 %v375, %v404
  %v508 = vadd.f32 %v376, %v404
  %v509 = vadd.f32 %v377, %v404
  %v510 = vadd.f32 %v378, %v404
  %v511 = vadd.f32 %v379, %v404
  %v512 = vadd.f32 %v380, %v404
  %v513 = vadd.f32 %v381, %v404
  %v514 = vadd.f32 %v382, %v404
  %v515 = vadd.f32 %v383, %v404
  %v516 = vadd.f32 %v384, %v404
  %v517 = vadd.f32 %v385, %v404
  %v518 = vadd.f32 %v386, %v404
  %v519 = vadd.f32 %v387, %v404
  %v520 = vadd.f32 %v388, %v404
  %v521 = vadd.f32 %v389, %v404
  %v522 = vadd.f32 %v390, %v404
  %v523 = vadd.f32 %v391, %v404
  %v524 = vadd.f32 %v392, %v404
  %v525 = vadd.f32 %v393, %v404
  %v526 = vadd.f32 %v394, %v404
  %v527 = vadd.f32 %v395, %v404
  %v528 = vadd.f32 %v396, %v404
  %v529 = vadd.f32 %v397, %v404
  %v530 = vadd.f32 %v398, %v404
  %v531 = vadd.f32 %v399, %v404
  %v532 = vadd.f32 %v400, %v404
  %v533 = vadd.f32 %v401, %v404
  %v534 = vmax.f32 %v406, 0.0
  %v535 = vmax.f32 %v407, 0.0
  %v536 = vmax.f32 %v408, 0.0
  %v537 = vmax.f32 %v409, 0.0
  %v538 = vmax.f32 %v410, 0.0
  %v539 = vmax.f32 %v411, 0.0
  %v540 = vmax.f32 %v412, 0.0
  %v541 = vmax.f32 %v413, 0.0
  %v542 = vmax.f32 %v414, 0.0
  %v543 = vmax.f32 %v415, 0.0
  %v544 = vmax.f32 %v416, 0.0
  %v545 = vmax.f32 %v417, 0.0
  %v546 = vmax.f32 %v418, 0.0
  %v547 = vmax.f32 %v419, 0.0
  %v548 = vmax.f32 %v420, 0.0
  %v549 = vmax.f32 %v421, 0.0
  %v550 = vmax.f32 %v422, 0.0
  %v551 = vmax.f32 %v423, 0.0
  %v552 = vmax.f32 %v424, 0.0
  %v553 = vmax.f32 %v425, 0.0
  %v554 = vmax.f32 %v426, 0.0
  %v555 = vmax.f32 %v427, 0.0
  %v556 = vmax.f32 %v428, 0.0
  %v557 = vmax.f32 %v429, 0.0
  %v558 = vmax.f32 %v430, 0.0
  %v559 = vmax.f32 %v431, 0.0
  %v560 = vmax.f32 %v432, 0.0
  %v561 = vmax.f32 %v433, 0.0
  %v562 = vmax.f32 %v434, 0.0
  %v563 = vmax.f32 %v435, 0.0
  %v564 = vmax.f32 %v436, 0.0
  %v565 = vmax.f32 %v437, 0.0
  %v566 = vmax.f32 %v438, 0.0
  %v567 = vmax.f32 %v439, 0.0
  %v568 = vmax.f32 %v440, 0.0
  %v569 = vmax.f32 %v441, 0.0
  %v570 = vmax.f32 %v442, 0.0
  %v571 = vmax.f32 %v443, 0.0
  %v572 = vmax.f32 %v444, 0.0
  %v573 = vmax.f32 %v445, 0.0
  %v574 = vmax.f32 %v446, 0.0
  %v575 = vmax.f32 %v447, 0.0
  %v576 = vmax.f32 %v448, 0.0
  %v577 = vmax.f32 %v449, 0.0
  %v578 = vmax.f32 %v450, 0.0
  %v579 = vmax.f32 %v451, 0.0
  %v580 = vmax.f32 %v452, 0.0
  %v581 = vmax.f32 %v453, 0.0
  %v582 = vmax.f32 %v454, 0.0
  %v583 = vmax.f32 %v455, 0.0
  %v584 = vmax.f32 %v456, 0.0
  %v585 = vmax.f32 %v457, 0.0
  %v586 = vmax.f32 %v458, 0.0
  %v587 = vmax.f32 %v459, 0.0
  %v588 = vmax.f32 %v460, 0.0
  %v589 = vmax.f32 %v461, 0.0
  %v590 = vmax.f32 %v462, 0.0
  %v591 = vmax.f32 %v463, 0.0
  %v592 = vmax.f32 %v464, 0.0
  %v593 = vmax.f32 %v465, 0.0
  %v594 = vmax.f32 %v466, 0.0
  %v595 = vmax.f32 %v467, 0.0
  %v596 = vmax.f32 %v468, 0.0
  %v597 = vmax.f32 %v469, 0.0
  %v598 = vmax.f32 %v470, 0.0
  %v599 = vmax.f32 %v471, 0.0
  %v600 = vmax.f32 %v472, 0.0
  %v601 = vmax.f32 %v473, 0.0
  %v602 = vmax.f32 %v474, 0.0
  %v603 = vmax.f32 %v475, 0.0
  %v604 = vmax.f32 %v476, 0.0
  %v605 = vmax.f32 %v477, 0.0
  %v606 = vmax.f32 %v478, 0.0
  %v607 = vmax.f32 %v479, 0.0
  %v608 = vmax.f32 %v480, 0.0
  %v609 = vmax.f32 %v481, 0.0
  %v610 = vmax.f32 %v482, 0.0
  %v611 = vmax.f32 %v483, 0.0
  %v612 = vmax.f32 %v484, 0.0
  %v613 = vmax.f32 %v485, 0.0
  %v614 = vmax.f32 %v486, 0.0
  %v615 = vmax.f32 %v487, 0.0
  %v616 = vmax.f32 %v488, 0.0
  %v617 = vmax.f32 %v489, 0.0
  %v618 = vmax.f32 %v490, 0.0
  %v619 = vmax.f32 %v491, 0.0
  %v620 = vmax.f32 %v492, 0.0
  %v621 = vmax.f32 %v493, 0.0
  %v622 = vmax.f32 %v494, 0.0
  %v623 = vmax.f32 %v495, 0.0
  %v624 = vmax.f32 %v496, 0.0
  %v625 = vmax.f32 %v497, 0.0
  %v626 = vmax.f32 %v498, 0.0
  %v627 = vmax.f32 %v499, 0.0
  %v628 = vmax.f32 %v500, 0.0
  %v629 = vmax.f32 %v501, 0.0
  %v630 = vmax.f32 %v502, 0.0
  %v631 = vmax.f32 %v503, 0.0
  %v632 = vmax.f32 %v504, 0.0
  %v633 = vmax.f32 %v505, 0.0
  %v634 = vmax.f32 %v506, 0.0
  %v635 = vmax.f32 %v507, 0.0
  %v636 = vmax.f32 %v508, 0.0
  %v637 = vmax.f32 %v509, 0.0
  %v638 = vmax.f32 %v510, 0.0
  %v639 = vmax.f32 %v511, 0.0
  %v640 = vmax.f32 %v512, 0.0
  %v641 = vmax.f32 %v513, 0.0
  %v642 = vmax.f32 %v514, 0.0
  %v643 = vmax.f32 %v515, 0.0
  %v644 = vmax.f32 %v516, 0.0
  %v645 = vmax.f32 %v517, 0.0
  %v646 = vmax.f32 %v518, 0.0
  %v647 = vmax.f32 %v519, 0.0
  %v648 = vmax.f32 %v520, 0.0
  %v649 = vmax.f32 %v521, 0.0
  %v650 = vmax.f32 %v522, 0.0
  %v651 = vmax.f32 %v523, 0.0
  %v652 = vmax.f32 %v524, 0.0
  %v653 = vmax.f32 %v525, 0.0
  %v654 = vmax.f32 %v526, 0.0
  %v655 = vmax.f32 %v527, 0.0
  %v656 = vmax.f32 %v528, 0.0
  %v657 = vmax.f32 %v529, 0.0
  %v658 = vmax.f32 %v530, 0.0
  %v659 = vmax.f32 %v531, 0.0
  %v660 = vmax.f32 %v532, 0.0
  %v661 = vmax.f32 %v533, 0.0
  %662 = vst [vmem:[%s3] sm:$0xff] %v534
  %663 = vst [vmem:[%s3 + $0x8] sm:$0xff] %v535
  %664 = vst [vmem:[%s3 + $0x10] sm:$0xff] %v536
  %665 = vst [vmem:[%s3 + $0x18] sm:$0xff] %v537
  %666 = vst [vmem:[%s3 + $0x20] sm:$0xff] %v538
  %667 = vst [vmem:[%s3 + $0x28] sm:$0xff] %v539
  %668 = vst [vmem:[%s3 + $0x30] sm:$0xff] %v540
  %669 = vst [vmem:[%s3 + $0x38] sm:$0xff] %v541
  %670 = vst [vmem:[%s3 + $0x40] sm:$0xff] %v542
  %671 = vst [vmem:[%s3 + $0x48] sm:$0xff] %v543
  %672 = vst [vmem:[%s3 + $0x50] sm:$0xff] %v544
  %673 = vst [vmem:[%s3 + $0x58] sm:$0xff] %v545
  %674 = vst [vmem:[%s3 + $0x60] sm:$0xff] %v546
  %675 = vst [vmem:[%s3 + $0x68] sm:$0xff] %v547
  %676 = vst [vmem:[%s3 + $0x70] sm:$0xff] %v548
  %677 = vst [vmem:[%s3 + $0x78] sm:$0xff] %v549
  %678 = vst [vmem:[%s3 + $0x80] sm:$0xff] %v550
  %679 = vst [vmem:[%s3 + $0x88] sm:$0xff] %v551
  %680 = vst [vmem:[%s3 + $0x90] sm:$0xff] %v552
  %681 = vst [vmem:[%s3 + $0x98] sm:$0xff] %v553
  %682 = vst [vmem:[%s3 + $0xa0] sm:$0xff] %v554
  %683 = vst [vmem:[%s3 + $0xa8] sm:$0xff] %v555
  %684 = vst [vmem:[%s3 + $0xb0] sm:$0xff] %v556
  %685 = vst [vmem:[%s3 + $0xb8] sm:$0xff] %v557
  %686 = vst [vmem:[%s3 + $0xc0] sm:$0xff] %v558
  %687 = vst [vmem:[%s3 + $0xc8] sm:$0xff] %v559
  %688 = vst [vmem:[%s3 + $0xd0] sm:$0xff] %v560
  %689 = vst [vmem:[%s3 + $0xd8] sm:$0xff] %v561
  %690 = vst [vmem:[%s3 + $0xe0] sm:$0xff] %v562
  %691 = vst [vmem:[%s3 + $0xe8] sm:$0xff] %v563
  %692 = vst [vmem:[%s3 + $0xf0] sm:$0xff] %v564
  %693 = vst [vmem:[%s3 + $0xf8] sm:$0xff] %v565
  %694 = vst [vmem:[%s3 + $0x100] sm:$0xff] %v566
  %695 = vst [vmem:[%s3 + $0x108] sm:$0xff] %v567
  %696 = vst [vmem:[%s3 + $0x110] sm:$0xff] %v568
  %697 = vst [vmem:[%s3 + $0x118] sm:$0xff] %v569
  %698 = vst [vmem:[%s3 + $0x120] sm:$0xff] %v570
  %699 = vst [vmem:[%s3 + $0x128] sm:$0xff] %v571
  %700 = vst [vmem:[%s3 + $0x130] sm:$0xff] %v572
  %701 = vst [vmem:[%s3 + $0x138] sm:$0xff] %v573
  %702 = vst [vmem:[%s3 + $0x140] sm:$0xff] %v574
  %703 = vst [vmem:[%s3 + $0x148] sm:$0xff] %v575
  %704 = vst [vmem:[%s3 + $0x150] sm:$0xff] %v576
  %705 = vst [vmem:[%s3 + $0x158] sm:$0xff] %v577
  %706 = vst [vmem:[%s3 + $0x160] sm:$0xff] %v578
  %707 = vst [vmem:[%s3 + $0x168] sm:$0xff] %v579
  %708 = vst [vmem:[%s3 + $0x170] sm:$0xff] %v580
  %709 = vst [vmem:[%s3 + $0x178] sm:$0xff] %v581
  %710 = vst [vmem:[%s3 + $0x180] sm:$0xff] %v582
  %711 = vst [vmem:[%s3 + $0x188] sm:$0xff] %v583
  %712 = vst [vmem:[%s3 + $0x190] sm:$0xff] %v584
  %713 = vst [vmem:[%s3 + $0x198] sm:$0xff] %v585
  %714 = vst [vmem:[%s3 + $0x1a0] sm:$0xff] %v586
  %715 = vst [vmem:[%s3 + $0x1a8] sm:$0xff] %v587
  %716 = vst [vmem:[%s3 + $0x1b0] sm:$0xff] %v588
  %717 = vst [vmem:[%s3 + $0x1b8] sm:$0xff] %v589
  %718 = vst [vmem:[%s3 + $0x1c0] sm:$0xff] %v590
  %719 = vst [vmem:[%s3 + $0x1c8] sm:$0xff] %v591
  %720 = vst [vmem:[%s3 + $0x1d0] sm:$0xff] %v592
  %721 = vst [vmem:[%s3 + $0x1d8] sm:$0xff] %v593
  %722 = vst [vmem:[%s3 + $0x1e0] sm:$0xff] %v594
  %723 = vst [vmem:[%s3 + $0x1e8] sm:$0xff] %v595
  %724 = vst [vmem:[%s3 + $0x1f0] sm:$0xff] %v596
  %725 = vst [vmem:[%s3 + $0x1f8] sm:$0xff] %v597
  %726 = vst [vmem:[%s3 + $0x200] sm:$0xff] %v598
  %727 = vst [vmem:[%s3 + $0x208] sm:$0xff] %v599
  %728 = vst [vmem:[%s3 + $0x210] sm:$0xff] %v600
  %729 = vst [vmem:[%s3 + $0x218] sm:$0xff] %v601
  %730 = vst [vmem:[%s3 + $0x220] sm:$0xff] %v602
  %731 = vst [vmem:[%s3 + $0x228] sm:$0xff] %v603
  %732 = vst [vmem:[%s3 + $0x230] sm:$0xff] %v604
  %733 = vst [vmem:[%s3 + $0x238] sm:$0xff] %v605
  %734 = vst [vmem:[%s3 + $0x240] sm:$0xff] %v606
  %735 = vst [vmem:[%s3 + $0x248] sm:$0xff] %v607
  %736 = vst [vmem:[%s3 + $0x250] sm:$0xff] %v608
  %737 = vst [vmem:[%s3 + $0x258] sm:$0xff] %v609
  %738 = vst [vmem:[%s3 + $0x260] sm:$0xff] %v610
  %739 = vst [vmem:[%s3 + $0x268] sm:$0xff] %v611
  %740 = vst [vmem:[%s3 + $0x270] sm:$0xff] %v612
  %741 = vst [vmem:[%s3 + $0x278] sm:$0xff] %v613
  %742 = vst [vmem:[%s3 + $0x280] sm:$0xff] %v614
  %743 = vst [vmem:[%s3 + $0x288] sm:$0xff] %v615
  %744 = vst [vmem:[%s3 + $0x290] sm:$0xff] %v616
  %745 = vst [vmem:[%s3 + $0x298] sm:$0xff] %v617
  %746 = vst [vmem:[%s3 + $0x2a0] sm:$0xff] %v618
  %747 = vst [vmem:[%s3 + $0x2a8] sm:$0xff] %v619
  %748 = vst [vmem:[%s3 + $0x2b0] sm:$0xff] %v620
  %749 = vst [vmem:[%s3 + $0x2b8] sm:$0xff] %v621
  %750 = vst [vmem:[%s3 + $0x2c0] sm:$0xff] %v622
  %751 = vst [vmem:[%s3 + $0x2c8] sm:$0xff] %v623
  %752 = vst [vmem:[%s3 + $0x2d0] sm:$0xff] %v624
  %753 = vst [vmem:[%s3 + $0x2d8] sm:$0xff] %v625
  %754 = vst [vmem:[%s3 + $0x2e0] sm:$0xff] %v626
  %755 = vst [vmem:[%s3 + $0x2e8] sm:$0xff] %v627
  %756 = vst [vmem:[%s3 + $0x2f0] sm:$0xff] %v628
  %757 = vst [vmem:[%s3 + $0x2f8] sm:$0xff] %v629
  %758 = vst [vmem:[%s3 + $0x300] sm:$0xff] %v630
  %759 = vst [vmem:[%s3 + $0x308] sm:$0xff] %v631
  %760 = vst [vmem:[%s3 + $0x310] sm:$0xff] %v632
  %761 = vst [vmem:[%s3 + $0x318] sm:$0xff] %v633
  %762 = vst [vmem:[%s3 + $0x320] sm:$0xff] %v634
  %763 = vst [vmem:[%s3 + $0x328] sm:$0xff] %v635
  %764 = vst [vmem:[%s3 + $0x330] sm:$0xff] %v636
  %765 = vst [vmem:[%s3 + $0x338] sm:$0xff] %v637
  %766 = vst [vmem:[%s3 + $0x340] sm:$0xff] %v638
  %767 = vst [vmem:[%s3 + $0x348] sm:$0xff] %v639
  %768 = vst [vmem:[%s3 + $0x350] sm:$0xff] %v640
  %769 = vst [vmem:[%s3 + $0x358] sm:$0xff] %v641
  %770 = vst [vmem:[%s3 + $0x360] sm:$0xff] %v642
  %771 = vst [vmem:[%s3 + $0x368] sm:$0xff] %v643
  %772 = vst [vmem:[%s3 + $0x370] sm:$0xff] %v644
  %773 = vst [vmem:[%s3 + $0x378] sm:$0xff] %v645
  %774 = vst [vmem:[%s3 + $0x380] sm:$0xff] %v646
  %775 = vst [vmem:[%s3 + $0x388] sm:$0xff] %v647
  %776 = vst [vmem:[%s3 + $0x390] sm:$0xff] %v648
  %777 = vst [vmem:[%s3 + $0x398] sm:$0xff] %v649
  %778 = vst [vmem:[%s3 + $0x3a0] sm:$0xff] %v650
  %779 = vst [vmem:[%s3 + $0x3a8] sm:$0xff] %v651
  %780 = vst [vmem:[%s3 + $0x3b0] sm:$0xff] %v652
  %781 = vst [vmem:[%s3 + $0x3b8] sm:$0xff] %v653
  %782 = vst [vmem:[%s3 + $0x3c0] sm:$0xff] %v654
  %783 = vst [vmem:[%s3 + $0x3c8] sm:$0xff] %v655
  %784 = vst [vmem:[%s3 + $0x3d0] sm:$0xff] %v656
  %785 = vst [vmem:[%s3 + $0x3d8] sm:$0xff] %v657
  %786 = vst [vmem:[%s3 + $0x3e0] sm:$0xff] %v658
  %787 = vst [vmem:[%s3 + $0x3e8] sm:$0xff] %v659
  %788 = vst [vmem:[%s3 + $0x3f0] sm:$0xff] %v660
  %789 = vst [vmem:[%s3 + $0x3f8] sm:$0xff] %v661
  // Predicated region
  $region14: #{_lambda_.11} parent=0 // pred_check
    _
  $region15: #{_lambda_.11} parent=0 // pred_check_branch
    %791 = sbr.rel (0) target = $region17
  $region16: #{_lambda_.11} parent=0 // pred_region
    _
  $region17: #{_lambda_.11} parent=0 // pred_fallthru
    _
  // Predicated region
  $region18: #{_lambda_.11} parent=0 // pred_check
    _
  $region19: #{_lambda_.11} parent=0 // pred_check_branch
    %793 = sbr.rel (0) target = $region21
  $region20: #{_lambda_.11} parent=0 // pred_region
    _
  $region21: #{_lambda_.11} parent=0 // pred_fallthru
    _

// kernel: _lambda_.9
$region0: #{_lambda_.9}
  #allocation0 [shape = 'u32[]', space=smem, size = 0x4, offset = 0x4, fixed_abs, tag = 'smem constant byte address 0x4 - core index']
  #allocation1 [shape = 'u32[72,128]{1,0:T(1,128)}', space=vmem, size = 0x9000, scoped, tag = 'internal scratch']
  %s0 = inlined_call_operand.vmem [shape: bf16[1024,256], index: 0, kind: input, shape index: {}]
  %s1 = inlined_call_operand.vmem [shape: bf16[256,128], index: 1, kind: input, shape index: {}]
  %s2 = inlined_call_operand.vmem [shape: f32[1,128], index: 2, kind: input, shape index: {}]
  %s3 = inlined_call_operand.vmem [shape: bf16[1024,128], index: 3, kind: output, shape index: {0}]
  %s4 = inlined_call_operand.vmem [shape: f32[1,1,128], index: 4, kind: output, shape index: {1}]
  %s5 = inlined_call_operand.vmem [shape: f32[1,1,128], index: 5, kind: output, shape index: {2}]
  %6 = xla_tuple %s3, %s4, %s5
  %s7 = sld [smem:[#allocation0]]
  $region38: #{_lambda_.9} parent=0
    _
  %s9 = ssub.s32 1, %s7
  %s10 = scalar_select 0, %s9, %s7
  // Predicated region
  $region2: #{_lambda_.9} parent=0 // pred_check
    _
  $region3: #{_lambda_.9} parent=0 // pred_check_branch
    %12 = sbr.rel (0) target = $region5
  $region4: #{_lambda_.9} parent=0 // pred_region
    _
  $region5: #{_lambda_.9} parent=0 // pred_fallthru
    _
  // Predicated region
  $region6: #{_lambda_.9} parent=0 // pred_check
    _
  $region7: #{_lambda_.9} parent=0 // pred_check_branch
    %14 = sbr.rel (0) target = $region9
  $region8: #{_lambda_.9} parent=0 // pred_region
    _
  $region9: #{_lambda_.9} parent=0 // pred_fallthru
    _
  // Predicated region
  $region10: #{_lambda_.9} parent=0 // pred_check
    _
  $region11: #{_lambda_.9} parent=0 // pred_check_branch
    %16 = sbr.rel (0) target = $region13
  $region12: #{_lambda_.9} parent=0 // pred_region
    _
  $region13: #{_lambda_.9} parent=0 // pred_fallthru
    _
  %v17 = vld [vmem:[%s0] sm:$0xff]
  %v18 = vld [vmem:[%s0 + $0x8] sm:$0xff]
  %v19 = vld [vmem:[%s0 + $0x10] sm:$0xff]
  %v20 = vld [vmem:[%s0 + $0x18] sm:$0xff]
  %v21 = vld [vmem:[%s0 + $0x20] sm:$0xff]
  %v22 = vld [vmem:[%s0 + $0x28] sm:$0xff]
  %v23 = vld [vmem:[%s0 + $0x30] sm:$0xff]
  %v24 = vld [vmem:[%s0 + $0x38] sm:$0xff]
  %v25 = vld [vmem:[%s0 + $0x40] sm:$0xff]
  %v26 = vld [vmem:[%s0 + $0x48] sm:$0xff]
  %v27 = vld [vmem:[%s0 + $0x50] sm:$0xff]
  %v28 = vld [vmem:[%s0 + $0x58] sm:$0xff]
  %v29 = vld [vmem:[%s0 + $0x60] sm:$0xff]
  %v30 = vld [vmem:[%s0 + $0x68] sm:$0xff]
  %v31 = vld [vmem:[%s0 + $0x70] sm:$0xff]
  %v32 = vld [vmem:[%s0 + $0x78] sm:$0xff]
  %v33 = vld [vmem:[%s0 + $0x80] sm:$0xff]
  %v34 = vld [vmem:[%s0 + $0x88] sm:$0xff]
  %v35 = vld [vmem:[%s0 + $0x90] sm:$0xff]
  %v36 = vld [vmem:[%s0 + $0x98] sm:$0xff]
  %v37 = vld [vmem:[%s0 + $0xa0] sm:$0xff]
  %v38 = vld [vmem:[%s0 + $0xa8] sm:$0xff]
  %v39 = vld [vmem:[%s0 + $0xb0] sm:$0xff]
  %v40 = vld [vmem:[%s0 + $0xb8] sm:$0xff]
  %v41 = vld [vmem:[%s0 + $0xc0] sm:$0xff]
  %v42 = vld [vmem:[%s0 + $0xc8] sm:$0xff]
  %v43 = vld [vmem:[%s0 + $0xd0] sm:$0xff]
  %v44 = vld [vmem:[%s0 + $0xd8] sm:$0xff]
  %v45 = vld [vmem:[%s0 + $0xe0] sm:$0xff]
  %v46 = vld [vmem:[%s0 + $0xe8] sm:$0xff]
  %v47 = vld [vmem:[%s0 + $0xf0] sm:$0xff]
  %v48 = vld [vmem:[%s0 + $0xf8] sm:$0xff]
  %v49 = vld [vmem:[%s0 + $0x100] sm:$0xff]
  %v50 = vld [vmem:[%s0 + $0x108] sm:$0xff]
  %v51 = vld [vmem:[%s0 + $0x110] sm:$0xff]
  %v52 = vld [vmem:[%s0 + $0x118] sm:$0xff]
  %v53 = vld [vmem:[%s0 + $0x120] sm:$0xff]
  %v54 = vld [vmem:[%s0 + $0x128] sm:$0xff]
  %v55 = vld [vmem:[%s0 + $0x130] sm:$0xff]
  %v56 = vld [vmem:[%s0 + $0x138] sm:$0xff]
  %v57 = vld [vmem:[%s0 + $0x140] sm:$0xff]
  %v58 = vld [vmem:[%s0 + $0x148] sm:$0xff]
  %v59 = vld [vmem:[%s0 + $0x150] sm:$0xff]
  %v60 = vld [vmem:[%s0 + $0x158] sm:$0xff]
  %v61 = vld [vmem:[%s0 + $0x160] sm:$0xff]
  %v62 = vld [vmem:[%s0 + $0x168] sm:$0xff]
  %v63 = vld [vmem:[%s0 + $0x170] sm:$0xff]
  %v64 = vld [vmem:[%s0 + $0x178] sm:$0xff]
  %v65 = vld [vmem:[%s0 + $0x180] sm:$0xff]
  %v66 = vld [vmem:[%s0 + $0x188] sm:$0xff]
  %v67 = vld [vmem:[%s0 + $0x190] sm:$0xff]
  %v68 = vld [vmem:[%s0 + $0x198] sm:$0xff]
  %v69 = vld [vmem:[%s0 + $0x1a0] sm:$0xff]
  %v70 = vld [vmem:[%s0 + $0x1a8] sm:$0xff]
  %v71 = vld [vmem:[%s0 + $0x1b0] sm:$0xff]
  %v72 = vld [vmem:[%s0 + $0x1b8] sm:$0xff]
  %v73 = vld [vmem:[%s0 + $0x1c0] sm:$0xff]
  %v74 = vld [vmem:[%s0 + $0x1c8] sm:$0xff]
  %v75 = vld [vmem:[%s0 + $0x1d0] sm:$0xff]
  %v76 = vld [vmem:[%s0 + $0x1d8] sm:$0xff]
  %v77 = vld [vmem:[%s0 + $0x1e0] sm:$0xff]
  %v78 = vld [vmem:[%s0 + $0x1e8] sm:$0xff]
  %v79 = vld [vmem:[%s0 + $0x1f0] sm:$0xff]
  %v80 = vld [vmem:[%s0 + $0x1f8] sm:$0xff]
  %v81 = vld [vmem:[%s0 + $0x200] sm:$0xff]
  %v82 = vld [vmem:[%s0 + $0x208] sm:$0xff]
  %v83 = vld [vmem:[%s0 + $0x210] sm:$0xff]
  %v84 = vld [vmem:[%s0 + $0x218] sm:$0xff]
  %v85 = vld [vmem:[%s0 + $0x220] sm:$0xff]
  %v86 = vld [vmem:[%s0 + $0x228] sm:$0xff]
  %v87 = vld [vmem:[%s0 + $0x230] sm:$0xff]
  %v88 = vld [vmem:[%s0 + $0x238] sm:$0xff]
  %v89 = vld [vmem:[%s0 + $0x240] sm:$0xff]
  %v90 = vld [vmem:[%s0 + $0x248] sm:$0xff]
  %v91 = vld [vmem:[%s0 + $0x250] sm:$0xff]
  %v92 = vld [vmem:[%s0 + $0x258] sm:$0xff]
  %v93 = vld [vmem:[%s0 + $0x260] sm:$0xff]
  %v94 = vld [vmem:[%s0 + $0x268] sm:$0xff]
  %v95 = vld [vmem:[%s0 + $0x270] sm:$0xff]
  %v96 = vld [vmem:[%s0 + $0x278] sm:$0xff]
  %v97 = vld [vmem:[%s0 + $0x280] sm:$0xff]
  %v98 = vld [vmem:[%s0 + $0x288] sm:$0xff]
  %v99 = vld [vmem:[%s0 + $0x290] sm:$0xff]
  %v100 = vld [vmem:[%s0 + $0x298] sm:$0xff]
  %v101 = vld [vmem:[%s0 + $0x2a0] sm:$0xff]
  %v102 = vld [vmem:[%s0 + $0x2a8] sm:$0xff]
  %v103 = vld [vmem:[%s0 + $0x2b0] sm:$0xff]
  %v104 = vld [vmem:[%s0 + $0x2b8] sm:$0xff]
  %v105 = vld [vmem:[%s0 + $0x2c0] sm:$0xff]
  %v106 = vld [vmem:[%s0 + $0x2c8] sm:$0xff]
  %v107 = vld [vmem:[%s0 + $0x2d0] sm:$0xff]
  %v108 = vld [vmem:[%s0 + $0x2d8] sm:$0xff]
  %v109 = vld [vmem:[%s0 + $0x2e0] sm:$0xff]
  %v110 = vld [vmem:[%s0 + $0x2e8] sm:$0xff]
  %v111 = vld [vmem:[%s0 + $0x2f0] sm:$0xff]
  %v112 = vld [vmem:[%s0 + $0x2f8] sm:$0xff]
  %v113 = vld [vmem:[%s0 + $0x300] sm:$0xff]
  %v114 = vld [vmem:[%s0 + $0x308] sm:$0xff]
  %v115 = vld [vmem:[%s0 + $0x310] sm:$0xff]
  %v116 = vld [vmem:[%s0 + $0x318] sm:$0xff]
  %v117 = vld [vmem:[%s0 + $0x320] sm:$0xff]
  %v118 = vld [vmem:[%s0 + $0x328] sm:$0xff]
  %v119 = vld [vmem:[%s0 + $0x330] sm:$0xff]
  %v120 = vld [vmem:[%s0 + $0x338] sm:$0xff]
  %v121 = vld [vmem:[%s0 + $0x340] sm:$0xff]
  %v122 = vld [vmem:[%s0 + $0x348] sm:$0xff]
  %v123 = vld [vmem:[%s0 + $0x350] sm:$0xff]
  %v124 = vld [vmem:[%s0 + $0x358] sm:$0xff]
  %v125 = vld [vmem:[%s0 + $0x360] sm:$0xff]
  %v126 = vld [vmem:[%s0 + $0x368] sm:$0xff]
  %v127 = vld [vmem:[%s0 + $0x370] sm:$0xff]
  %v128 = vld [vmem:[%s0 + $0x378] sm:$0xff]
  %v129 = vld [vmem:[%s0 + $0x380] sm:$0xff]
  %v130 = vld [vmem:[%s0 + $0x388] sm:$0xff]
  %v131 = vld [vmem:[%s0 + $0x390] sm:$0xff]
  %v132 = vld [vmem:[%s0 + $0x398] sm:$0xff]
  %v133 = vld [vmem:[%s0 + $0x3a0] sm:$0xff]
  %v134 = vld [vmem:[%s0 + $0x3a8] sm:$0xff]
  %v135 = vld [vmem:[%s0 + $0x3b0] sm:$0xff]
  %v136 = vld [vmem:[%s0 + $0x3b8] sm:$0xff]
  %v137 = vld [vmem:[%s0 + $0x3c0] sm:$0xff]
  %v138 = vld [vmem:[%s0 + $0x3c8] sm:$0xff]
  %v139 = vld [vmem:[%s0 + $0x3d0] sm:$0xff]
  %v140 = vld [vmem:[%s0 + $0x3d8] sm:$0xff]
  %v141 = vld [vmem:[%s0 + $0x3e0] sm:$0xff]
  %v142 = vld [vmem:[%s0 + $0x3e8] sm:$0xff]
  %v143 = vld [vmem:[%s0 + $0x3f0] sm:$0xff]
  %v144 = vld [vmem:[%s0 + $0x3f8] sm:$0xff]
  %v145 = vld [vmem:[%s1] sm:$0xf]
  %v146 = vld [vmem:[%s1 + $0x4] sm:$0xf]
  %v147 = vld [vmem:[%s1 + $0x8] sm:$0xf]
  %v148 = vld [vmem:[%s1 + $0xc] sm:$0xf]
  %v149 = vld [vmem:[%s1 + $0x10] sm:$0xf]
  %v150 = vld [vmem:[%s1 + $0x14] sm:$0xf]
  %v151 = vld [vmem:[%s1 + $0x18] sm:$0xf]
  %v152 = vld [vmem:[%s1 + $0x1c] sm:$0xf]
  %v153 = vld [vmem:[%s1 + $0x20] sm:$0xf]
  %v154 = vld [vmem:[%s1 + $0x24] sm:$0xf]
  %v155 = vld [vmem:[%s1 + $0x28] sm:$0xf]
  %v156 = vld [vmem:[%s1 + $0x2c] sm:$0xf]
  %v157 = vld [vmem:[%s1 + $0x30] sm:$0xf]
  %v158 = vld [vmem:[%s1 + $0x34] sm:$0xf]
  %v159 = vld [vmem:[%s1 + $0x38] sm:$0xf]
  %v160 = vld [vmem:[%s1 + $0x3c] sm:$0xf]
  %v161 = vld [vmem:[%s1 + $0x40] sm:$0xf]
  %v162 = vld [vmem:[%s1 + $0x44] sm:$0xf]
  %v163 = vld [vmem:[%s1 + $0x48] sm:$0xf]
  %v164 = vld [vmem:[%s1 + $0x4c] sm:$0xf]
  %v165 = vld [vmem:[%s1 + $0x50] sm:$0xf]
  %v166 = vld [vmem:[%s1 + $0x54] sm:$0xf]
  %v167 = vld [vmem:[%s1 + $0x58] sm:$0xf]
  %v168 = vld [vmem:[%s1 + $0x5c] sm:$0xf]
  %v169 = vld [vmem:[%s1 + $0x60] sm:$0xf]
  %v170 = vld [vmem:[%s1 + $0x64] sm:$0xf]
  %v171 = vld [vmem:[%s1 + $0x68] sm:$0xf]
  %v172 = vld [vmem:[%s1 + $0x6c] sm:$0xf]
  %v173 = vld [vmem:[%s1 + $0x70] sm:$0xf]
  %v174 = vld [vmem:[%s1 + $0x74] sm:$0xf]
  %v175 = vld [vmem:[%s1 + $0x78] sm:$0xf]
  %v176 = vld [vmem:[%s1 + $0x7c] sm:$0xf]
  %v177 = vld [vmem:[%s2] sm:$0x1]
  %v179 = vperm.slane %v177, 0
  %v309 = vunpack.c.l.b16 %v17
  %v310 = vunpack.c.h.b16 %v17
  %v311 = vunpack.c.l.b16 %v18
  %v312 = vunpack.c.h.b16 %v18
  %v313 = vunpack.c.l.b16 %v19
  %v314 = vunpack.c.h.b16 %v19
  %v315 = vunpack.c.l.b16 %v20
  %v316 = vunpack.c.h.b16 %v20
  %v317 = vunpack.c.l.b16 %v21
  %v318 = vunpack.c.h.b16 %v21
  %v319 = vunpack.c.l.b16 %v22
  %v320 = vunpack.c.h.b16 %v22
  %v321 = vunpack.c.l.b16 %v23
  %v322 = vunpack.c.h.b16 %v23
  %v323 = vunpack.c.l.b16 %v24
  %v324 = vunpack.c.h.b16 %v24
  %v325 = vunpack.c.l.b16 %v25
  %v326 = vunpack.c.h.b16 %v25
  %v327 = vunpack.c.l.b16 %v26
  %v328 = vunpack.c.h.b16 %v26
  %v329 = vunpack.c.l.b16 %v27
  %v330 = vunpack.c.h.b16 %v27
  %v331 = vunpack.c.l.b16 %v28
  %v332 = vunpack.c.h.b16 %v28
  %v333 = vunpack.c.l.b16 %v29
  %v334 = vunpack.c.h.b16 %v29
  %v335 = vunpack.c.l.b16 %v30
  %v336 = vunpack.c.h.b16 %v30
  %v337 = vunpack.c.l.b16 %v31
  %v338 = vunpack.c.h.b16 %v31
  %v339 = vunpack.c.l.b16 %v32
  %v340 = vunpack.c.h.b16 %v32
  %v341 = vunpack.c.l.b16 %v33
  %v342 = vunpack.c.h.b16 %v33
  %v343 = vunpack.c.l.b16 %v34
  %v344 = vunpack.c.h.b16 %v34
  %v345 = vunpack.c.l.b16 %v35
  %v346 = vunpack.c.h.b16 %v35
  %v347 = vunpack.c.l.b16 %v36
  %v348 = vunpack.c.h.b16 %v36
  %v349 = vunpack.c.l.b16 %v37
  %v350 = vunpack.c.h.b16 %v37
  %v351 = vunpack.c.l.b16 %v38
  %v352 = vunpack.c.h.b16 %v38
  %v353 = vunpack.c.l.b16 %v39
  %v354 = vunpack.c.h.b16 %v39
  %v355 = vunpack.c.l.b16 %v40
  %v356 = vunpack.c.h.b16 %v40
  %v357 = vunpack.c.l.b16 %v41
  %v358 = vunpack.c.h.b16 %v41
  %v359 = vunpack.c.l.b16 %v42
  %v360 = vunpack.c.h.b16 %v42
  %v361 = vunpack.c.l.b16 %v43
  %v362 = vunpack.c.h.b16 %v43
  %v363 = vunpack.c.l.b16 %v44
  %v364 = vunpack.c.h.b16 %v44
  %v365 = vunpack.c.l.b16 %v45
  %v366 = vunpack.c.h.b16 %v45
  %v367 = vunpack.c.l.b16 %v46
  %v368 = vunpack.c.h.b16 %v46
  %v369 = vunpack.c.l.b16 %v47
  %v370 = vunpack.c.h.b16 %v47
  %v371 = vunpack.c.l.b16 %v48
  %v372 = vunpack.c.h.b16 %v48
  %v373 = vunpack.c.l.b16 %v49
  %v374 = vunpack.c.h.b16 %v49
  %v375 = vunpack.c.l.b16 %v50
  %v376 = vunpack.c.h.b16 %v50
  %v377 = vunpack.c.l.b16 %v51
  %v378 = vunpack.c.h.b16 %v51
  %v379 = vunpack.c.l.b16 %v52
  %v380 = vunpack.c.h.b16 %v52
  %v381 = vunpack.c.l.b16 %v53
  %v382 = vunpack.c.h.b16 %v53
  %v383 = vunpack.c.l.b16 %v54
  %v384 = vunpack.c.h.b16 %v54
  %v385 = vunpack.c.l.b16 %v55
  %v386 = vunpack.c.h.b16 %v55
  %v387 = vunpack.c.l.b16 %v56
  %v388 = vunpack.c.h.b16 %v56
  %v389 = vunpack.c.l.b16 %v57
  %v390 = vunpack.c.h.b16 %v57
  %v391 = vunpack.c.l.b16 %v58
  %v392 = vunpack.c.h.b16 %v58
  %v393 = vunpack.c.l.b16 %v59
  %v394 = vunpack.c.h.b16 %v59
  %v395 = vunpack.c.l.b16 %v60
  %v396 = vunpack.c.h.b16 %v60
  %v397 = vunpack.c.l.b16 %v61
  %v398 = vunpack.c.h.b16 %v61
  %v399 = vunpack.c.l.b16 %v62
  %v400 = vunpack.c.h.b16 %v62
  %v401 = vunpack.c.l.b16 %v63
  %v402 = vunpack.c.h.b16 %v63
  %v403 = vunpack.c.l.b16 %v64
  %v404 = vunpack.c.h.b16 %v64
  %v405 = vunpack.c.l.b16 %v65
  %v406 = vunpack.c.h.b16 %v65
  %v407 = vunpack.c.l.b16 %v66
  %v408 = vunpack.c.h.b16 %v66
  %v409 = vunpack.c.l.b16 %v67
  %v410 = vunpack.c.h.b16 %v67
  %v411 = vunpack.c.l.b16 %v68
  %v412 = vunpack.c.h.b16 %v68
  %v413 = vunpack.c.l.b16 %v69
  %v414 = vunpack.c.h.b16 %v69
  %v415 = vunpack.c.l.b16 %v70
  %v416 = vunpack.c.h.b16 %v70
  %v417 = vunpack.c.l.b16 %v71
  %v418 = vunpack.c.h.b16 %v71
  %v419 = vunpack.c.l.b16 %v72
  %v420 = vunpack.c.h.b16 %v72
  %v421 = vunpack.c.l.b16 %v73
  %v422 = vunpack.c.h.b16 %v73
  %v423 = vunpack.c.l.b16 %v74
  %v424 = vunpack.c.h.b16 %v74
  %v425 = vunpack.c.l.b16 %v75
  %v426 = vunpack.c.h.b16 %v75
  %v427 = vunpack.c.l.b16 %v76
  %v428 = vunpack.c.h.b16 %v76
  %v429 = vunpack.c.l.b16 %v77
  %v430 = vunpack.c.h.b16 %v77
  %v431 = vunpack.c.l.b16 %v78
  %v432 = vunpack.c.h.b16 %v78
  %v433 = vunpack.c.l.b16 %v79
  %v434 = vunpack.c.h.b16 %v79
  %v435 = vunpack.c.l.b16 %v80
  %v436 = vunpack.c.h.b16 %v80
  %v437 = vunpack.c.l.b16 %v81
  %v438 = vunpack.c.h.b16 %v81
  %v439 = vunpack.c.l.b16 %v82
  %v440 = vunpack.c.h.b16 %v82
  %v441 = vunpack.c.l.b16 %v83
  %v442 = vunpack.c.h.b16 %v83
  %v443 = vunpack.c.l.b16 %v84
  %v444 = vunpack.c.h.b16 %v84
  %v445 = vunpack.c.l.b16 %v85
  %v446 = vunpack.c.h.b16 %v85
  %v447 = vunpack.c.l.b16 %v86
  %v448 = vunpack.c.h.b16 %v86
  %v449 = vunpack.c.l.b16 %v87
  %v450 = vunpack.c.h.b16 %v87
  %v451 = vunpack.c.l.b16 %v88
  %v452 = vunpack.c.h.b16 %v88
  %v453 = vunpack.c.l.b16 %v89
  %v454 = vunpack.c.h.b16 %v89
  %v455 = vunpack.c.l.b16 %v90
  %v456 = vunpack.c.h.b16 %v90
  %v457 = vunpack.c.l.b16 %v91
  %v458 = vunpack.c.h.b16 %v91
  %v459 = vunpack.c.l.b16 %v92
  %v460 = vunpack.c.h.b16 %v92
  %v461 = vunpack.c.l.b16 %v93
  %v462 = vunpack.c.h.b16 %v93
  %v463 = vunpack.c.l.b16 %v94
  %v464 = vunpack.c.h.b16 %v94
  %v465 = vunpack.c.l.b16 %v95
  %v466 = vunpack.c.h.b16 %v95
  %v467 = vunpack.c.l.b16 %v96
  %v468 = vunpack.c.h.b16 %v96
  %v469 = vunpack.c.l.b16 %v97
  %v470 = vunpack.c.h.b16 %v97
  %v471 = vunpack.c.l.b16 %v98
  %v472 = vunpack.c.h.b16 %v98
  %v473 = vunpack.c.l.b16 %v99
  %v474 = vunpack.c.h.b16 %v99
  %v475 = vunpack.c.l.b16 %v100
  %v476 = vunpack.c.h.b16 %v100
  %v477 = vunpack.c.l.b16 %v101
  %v478 = vunpack.c.h.b16 %v101
  %v479 = vunpack.c.l.b16 %v102
  %v480 = vunpack.c.h.b16 %v102
  %v481 = vunpack.c.l.b16 %v103
  %v482 = vunpack.c.h.b16 %v103
  %v483 = vunpack.c.l.b16 %v104
  %v484 = vunpack.c.h.b16 %v104
  %v485 = vunpack.c.l.b16 %v105
  %v486 = vunpack.c.h.b16 %v105
  %v487 = vunpack.c.l.b16 %v106
  %v488 = vunpack.c.h.b16 %v106
  %v489 = vunpack.c.l.b16 %v107
  %v490 = vunpack.c.h.b16 %v107
  %v491 = vunpack.c.l.b16 %v108
  %v492 = vunpack.c.h.b16 %v108
  %v493 = vunpack.c.l.b16 %v109
  %v494 = vunpack.c.h.b16 %v109
  %v495 = vunpack.c.l.b16 %v110
  %v496 = vunpack.c.h.b16 %v110
  %v497 = vunpack.c.l.b16 %v111
  %v498 = vunpack.c.h.b16 %v111
  %v499 = vunpack.c.l.b16 %v112
  %v500 = vunpack.c.h.b16 %v112
  %v501 = vunpack.c.l.b16 %v113
  %v502 = vunpack.c.h.b16 %v113
  %v503 = vunpack.c.l.b16 %v114
  %v504 = vunpack.c.h.b16 %v114
  %v505 = vunpack.c.l.b16 %v115
  %v506 = vunpack.c.h.b16 %v115
  %v507 = vunpack.c.l.b16 %v116
  %v508 = vunpack.c.h.b16 %v116
  %v509 = vunpack.c.l.b16 %v117
  %v510 = vunpack.c.h.b16 %v117
  %v511 = vunpack.c.l.b16 %v118
  %v512 = vunpack.c.h.b16 %v118
  %v513 = vunpack.c.l.b16 %v119
  %v514 = vunpack.c.h.b16 %v119
  %v515 = vunpack.c.l.b16 %v120
  %v516 = vunpack.c.h.b16 %v120
  %v517 = vunpack.c.l.b16 %v121
  %v518 = vunpack.c.h.b16 %v121
  %v519 = vunpack.c.l.b16 %v122
  %v520 = vunpack.c.h.b16 %v122
  %v521 = vunpack.c.l.b16 %v123
  %v522 = vunpack.c.h.b16 %v123
  %v523 = vunpack.c.l.b16 %v124
  %v524 = vunpack.c.h.b16 %v124
  %v525 = vunpack.c.l.b16 %v125
  %v526 = vunpack.c.h.b16 %v125
  %v527 = vunpack.c.l.b16 %v126
  %v528 = vunpack.c.h.b16 %v126
  %v529 = vunpack.c.l.b16 %v127
  %v530 = vunpack.c.h.b16 %v127
  %v531 = vunpack.c.l.b16 %v128
  %v532 = vunpack.c.h.b16 %v128
  %v533 = vunpack.c.l.b16 %v129
  %v534 = vunpack.c.h.b16 %v129
  %v535 = vunpack.c.l.b16 %v130
  %v536 = vunpack.c.h.b16 %v130
  %v537 = vunpack.c.l.b16 %v131
  %v538 = vunpack.c.h.b16 %v131
  %v539 = vunpack.c.l.b16 %v132
  %v540 = vunpack.c.h.b16 %v132
  %v541 = vunpack.c.l.b16 %v133
  %v542 = vunpack.c.h.b16 %v133
  %v543 = vunpack.c.l.b16 %v134
  %v544 = vunpack.c.h.b16 %v134
  %v545 = vunpack.c.l.b16 %v135
  %v546 = vunpack.c.h.b16 %v135
  %v547 = vunpack.c.l.b16 %v136
  %v548 = vunpack.c.h.b16 %v136
  %v549 = vunpack.c.l.b16 %v137
  %v550 = vunpack.c.h.b16 %v137
  %v551 = vunpack.c.l.b16 %v138
  %v552 = vunpack.c.h.b16 %v138
  %v553 = vunpack.c.l.b16 %v139
  %v554 = vunpack.c.h.b16 %v139
  %v555 = vunpack.c.l.b16 %v140
  %v556 = vunpack.c.h.b16 %v140
  %v557 = vunpack.c.l.b16 %v141
  %v558 = vunpack.c.h.b16 %v141
  %v559 = vunpack.c.l.b16 %v142
  %v560 = vunpack.c.h.b16 %v142
  %v561 = vunpack.c.l.b16 %v143
  %v562 = vunpack.c.h.b16 %v143
  %v563 = vunpack.c.l.b16 %v144
  %v564 = vunpack.c.h.b16 %v144
  %v565 = vpack.c.b16 %v311, %v309
  %v566 = vpack.c.b16 %v312, %v310
  %v567 = vpack.c.b16 %v315, %v313
  %v568 = vpack.c.b16 %v316, %v314
  %v569 = vpack.c.b16 %v319, %v317
  %v570 = vpack.c.b16 %v320, %v318
  %v571 = vpack.c.b16 %v323, %v321
  %v572 = vpack.c.b16 %v324, %v322
  %v573 = vpack.c.b16 %v327, %v325
  %v574 = vpack.c.b16 %v328, %v326
  %v575 = vpack.c.b16 %v331, %v329
  %v576 = vpack.c.b16 %v332, %v330
  %v577 = vpack.c.b16 %v335, %v333
  %v578 = vpack.c.b16 %v336, %v334
  %v579 = vpack.c.b16 %v339, %v337
  %v580 = vpack.c.b16 %v340, %v338
  %v581 = vpack.c.b16 %v343, %v341
  %v582 = vpack.c.b16 %v344, %v342
  %v583 = vpack.c.b16 %v347, %v345
  %v584 = vpack.c.b16 %v348, %v346
  %v585 = vpack.c.b16 %v351, %v349
  %v586 = vpack.c.b16 %v352, %v350
  %v587 = vpack.c.b16 %v355, %v353
  %v588 = vpack.c.b16 %v356, %v354
  %v589 = vpack.c.b16 %v359, %v357
  %v590 = vpack.c.b16 %v360, %v358
  %v591 = vpack.c.b16 %v363, %v361
  %v592 = vpack.c.b16 %v364, %v362
  %v593 = vpack.c.b16 %v367, %v365
  %v594 = vpack.c.b16 %v368, %v366
  %v595 = vpack.c.b16 %v371, %v369
  %v596 = vpack.c.b16 %v372, %v370
  %v597 = vpack.c.b16 %v375, %v373
  %v598 = vpack.c.b16 %v376, %v374
  %v599 = vpack.c.b16 %v379, %v377
  %v600 = vpack.c.b16 %v380, %v378
  %v601 = vpack.c.b16 %v383, %v381
  %v602 = vpack.c.b16 %v384, %v382
  %v603 = vpack.c.b16 %v387, %v385
  %v604 = vpack.c.b16 %v388, %v386
  %v605 = vpack.c.b16 %v391, %v389
  %v606 = vpack.c.b16 %v392, %v390
  %v607 = vpack.c.b16 %v395, %v393
  %v608 = vpack.c.b16 %v396, %v394
  %v609 = vpack.c.b16 %v399, %v397
  %v610 = vpack.c.b16 %v400, %v398
  %v611 = vpack.c.b16 %v403, %v401
  %v612 = vpack.c.b16 %v404, %v402
  %v613 = vpack.c.b16 %v407, %v405
  %v614 = vpack.c.b16 %v408, %v406
  %v615 = vpack.c.b16 %v411, %v409
  %v616 = vpack.c.b16 %v412, %v410
  %v617 = vpack.c.b16 %v415, %v413
  %v618 = vpack.c.b16 %v416, %v414
  %v619 = vpack.c.b16 %v419, %v417
  %v620 = vpack.c.b16 %v420, %v418
  %v621 = vpack.c.b16 %v423, %v421
  %v622 = vpack.c.b16 %v424, %v422
  %v623 = vpack.c.b16 %v427, %v425
  %v624 = vpack.c.b16 %v428, %v426
  %v625 = vpack.c.b16 %v431, %v429
  %v626 = vpack.c.b16 %v432, %v430
  %v627 = vpack.c.b16 %v435, %v433
  %v628 = vpack.c.b16 %v436, %v434
  %v629 = vpack.c.b16 %v439, %v437
  %v630 = vpack.c.b16 %v440, %v438
  %v631 = vpack.c.b16 %v443, %v441
  %v632 = vpack.c.b16 %v444, %v442
  %v633 = vpack.c.b16 %v447, %v445
  %v634 = vpack.c.b16 %v448, %v446
  %v635 = vpack.c.b16 %v451, %v449
  %v636 = vpack.c.b16 %v452, %v450
  %v637 = vpack.c.b16 %v455, %v453
  %v638 = vpack.c.b16 %v456, %v454
  %v639 = vpack.c.b16 %v459, %v457
  %v640 = vpack.c.b16 %v460, %v458
  %v641 = vpack.c.b16 %v463, %v461
  %v642 = vpack.c.b16 %v464, %v462
  %v643 = vpack.c.b16 %v467, %v465
  %v644 = vpack.c.b16 %v468, %v466
  %v645 = vpack.c.b16 %v471, %v469
  %v646 = vpack.c.b16 %v472, %v470
  %v647 = vpack.c.b16 %v475, %v473
  %v648 = vpack.c.b16 %v476, %v474
  %v649 = vpack.c.b16 %v479, %v477
  %v650 = vpack.c.b16 %v480, %v478
  %v651 = vpack.c.b16 %v483, %v481
  %v652 = vpack.c.b16 %v484, %v482
  %v653 = vpack.c.b16 %v487, %v485
  %v654 = vpack.c.b16 %v488, %v486
  %v655 = vpack.c.b16 %v491, %v489
  %v656 = vpack.c.b16 %v492, %v490
  %v657 = vpack.c.b16 %v495, %v493
  %v658 = vpack.c.b16 %v496, %v494
  %v659 = vpack.c.b16 %v499, %v497
  %v660 = vpack.c.b16 %v500, %v498
  %v661 = vpack.c.b16 %v503, %v501
  %v662 = vpack.c.b16 %v504, %v502
  %v663 = vpack.c.b16 %v507, %v505
  %v664 = vpack.c.b16 %v508, %v506
  %v665 = vpack.c.b16 %v511, %v509
  %v666 = vpack.c.b16 %v512, %v510
  %v667 = vpack.c.b16 %v515, %v513
  %v668 = vpack.c.b16 %v516, %v514
  %v669 = vpack.c.b16 %v519, %v517
  %v670 = vpack.c.b16 %v520, %v518
  %v671 = vpack.c.b16 %v523, %v521
  %v672 = vpack.c.b16 %v524, %v522
  %v673 = vpack.c.b16 %v527, %v525
  %v674 = vpack.c.b16 %v528, %v526
  %v675 = vpack.c.b16 %v531, %v529
  %v676 = vpack.c.b16 %v532, %v530
  %v677 = vpack.c.b16 %v535, %v533
  %v678 = vpack.c.b16 %v536, %v534
  %v679 = vpack.c.b16 %v539, %v537
  %v680 = vpack.c.b16 %v540, %v538
  %v681 = vpack.c.b16 %v543, %v541
  %v682 = vpack.c.b16 %v544, %v542
  %v683 = vpack.c.b16 %v547, %v545
  %v684 = vpack.c.b16 %v548, %v546
  %v685 = vpack.c.b16 %v551, %v549
  %v686 = vpack.c.b16 %v552, %v550
  %v687 = vpack.c.b16 %v555, %v553
  %v688 = vpack.c.b16 %v556, %v554
  %v689 = vpack.c.b16 %v559, %v557
  %v690 = vpack.c.b16 %v560, %v558
  %v691 = vpack.c.b16 %v563, %v561
  %v692 = vpack.c.b16 %v564, %v562
  %v853 = vunpack.c.l.b16 %v145
  %v854 = vunpack.c.l.b16 %v146
  %v855 = vunpack.c.l.b16 %v147
  %v856 = vunpack.c.l.b16 %v148
  %v857 = vunpack.c.l.b16 %v149
  %v858 = vunpack.c.l.b16 %v150
  %v859 = vunpack.c.l.b16 %v151
  %v860 = vunpack.c.l.b16 %v152
  %v861 = vunpack.c.l.b16 %v153
  %v862 = vunpack.c.l.b16 %v154
  %v863 = vunpack.c.l.b16 %v155
  %v864 = vunpack.c.l.b16 %v156
  %v865 = vunpack.c.l.b16 %v157
  %v866 = vunpack.c.l.b16 %v158
  %v867 = vunpack.c.l.b16 %v159
  %v868 = vunpack.c.l.b16 %v160
  %v869 = vunpack.c.l.b16 %v161
  %v870 = vunpack.c.l.b16 %v162
  %v871 = vunpack.c.l.b16 %v163
  %v872 = vunpack.c.l.b16 %v164
  %v873 = vunpack.c.l.b16 %v165
  %v874 = vunpack.c.l.b16 %v166
  %v875 = vunpack.c.l.b16 %v167
  %v876 = vunpack.c.l.b16 %v168
  %v877 = vunpack.c.l.b16 %v169
  %v878 = vunpack.c.l.b16 %v170
  %v879 = vunpack.c.l.b16 %v171
  %v880 = vunpack.c.l.b16 %v172
  %v881 = vunpack.c.l.b16 %v173
  %v882 = vunpack.c.l.b16 %v174
  %v883 = vunpack.c.l.b16 %v175
  %v884 = vunpack.c.l.b16 %v176
  %v885 = vpack.c.b16 %v854, %v853
  %v886 = vpack.c.b16 %v856, %v855
  %v887 = vpack.c.b16 %v858, %v857
  %v888 = vpack.c.b16 %v860, %v859
  %v889 = vpack.c.b16 %v862, %v861
  %v890 = vpack.c.b16 %v864, %v863
  %v891 = vpack.c.b16 %v866, %v865
  %v892 = vpack.c.b16 %v868, %v867
  %v893 = vpack.c.b16 %v870, %v869
  %v894 = vpack.c.b16 %v872, %v871
  %v895 = vpack.c.b16 %v874, %v873
  %v896 = vpack.c.b16 %v876, %v875
  %v897 = vpack.c.b16 %v878, %v877
  %v898 = vpack.c.b16 %v880, %v879
  %v899 = vpack.c.b16 %v882, %v881
  %v900 = vpack.c.b16 %v884, %v883
  %917 = vmatpush.bf16.msra.mxu0 %v892
  %918 = vmatpush.bf16.msra.mxu0 %v891
  %919 = vmatpush.bf16.msra.mxu0 %v890
  %920 = vmatpush.bf16.msra.mxu0 %v889
  %921 = vmatpush.bf16.msra.mxu0 %v888
  %922 = vmatpush.bf16.msra.mxu0 %v887
  %923 = vmatpush.bf16.msra.mxu0 %v886
  %924 = vmatpush.bf16.msra.mxu0 %v885
  %925 = vmatmul.bf16.gmra.mxu0 %v565
  %v926 = vpop.f32.mrf.mxu0
  %v927 = vadd.f32 %v179, %v926
  %v928 = vpop.f32.mrf.mxu0
  %v929 = vadd.f32 %v179, %v928
  %930 = vmatmul.bf16.gmra.mxu0 %v567
  %v931 = vpop.f32.mrf.mxu0
  %v932 = vadd.f32 %v179, %v931
  %v933 = vpop.f32.mrf.mxu0
  %v934 = vadd.f32 %v179, %v933
  %935 = vmatmul.bf16.gmra.mxu0 %v569
  %v936 = vpop.f32.mrf.mxu0
  %v937 = vadd.f32 %v179, %v936
  %v938 = vpop.f32.mrf.mxu0
  %v939 = vadd.f32 %v179, %v938
  %940 = vmatmul.bf16.gmra.mxu0 %v571
  %v941 = vpop.f32.mrf.mxu0
  %v942 = vadd.f32 %v179, %v941
  %v943 = vpop.f32.mrf.mxu0
  %v944 = vadd.f32 %v179, %v943
  %945 = vmatmul.bf16.gmra.mxu0 %v573
  %v946 = vpop.f32.mrf.mxu0
  %v947 = vadd.f32 %v179, %v946
  %v948 = vpop.f32.mrf.mxu0
  %v949 = vadd.f32 %v179, %v948
  %950 = vmatmul.bf16.gmra.mxu0 %v575
  %v951 = vpop.f32.mrf.mxu0
  %v952 = vadd.f32 %v179, %v951
  %v953 = vpop.f32.mrf.mxu0
  %v954 = vadd.f32 %v179, %v953
  %955 = vmatmul.bf16.gmra.mxu0 %v577
  %v956 = vpop.f32.mrf.mxu0
  %v957 = vadd.f32 %v179, %v956
  %v958 = vpop.f32.mrf.mxu0
  %v959 = vadd.f32 %v179, %v958
  %960 = vmatmul.bf16.gmra.mxu0 %v579
  %v961 = vpop.f32.mrf.mxu0
  %v962 = vadd.f32 %v179, %v961
  %v963 = vpop.f32.mrf.mxu0
  %v964 = vadd.f32 %v179, %v963
  %965 = vmatmul.bf16.gmra.mxu0 %v581
  %v966 = vpop.f32.mrf.mxu0
  %v967 = vadd.f32 %v179, %v966
  %v968 = vpop.f32.mrf.mxu0
  %v969 = vadd.f32 %v179, %v968
  %970 = vmatmul.bf16.gmra.mxu0 %v583
  %v971 = vpop.f32.mrf.mxu0
  %v972 = vadd.f32 %v179, %v971
  %v973 = vpop.f32.mrf.mxu0
  %v974 = vadd.f32 %v179, %v973
  %975 = vmatmul.bf16.gmra.mxu0 %v585
  %v976 = vpop.f32.mrf.mxu0
  %v977 = vadd.f32 %v179, %v976
  %v978 = vpop.f32.mrf.mxu0
  %v979 = vadd.f32 %v179, %v978
  %980 = vmatmul.bf16.gmra.mxu0 %v587
  %v981 = vpop.f32.mrf.mxu0
  %v982 = vadd.f32 %v179, %v981
  %v983 = vpop.f32.mrf.mxu0
  %v984 = vadd.f32 %v179, %v983
  %985 = vmatmul.bf16.gmra.mxu0 %v589
  %v986 = vpop.f32.mrf.mxu0
  %v987 = vadd.f32 %v179, %v986
  %v988 = vpop.f32.mrf.mxu0
  %v989 = vadd.f32 %v179, %v988
  %990 = vmatmul.bf16.gmra.mxu0 %v591
  %v991 = vpop.f32.mrf.mxu0
  %v992 = vadd.f32 %v179, %v991
  %v993 = vpop.f32.mrf.mxu0
  %v994 = vadd.f32 %v179, %v993
  %995 = vmatmul.bf16.gmra.mxu0 %v593
  %v996 = vpop.f32.mrf.mxu0
  %v997 = vadd.f32 %v179, %v996
  %v998 = vpop.f32.mrf.mxu0
  %v999 = vadd.f32 %v179, %v998
  %1000 = vmatmul.bf16.gmra.mxu0 %v595
  %v1001 = vpop.f32.mrf.mxu0
  %v1002 = vadd.f32 %v179, %v1001
  %v1003 = vpop.f32.mrf.mxu0
  %v1004 = vadd.f32 %v179, %v1003
  %1005 = vmatmul.bf16.gmra.mxu0 %v597
  %v1006 = vpop.f32.mrf.mxu0
  %v1007 = vadd.f32 %v179, %v1006
  %v1008 = vpop.f32.mrf.mxu0
  %v1009 = vadd.f32 %v179, %v1008
  %1010 = vmatmul.bf16.gmra.mxu0 %v599
  %v1011 = vpop.f32.mrf.mxu0
  %v1012 = vadd.f32 %v179, %v1011
  %v1013 = vpop.f32.mrf.mxu0
  %v1014 = vadd.f32 %v179, %v1013
  %1015 = vmatmul.bf16.gmra.mxu0 %v601
  %v1016 = vpop.f32.mrf.mxu0
  %v1017 = vadd.f32 %v179, %v1016
  %v1018 = vpop.f32.mrf.mxu0
  %v1019 = vadd.f32 %v179, %v1018
  %1020 = vmatmul.bf16.gmra.mxu0 %v603
  %v1021 = vpop.f32.mrf.mxu0
  %v1022 = vadd.f32 %v179, %v1021
  %v1023 = vpop.f32.mrf.mxu0
  %v1024 = vadd.f32 %v179, %v1023
  %1025 = vmatmul.bf16.gmra.mxu0 %v605
  %v1026 = vpop.f32.mrf.mxu0
  %v1027 = vadd.f32 %v179, %v1026
  %v1028 = vpop.f32.mrf.mxu0
  %v1029 = vadd.f32 %v179, %v1028
  %1030 = vmatmul.bf16.gmra.mxu0 %v607
  %v1031 = vpop.f32.mrf.mxu0
  %v1032 = vadd.f32 %v179, %v1031
  %v1033 = vpop.f32.mrf.mxu0
  %v1034 = vadd.f32 %v179, %v1033
  %1035 = vmatmul.bf16.gmra.mxu0 %v609
  %v1036 = vpop.f32.mrf.mxu0
  %v1037 = vadd.f32 %v179, %v1036
  %v1038 = vpop.f32.mrf.mxu0
  %v1039 = vadd.f32 %v179, %v1038
  %1040 = vmatmul.bf16.gmra.mxu0 %v611
  %v1041 = vpop.f32.mrf.mxu0
  %v1042 = vadd.f32 %v179, %v1041
  %v1043 = vpop.f32.mrf.mxu0
  %v1044 = vadd.f32 %v179, %v1043
  %1045 = vmatmul.bf16.gmra.mxu0 %v613
  %v1046 = vpop.f32.mrf.mxu0
  %v1047 = vadd.f32 %v179, %v1046
  %v1048 = vpop.f32.mrf.mxu0
  %v1049 = vadd.f32 %v179, %v1048
  %1050 = vmatmul.bf16.gmra.mxu0 %v615
  %v1051 = vpop.f32.mrf.mxu0
  %v1052 = vadd.f32 %v179, %v1051
  %v1053 = vpop.f32.mrf.mxu0
  %v1054 = vadd.f32 %v179, %v1053
  %1055 = vmatmul.bf16.gmra.mxu0 %v617
  %v1056 = vpop.f32.mrf.mxu0
  %v1057 = vadd.f32 %v179, %v1056
  %v1058 = vpop.f32.mrf.mxu0
  %v1059 = vadd.f32 %v179, %v1058
  %1060 = vmatmul.bf16.gmra.mxu0 %v619
  %v1061 = vpop.f32.mrf.mxu0
  %v1062 = vadd.f32 %v179, %v1061
  %v1063 = vpop.f32.mrf.mxu0
  %v1064 = vadd.f32 %v179, %v1063
  %1065 = vmatmul.bf16.gmra.mxu0 %v621
  %v1066 = vpop.f32.mrf.mxu0
  %v1067 = vadd.f32 %v179, %v1066
  %v1068 = vpop.f32.mrf.mxu0
  %v1069 = vadd.f32 %v179, %v1068
  %1070 = vmatmul.bf16.gmra.mxu0 %v623
  %v1071 = vpop.f32.mrf.mxu0
  %v1072 = vadd.f32 %v179, %v1071
  %v1073 = vpop.f32.mrf.mxu0
  %v1074 = vadd.f32 %v179, %v1073
  %1075 = vmatmul.bf16.gmra.mxu0 %v625
  %v1076 = vpop.f32.mrf.mxu0
  %v1077 = vadd.f32 %v179, %v1076
  %v1078 = vpop.f32.mrf.mxu0
  %v1079 = vadd.f32 %v179, %v1078
  %1080 = vmatmul.bf16.gmra.mxu0 %v627
  %v1081 = vpop.f32.mrf.mxu0
  %v1082 = vadd.f32 %v179, %v1081
  %v1083 = vpop.f32.mrf.mxu0
  %v1084 = vadd.f32 %v179, %v1083
  %1085 = vmatmul.bf16.gmra.mxu0 %v629
  %v1086 = vpop.f32.mrf.mxu0
  %v1087 = vadd.f32 %v179, %v1086
  %v1088 = vpop.f32.mrf.mxu0
  %v1089 = vadd.f32 %v179, %v1088
  %1090 = vmatmul.bf16.gmra.mxu0 %v631
  %v1091 = vpop.f32.mrf.mxu0
  %v1092 = vadd.f32 %v179, %v1091
  %v1093 = vpop.f32.mrf.mxu0
  %v1094 = vadd.f32 %v179, %v1093
  %1095 = vmatmul.bf16.gmra.mxu0 %v633
  %v1096 = vpop.f32.mrf.mxu0
  %v1097 = vadd.f32 %v179, %v1096
  %v1098 = vpop.f32.mrf.mxu0
  %v1099 = vadd.f32 %v179, %v1098
  %1100 = vmatmul.bf16.gmra.mxu0 %v635
  %v1101 = vpop.f32.mrf.mxu0
  %v1102 = vadd.f32 %v179, %v1101
  %v1103 = vpop.f32.mrf.mxu0
  %v1104 = vadd.f32 %v179, %v1103
  %1105 = vmatmul.bf16.gmra.mxu0 %v637
  %v1106 = vpop.f32.mrf.mxu0
  %v1107 = vadd.f32 %v179, %v1106
  %v1108 = vpop.f32.mrf.mxu0
  %v1109 = vadd.f32 %v179, %v1108
  %1110 = vmatmul.bf16.gmra.mxu0 %v639
  %v1111 = vpop.f32.mrf.mxu0
  %v1112 = vadd.f32 %v179, %v1111
  %v1113 = vpop.f32.mrf.mxu0
  %v1114 = vadd.f32 %v179, %v1113
  %1115 = vmatmul.bf16.gmra.mxu0 %v641
  %v1116 = vpop.f32.mrf.mxu0
  %v1117 = vadd.f32 %v179, %v1116
  %v1118 = vpop.f32.mrf.mxu0
  %v1119 = vadd.f32 %v179, %v1118
  %1120 = vmatmul.bf16.gmra.mxu0 %v643
  %v1121 = vpop.f32.mrf.mxu0
  %v1122 = vadd.f32 %v179, %v1121
  %v1123 = vpop.f32.mrf.mxu0
  %v1124 = vadd.f32 %v179, %v1123
  %1125 = vmatmul.bf16.gmra.mxu0 %v645
  %v1126 = vpop.f32.mrf.mxu0
  %v1127 = vadd.f32 %v179, %v1126
  %v1128 = vpop.f32.mrf.mxu0
  %v1129 = vadd.f32 %v179, %v1128
  %1130 = vmatmul.bf16.gmra.mxu0 %v647
  %v1131 = vpop.f32.mrf.mxu0
  %v1132 = vadd.f32 %v179, %v1131
  %v1133 = vpop.f32.mrf.mxu0
  %v1134 = vadd.f32 %v179, %v1133
  %1135 = vmatmul.bf16.gmra.mxu0 %v649
  %v1136 = vpop.f32.mrf.mxu0
  %v1137 = vadd.f32 %v179, %v1136
  %v1138 = vpop.f32.mrf.mxu0
  %v1139 = vadd.f32 %v179, %v1138
  %1140 = vmatmul.bf16.gmra.mxu0 %v651
  %v1141 = vpop.f32.mrf.mxu0
  %v1142 = vadd.f32 %v179, %v1141
  %v1143 = vpop.f32.mrf.mxu0
  %v1144 = vadd.f32 %v179, %v1143
  %1145 = vmatmul.bf16.gmra.mxu0 %v653
  %v1146 = vpop.f32.mrf.mxu0
  %v1147 = vadd.f32 %v179, %v1146
  %v1148 = vpop.f32.mrf.mxu0
  %v1149 = vadd.f32 %v179, %v1148
  %1150 = vmatmul.bf16.gmra.mxu0 %v655
  %v1151 = vpop.f32.mrf.mxu0
  %v1152 = vadd.f32 %v179, %v1151
  %v1153 = vpop.f32.mrf.mxu0
  %v1154 = vadd.f32 %v179, %v1153
  %1155 = vmatmul.bf16.gmra.mxu0 %v657
  %v1156 = vpop.f32.mrf.mxu0
  %v1157 = vadd.f32 %v179, %v1156
  %v1158 = vpop.f32.mrf.mxu0
  %v1159 = vadd.f32 %v179, %v1158
  %1160 = vmatmul.bf16.gmra.mxu0 %v659
  %v1161 = vpop.f32.mrf.mxu0
  %v1162 = vadd.f32 %v179, %v1161
  %v1163 = vpop.f32.mrf.mxu0
  %v1164 = vadd.f32 %v179, %v1163
  %1165 = vmatmul.bf16.gmra.mxu0 %v661
  %v1166 = vpop.f32.mrf.mxu0
  %v1167 = vadd.f32 %v179, %v1166
  %v1168 = vpop.f32.mrf.mxu0
  %v1169 = vadd.f32 %v179, %v1168
  %1170 = vmatmul.bf16.gmra.mxu0 %v663
  %v1171 = vpop.f32.mrf.mxu0
  %v1172 = vadd.f32 %v179, %v1171
  %v1173 = vpop.f32.mrf.mxu0
  %v1174 = vadd.f32 %v179, %v1173
  %1175 = vmatmul.bf16.gmra.mxu0 %v665
  %v1176 = vpop.f32.mrf.mxu0
  %v1177 = vadd.f32 %v179, %v1176
  %v1178 = vpop.f32.mrf.mxu0
  %v1179 = vadd.f32 %v179, %v1178
  %1180 = vmatmul.bf16.gmra.mxu0 %v667
  %v1181 = vpop.f32.mrf.mxu0
  %v1182 = vadd.f32 %v179, %v1181
  %v1183 = vpop.f32.mrf.mxu0
  %v1184 = vadd.f32 %v179, %v1183
  %1185 = vmatmul.bf16.gmra.mxu0 %v669
  %v1186 = vpop.f32.mrf.mxu0
  %v1187 = vadd.f32 %v179, %v1186
  %v1188 = vpop.f32.mrf.mxu0
  %v1189 = vadd.f32 %v179, %v1188
  %1190 = vmatmul.bf16.gmra.mxu0 %v671
  %v1191 = vpop.f32.mrf.mxu0
  %v1192 = vadd.f32 %v179, %v1191
  %v1193 = vpop.f32.mrf.mxu0
  %v1194 = vadd.f32 %v179, %v1193
  %1195 = vmatmul.bf16.gmra.mxu0 %v673
  %v1196 = vpop.f32.mrf.mxu0
  %v1197 = vadd.f32 %v179, %v1196
  %v1198 = vpop.f32.mrf.mxu0
  %v1199 = vadd.f32 %v179, %v1198
  %1200 = vmatmul.bf16.gmra.mxu0 %v675
  %v1201 = vpop.f32.mrf.mxu0
  %v1202 = vadd.f32 %v179, %v1201
  %v1203 = vpop.f32.mrf.mxu0
  %v1204 = vadd.f32 %v179, %v1203
  %1205 = vmatmul.bf16.gmra.mxu0 %v677
  %v1206 = vpop.f32.mrf.mxu0
  %v1207 = vadd.f32 %v179, %v1206
  %v1208 = vpop.f32.mrf.mxu0
  %v1209 = vadd.f32 %v179, %v1208
  %1210 = vmatmul.bf16.gmra.mxu0 %v679
  %v1211 = vpop.f32.mrf.mxu0
  %v1212 = vadd.f32 %v179, %v1211
  %v1213 = vpop.f32.mrf.mxu0
  %v1214 = vadd.f32 %v179, %v1213
  %1215 = vmatmul.bf16.gmra.mxu0 %v681
  %v1216 = vpop.f32.mrf.mxu0
  %v1217 = vadd.f32 %v179, %v1216
  %v1218 = vpop.f32.mrf.mxu0
  %v1219 = vadd.f32 %v179, %v1218
  %1220 = vmatmul.bf16.gmra.mxu0 %v683
  %v1221 = vpop.f32.mrf.mxu0
  %v1222 = vadd.f32 %v179, %v1221
  %v1223 = vpop.f32.mrf.mxu0
  %v1224 = vadd.f32 %v179, %v1223
  %1225 = vmatmul.bf16.gmra.mxu0 %v685
  %v1226 = vpop.f32.mrf.mxu0
  %v1227 = vadd.f32 %v179, %v1226
  %v1228 = vpop.f32.mrf.mxu0
  %v1229 = vadd.f32 %v179, %v1228
  %1230 = vmatmul.bf16.gmra.mxu0 %v687
  %v1231 = vpop.f32.mrf.mxu0
  %v1232 = vadd.f32 %v179, %v1231
  %v1233 = vpop.f32.mrf.mxu0
  %v1234 = vadd.f32 %v179, %v1233
  %1235 = vmatmul.bf16.gmra.mxu0 %v689
  %v1236 = vpop.f32.mrf.mxu0
  %v1237 = vadd.f32 %v179, %v1236
  %v1238 = vpop.f32.mrf.mxu0
  %v1239 = vadd.f32 %v179, %v1238
  %1240 = vmatmul.bf16.gmra.mxu0 %v691
  %v1241 = vpop.f32.mrf.mxu0
  %v1242 = vadd.f32 %v179, %v1241
  %v1243 = vpop.f32.mrf.mxu0
  %v1244 = vadd.f32 %v179, %v1243
  %1245 = vdwg.mxu0
  %1246 = vmatpush.bf16.msra.mxu0 %v900
  %1247 = vmatpush.bf16.msra.mxu0 %v899
  %1248 = vmatpush.bf16.msra.mxu0 %v898
  %1249 = vmatpush.bf16.msra.mxu0 %v897
  %1250 = vmatpush.bf16.msra.mxu0 %v896
  %1251 = vmatpush.bf16.msra.mxu0 %v895
  %1252 = vmatpush.bf16.msra.mxu0 %v894
  %1253 = vmatpush.bf16.msra.mxu0 %v893
  %1254 = vmatmul.bf16.gmra.mxu0 %v566
  %v1255 = vpop.f32.mrf.mxu0
  %v1256 = vadd.f32 %v927, %v1255
  %v1257 = vpop.f32.mrf.mxu0
  %v1258 = vadd.f32 %v929, %v1257
  %1259 = vmatmul.bf16.gmra.mxu0 %v568
  %v1260 = vpop.f32.mrf.mxu0
  %v1261 = vadd.f32 %v932, %v1260
  %v1262 = vpop.f32.mrf.mxu0
  %v1263 = vadd.f32 %v934, %v1262
  %1264 = vmatmul.bf16.gmra.mxu0 %v570
  %v1265 = vpop.f32.mrf.mxu0
  %v1266 = vadd.f32 %v937, %v1265
  %v1267 = vpop.f32.mrf.mxu0
  %v1268 = vadd.f32 %v939, %v1267
  %1269 = vmatmul.bf16.gmra.mxu0 %v572
  %v1270 = vpop.f32.mrf.mxu0
  %v1271 = vadd.f32 %v942, %v1270
  %v1272 = vpop.f32.mrf.mxu0
  %v1273 = vadd.f32 %v944, %v1272
  %1274 = vmatmul.bf16.gmra.mxu0 %v574
  %v1275 = vpop.f32.mrf.mxu0
  %v1276 = vadd.f32 %v947, %v1275
  %v1277 = vpop.f32.mrf.mxu0
  %v1278 = vadd.f32 %v949, %v1277
  %1279 = vmatmul.bf16.gmra.mxu0 %v576
  %v1280 = vpop.f32.mrf.mxu0
  %v1281 = vadd.f32 %v952, %v1280
  %v1282 = vpop.f32.mrf.mxu0
  %v1283 = vadd.f32 %v954, %v1282
  %1284 = vmatmul.bf16.gmra.mxu0 %v578
  %v1285 = vpop.f32.mrf.mxu0
  %v1286 = vadd.f32 %v957, %v1285
  %v1287 = vpop.f32.mrf.mxu0
  %v1288 = vadd.f32 %v959, %v1287
  %1289 = vmatmul.bf16.gmra.mxu0 %v580
  %v1290 = vpop.f32.mrf.mxu0
  %v1291 = vadd.f32 %v962, %v1290
  %v1292 = vpop.f32.mrf.mxu0
  %v1293 = vadd.f32 %v964, %v1292
  %1294 = vmatmul.bf16.gmra.mxu0 %v582
  %v1295 = vpop.f32.mrf.mxu0
  %v1296 = vadd.f32 %v967, %v1295
  %v1297 = vpop.f32.mrf.mxu0
  %v1298 = vadd.f32 %v969, %v1297
  %1299 = vmatmul.bf16.gmra.mxu0 %v584
  %v1300 = vpop.f32.mrf.mxu0
  %v1301 = vadd.f32 %v972, %v1300
  %v1302 = vpop.f32.mrf.mxu0
  %v1303 = vadd.f32 %v974, %v1302
  %1304 = vmatmul.bf16.gmra.mxu0 %v586
  %v1305 = vpop.f32.mrf.mxu0
  %v1306 = vadd.f32 %v977, %v1305
  %v1307 = vpop.f32.mrf.mxu0
  %v1308 = vadd.f32 %v979, %v1307
  %1309 = vmatmul.bf16.gmra.mxu0 %v588
  %v1310 = vpop.f32.mrf.mxu0
  %v1311 = vadd.f32 %v982, %v1310
  %v1312 = vpop.f32.mrf.mxu0
  %v1313 = vadd.f32 %v984, %v1312
  %1314 = vmatmul.bf16.gmra.mxu0 %v590
  %v1315 = vpop.f32.mrf.mxu0
  %v1316 = vadd.f32 %v987, %v1315
  %v1317 = vpop.f32.mrf.mxu0
  %v1318 = vadd.f32 %v989, %v1317
  %1319 = vmatmul.bf16.gmra.mxu0 %v592
  %v1320 = vpop.f32.mrf.mxu0
  %v1321 = vadd.f32 %v992, %v1320
  %v1322 = vpop.f32.mrf.mxu0
  %v1323 = vadd.f32 %v994, %v1322
  %1324 = vmatmul.bf16.gmra.mxu0 %v594
  %v1325 = vpop.f32.mrf.mxu0
  %v1326 = vadd.f32 %v997, %v1325
  %v1327 = vpop.f32.mrf.mxu0
  %v1328 = vadd.f32 %v999, %v1327
  %1329 = vmatmul.bf16.gmra.mxu0 %v596
  %v1330 = vpop.f32.mrf.mxu0
  %v1331 = vadd.f32 %v1002, %v1330
  %v1332 = vpop.f32.mrf.mxu0
  %v1333 = vadd.f32 %v1004, %v1332
  %1334 = vmatmul.bf16.gmra.mxu0 %v598
  %v1335 = vpop.f32.mrf.mxu0
  %v1336 = vadd.f32 %v1007, %v1335
  %v1337 = vpop.f32.mrf.mxu0
  %v1338 = vadd.f32 %v1009, %v1337
  %1339 = vmatmul.bf16.gmra.mxu0 %v600
  %v1340 = vpop.f32.mrf.mxu0
  %v1341 = vadd.f32 %v1012, %v1340
  %v1342 = vpop.f32.mrf.mxu0
  %v1343 = vadd.f32 %v1014, %v1342
  %1344 = vmatmul.bf16.gmra.mxu0 %v602
  %v1345 = vpop.f32.mrf.mxu0
  %v1346 = vadd.f32 %v1017, %v1345
  %v1347 = vpop.f32.mrf.mxu0
  %v1348 = vadd.f32 %v1019, %v1347
  %1349 = vmatmul.bf16.gmra.mxu0 %v604
  %v1350 = vpop.f32.mrf.mxu0
  %v1351 = vadd.f32 %v1022, %v1350
  %v1352 = vpop.f32.mrf.mxu0
  %v1353 = vadd.f32 %v1024, %v1352
  %1354 = vmatmul.bf16.gmra.mxu0 %v606
  %v1355 = vpop.f32.mrf.mxu0
  %v1356 = vadd.f32 %v1027, %v1355
  %v1357 = vpop.f32.mrf.mxu0
  %v1358 = vadd.f32 %v1029, %v1357
  %1359 = vmatmul.bf16.gmra.mxu0 %v608
  %v1360 = vpop.f32.mrf.mxu0
  %v1361 = vadd.f32 %v1032, %v1360
  %v1362 = vpop.f32.mrf.mxu0
  %v1363 = vadd.f32 %v1034, %v1362
  %1364 = vmatmul.bf16.gmra.mxu0 %v610
  %v1365 = vpop.f32.mrf.mxu0
  %v1366 = vadd.f32 %v1037, %v1365
  %v1367 = vpop.f32.mrf.mxu0
  %v1368 = vadd.f32 %v1039, %v1367
  %1369 = vmatmul.bf16.gmra.mxu0 %v612
  %v1370 = vpop.f32.mrf.mxu0
  %v1371 = vadd.f32 %v1042, %v1370
  %v1372 = vpop.f32.mrf.mxu0
  %v1373 = vadd.f32 %v1044, %v1372
  %1374 = vmatmul.bf16.gmra.mxu0 %v614
  %v1375 = vpop.f32.mrf.mxu0
  %v1376 = vadd.f32 %v1047, %v1375
  %v1377 = vpop.f32.mrf.mxu0
  %v1378 = vadd.f32 %v1049, %v1377
  %1379 = vmatmul.bf16.gmra.mxu0 %v616
  %v1380 = vpop.f32.mrf.mxu0
  %v1381 = vadd.f32 %v1052, %v1380
  %v1382 = vpop.f32.mrf.mxu0
  %v1383 = vadd.f32 %v1054, %v1382
  %1384 = vmatmul.bf16.gmra.mxu0 %v618
  %v1385 = vpop.f32.mrf.mxu0
  %v1386 = vadd.f32 %v1057, %v1385
  %v1387 = vpop.f32.mrf.mxu0
  %v1388 = vadd.f32 %v1059, %v1387
  %1389 = vmatmul.bf16.gmra.mxu0 %v620
  %v1390 = vpop.f32.mrf.mxu0
  %v1391 = vadd.f32 %v1062, %v1390
  %v1392 = vpop.f32.mrf.mxu0
  %v1393 = vadd.f32 %v1064, %v1392
  %1394 = vmatmul.bf16.gmra.mxu0 %v622
  %v1395 = vpop.f32.mrf.mxu0
  %v1396 = vadd.f32 %v1067, %v1395
  %v1397 = vpop.f32.mrf.mxu0
  %v1398 = vadd.f32 %v1069, %v1397
  %1399 = vmatmul.bf16.gmra.mxu0 %v624
  %v1400 = vpop.f32.mrf.mxu0
  %v1401 = vadd.f32 %v1072, %v1400
  %v1402 = vpop.f32.mrf.mxu0
  %v1403 = vadd.f32 %v1074, %v1402
  %1404 = vmatmul.bf16.gmra.mxu0 %v626
  %v1405 = vpop.f32.mrf.mxu0
  %v1406 = vadd.f32 %v1077, %v1405
  %v1407 = vpop.f32.mrf.mxu0
  %v1408 = vadd.f32 %v1079, %v1407
  %1409 = vmatmul.bf16.gmra.mxu0 %v628
  %v1410 = vpop.f32.mrf.mxu0
  %v1411 = vadd.f32 %v1082, %v1410
  %v1412 = vpop.f32.mrf.mxu0
  %v1413 = vadd.f32 %v1084, %v1412
  %1414 = vmatmul.bf16.gmra.mxu0 %v630
  %v1415 = vpop.f32.mrf.mxu0
  %v1416 = vadd.f32 %v1087, %v1415
  %v1417 = vpop.f32.mrf.mxu0
  %v1418 = vadd.f32 %v1089, %v1417
  %1419 = vmatmul.bf16.gmra.mxu0 %v632
  %v1420 = vpop.f32.mrf.mxu0
  %v1421 = vadd.f32 %v1092, %v1420
  %v1422 = vpop.f32.mrf.mxu0
  %v1423 = vadd.f32 %v1094, %v1422
  %1424 = vmatmul.bf16.gmra.mxu0 %v634
  %v1425 = vpop.f32.mrf.mxu0
  %v1426 = vadd.f32 %v1097, %v1425
  %v1427 = vpop.f32.mrf.mxu0
  %v1428 = vadd.f32 %v1099, %v1427
  %1429 = vmatmul.bf16.gmra.mxu0 %v636
  %v1430 = vpop.f32.mrf.mxu0
  %v1431 = vadd.f32 %v1102, %v1430
  %v1432 = vpop.f32.mrf.mxu0
  %v1433 = vadd.f32 %v1104, %v1432
  %1434 = vmatmul.bf16.gmra.mxu0 %v638
  %v1435 = vpop.f32.mrf.mxu0
  %v1436 = vadd.f32 %v1107, %v1435
  %v1437 = vpop.f32.mrf.mxu0
  %v1438 = vadd.f32 %v1109, %v1437
  %1439 = vmatmul.bf16.gmra.mxu0 %v640
  %v1440 = vpop.f32.mrf.mxu0
  %v1441 = vadd.f32 %v1112, %v1440
  %v1442 = vpop.f32.mrf.mxu0
  %v1443 = vadd.f32 %v1114, %v1442
  %1444 = vmatmul.bf16.gmra.mxu0 %v642
  %v1445 = vpop.f32.mrf.mxu0
  %v1446 = vadd.f32 %v1117, %v1445
  %v1447 = vpop.f32.mrf.mxu0
  %v1448 = vadd.f32 %v1119, %v1447
  %1449 = vmatmul.bf16.gmra.mxu0 %v644
  %v1450 = vpop.f32.mrf.mxu0
  %v1451 = vadd.f32 %v1122, %v1450
  %v1452 = vpop.f32.mrf.mxu0
  %v1453 = vadd.f32 %v1124, %v1452
  %1454 = vmatmul.bf16.gmra.mxu0 %v646
  %v1455 = vpop.f32.mrf.mxu0
  %v1456 = vadd.f32 %v1127, %v1455
  %v1457 = vpop.f32.mrf.mxu0
  %v1458 = vadd.f32 %v1129, %v1457
  %1459 = vmatmul.bf16.gmra.mxu0 %v648
  %v1460 = vpop.f32.mrf.mxu0
  %v1461 = vadd.f32 %v1132, %v1460
  %v1462 = vpop.f32.mrf.mxu0
  %v1463 = vadd.f32 %v1134, %v1462
  %1464 = vmatmul.bf16.gmra.mxu0 %v650
  %v1465 = vpop.f32.mrf.mxu0
  %v1466 = vadd.f32 %v1137, %v1465
  %v1467 = vpop.f32.mrf.mxu0
  %v1468 = vadd.f32 %v1139, %v1467
  %1469 = vmatmul.bf16.gmra.mxu0 %v652
  %v1470 = vpop.f32.mrf.mxu0
  %v1471 = vadd.f32 %v1142, %v1470
  %v1472 = vpop.f32.mrf.mxu0
  %v1473 = vadd.f32 %v1144, %v1472
  %1474 = vmatmul.bf16.gmra.mxu0 %v654
  %v1475 = vpop.f32.mrf.mxu0
  %v1476 = vadd.f32 %v1147, %v1475
  %v1477 = vpop.f32.mrf.mxu0
  %v1478 = vadd.f32 %v1149, %v1477
  %1479 = vmatmul.bf16.gmra.mxu0 %v656
  %v1480 = vpop.f32.mrf.mxu0
  %v1481 = vadd.f32 %v1152, %v1480
  %v1482 = vpop.f32.mrf.mxu0
  %v1483 = vadd.f32 %v1154, %v1482
  %1484 = vmatmul.bf16.gmra.mxu0 %v658
  %v1485 = vpop.f32.mrf.mxu0
  %v1486 = vadd.f32 %v1157, %v1485
  %v1487 = vpop.f32.mrf.mxu0
  %v1488 = vadd.f32 %v1159, %v1487
  %1489 = vmatmul.bf16.gmra.mxu0 %v660
  %v1490 = vpop.f32.mrf.mxu0
  %v1491 = vadd.f32 %v1162, %v1490
  %v1492 = vpop.f32.mrf.mxu0
  %v1493 = vadd.f32 %v1164, %v1492
  %1494 = vmatmul.bf16.gmra.mxu0 %v662
  %v1495 = vpop.f32.mrf.mxu0
  %v1496 = vadd.f32 %v1167, %v1495
  %v1497 = vpop.f32.mrf.mxu0
  %v1498 = vadd.f32 %v1169, %v1497
  %1499 = vmatmul.bf16.gmra.mxu0 %v664
  %v1500 = vpop.f32.mrf.mxu0
  %v1501 = vadd.f32 %v1172, %v1500
  %v1502 = vpop.f32.mrf.mxu0
  %v1503 = vadd.f32 %v1174, %v1502
  %1504 = vmatmul.bf16.gmra.mxu0 %v666
  %v1505 = vpop.f32.mrf.mxu0
  %v1506 = vadd.f32 %v1177, %v1505
  %v1507 = vpop.f32.mrf.mxu0
  %v1508 = vadd.f32 %v1179, %v1507
  %1509 = vmatmul.bf16.gmra.mxu0 %v668
  %v1510 = vpop.f32.mrf.mxu0
  %v1511 = vadd.f32 %v1182, %v1510
  %v1512 = vpop.f32.mrf.mxu0
  %v1513 = vadd.f32 %v1184, %v1512
  %1514 = vmatmul.bf16.gmra.mxu0 %v670
  %v1515 = vpop.f32.mrf.mxu0
  %v1516 = vadd.f32 %v1187, %v1515
  %v1517 = vpop.f32.mrf.mxu0
  %v1518 = vadd.f32 %v1189, %v1517
  %1519 = vmatmul.bf16.gmra.mxu0 %v672
  %v1520 = vpop.f32.mrf.mxu0
  %v1521 = vadd.f32 %v1192, %v1520
  %v1522 = vpop.f32.mrf.mxu0
  %v1523 = vadd.f32 %v1194, %v1522
  %1524 = vmatmul.bf16.gmra.mxu0 %v674
  %v1525 = vpop.f32.mrf.mxu0
  %v1526 = vadd.f32 %v1197, %v1525
  %v1527 = vpop.f32.mrf.mxu0
  %v1528 = vadd.f32 %v1199, %v1527
  %1529 = vmatmul.bf16.gmra.mxu0 %v676
  %v1530 = vpop.f32.mrf.mxu0
  %v1531 = vadd.f32 %v1202, %v1530
  %v1532 = vpop.f32.mrf.mxu0
  %v1533 = vadd.f32 %v1204, %v1532
  %1534 = vmatmul.bf16.gmra.mxu0 %v678
  %v1535 = vpop.f32.mrf.mxu0
  %v1536 = vadd.f32 %v1207, %v1535
  %v1537 = vpop.f32.mrf.mxu0
  %v1538 = vadd.f32 %v1209, %v1537
  %1539 = vmatmul.bf16.gmra.mxu0 %v680
  %v1540 = vpop.f32.mrf.mxu0
  %v1541 = vadd.f32 %v1212, %v1540
  %v1542 = vpop.f32.mrf.mxu0
  %v1543 = vadd.f32 %v1214, %v1542
  %1544 = vmatmul.bf16.gmra.mxu0 %v682
  %v1545 = vpop.f32.mrf.mxu0
  %v1546 = vadd.f32 %v1217, %v1545
  %v1547 = vpop.f32.mrf.mxu0
  %v1548 = vadd.f32 %v1219, %v1547
  %1549 = vmatmul.bf16.gmra.mxu0 %v684
  %v1550 = vpop.f32.mrf.mxu0
  %v1551 = vadd.f32 %v1222, %v1550
  %v1552 = vpop.f32.mrf.mxu0
  %v1553 = vadd.f32 %v1224, %v1552
  %1554 = vmatmul.bf16.gmra.mxu0 %v686
  %v1555 = vpop.f32.mrf.mxu0
  %v1556 = vadd.f32 %v1227, %v1555
  %v1557 = vpop.f32.mrf.mxu0
  %v1558 = vadd.f32 %v1229, %v1557
  %1559 = vmatmul.bf16.gmra.mxu0 %v688
  %v1560 = vpop.f32.mrf.mxu0
  %v1561 = vadd.f32 %v1232, %v1560
  %v1562 = vpop.f32.mrf.mxu0
  %v1563 = vadd.f32 %v1234, %v1562
  %1564 = vmatmul.bf16.gmra.mxu0 %v690
  %v1565 = vpop.f32.mrf.mxu0
  %v1566 = vadd.f32 %v1237, %v1565
  %v1567 = vpop.f32.mrf.mxu0
  %v1568 = vadd.f32 %v1239, %v1567
  %1569 = vmatmul.bf16.gmra.mxu0 %v692
  %v1570 = vpop.f32.mrf.mxu0
  %v1571 = vadd.f32 %v1242, %v1570
  %v1572 = vpop.f32.mrf.mxu0
  %v1573 = vadd.f32 %v1244, %v1572
  %1574 = vdwg.mxu0
  %v1575 = vpack.c.bf16 %v1256, %v1256
  %v1576 = vpack.c.bf16 %v1258, %v1258
  %v1577 = vpack.c.bf16 %v1261, %v1261
  %v1578 = vpack.c.bf16 %v1263, %v1263
  %v1579 = vpack.c.bf16 %v1266, %v1266
  %v1580 = vpack.c.bf16 %v1268, %v1268
  %v1581 = vpack.c.bf16 %v1271, %v1271
  %v1582 = vpack.c.bf16 %v1273, %v1273
  %v1583 = vpack.c.bf16 %v1276, %v1276
  %v1584 = vpack.c.bf16 %v1278, %v1278
  %v1585 = vpack.c.bf16 %v1281, %v1281
  %v1586 = vpack.c.bf16 %v1283, %v1283
  %v1587 = vpack.c.bf16 %v1286, %v1286
  %v1588 = vpack.c.bf16 %v1288, %v1288
  %v1589 = vpack.c.bf16 %v1291, %v1291
  %v1590 = vpack.c.bf16 %v1293, %v1293
  %v1591 = vpack.c.bf16 %v1296, %v1296
  %v1592 = vpack.c.bf16 %v1298, %v1298
  %v1593 = vpack.c.bf16 %v1301, %v1301
  %v1594 = vpack.c.bf16 %v1303, %v1303
  %v1595 = vpack.c.bf16 %v1306, %v1306
  %v1596 = vpack.c.bf16 %v1308, %v1308
  %v1597 = vpack.c.bf16 %v1311, %v1311
  %v1598 = vpack.c.bf16 %v1313, %v1313
  %v1599 = vpack.c.bf16 %v1316, %v1316
  %v1600 = vpack.c.bf16 %v1318, %v1318
  %v1601 = vpack.c.bf16 %v1321, %v1321
  %v1602 = vpack.c.bf16 %v1323, %v1323
  %v1603 = vpack.c.bf16 %v1326, %v1326
  %v1604 = vpack.c.bf16 %v1328, %v1328
  %v1605 = vpack.c.bf16 %v1331, %v1331
  %v1606 = vpack.c.bf16 %v1333, %v1333
  %v1607 = vpack.c.bf16 %v1336, %v1336
  %v1608 = vpack.c.bf16 %v1338, %v1338
  %v1609 = vpack.c.bf16 %v1341, %v1341
  %v1610 = vpack.c.bf16 %v1343, %v1343
  %v1611 = vpack.c.bf16 %v1346, %v1346
  %v1612 = vpack.c.bf16 %v1348, %v1348
  %v1613 = vpack.c.bf16 %v1351, %v1351
  %v1614 = vpack.c.bf16 %v1353, %v1353
  %v1615 = vpack.c.bf16 %v1356, %v1356
  %v1616 = vpack.c.bf16 %v1358, %v1358
  %v1617 = vpack.c.bf16 %v1361, %v1361
  %v1618 = vpack.c.bf16 %v1363, %v1363
  %v1619 = vpack.c.bf16 %v1366, %v1366
  %v1620 = vpack.c.bf16 %v1368, %v1368
  %v1621 = vpack.c.bf16 %v1371, %v1371
  %v1622 = vpack.c.bf16 %v1373, %v1373
  %v1623 = vpack.c.bf16 %v1376, %v1376
  %v1624 = vpack.c.bf16 %v1378, %v1378
  %v1625 = vpack.c.bf16 %v1381, %v1381
  %v1626 = vpack.c.bf16 %v1383, %v1383
  %v1627 = vpack.c.bf16 %v1386, %v1386
  %v1628 = vpack.c.bf16 %v1388, %v1388
  %v1629 = vpack.c.bf16 %v1391, %v1391
  %v1630 = vpack.c.bf16 %v1393, %v1393
  %v1631 = vpack.c.bf16 %v1396, %v1396
  %v1632 = vpack.c.bf16 %v1398, %v1398
  %v1633 = vpack.c.bf16 %v1401, %v1401
  %v1634 = vpack.c.bf16 %v1403, %v1403
  %v1635 = vpack.c.bf16 %v1406, %v1406
  %v1636 = vpack.c.bf16 %v1408, %v1408
  %v1637 = vpack.c.bf16 %v1411, %v1411
  %v1638 = vpack.c.bf16 %v1413, %v1413
  %v1639 = vpack.c.bf16 %v1416, %v1416
  %v1640 = vpack.c.bf16 %v1418, %v1418
  %v1641 = vpack.c.bf16 %v1421, %v1421
  %v1642 = vpack.c.bf16 %v1423, %v1423
  %v1643 = vpack.c.bf16 %v1426, %v1426
  %v1644 = vpack.c.bf16 %v1428, %v1428
  %v1645 = vpack.c.bf16 %v1431, %v1431
  %v1646 = vpack.c.bf16 %v1433, %v1433
  %v1647 = vpack.c.bf16 %v1436, %v1436
  %v1648 = vpack.c.bf16 %v1438, %v1438
  %v1649 = vpack.c.bf16 %v1441, %v1441
  %v1650 = vpack.c.bf16 %v1443, %v1443
  %v1651 = vpack.c.bf16 %v1446, %v1446
  %v1652 = vpack.c.bf16 %v1448, %v1448
  %v1653 = vpack.c.bf16 %v1451, %v1451
  %v1654 = vpack.c.bf16 %v1453, %v1453
  %v1655 = vpack.c.bf16 %v1456, %v1456
  %v1656 = vpack.c.bf16 %v1458, %v1458
  %v1657 = vpack.c.bf16 %v1461, %v1461
  %v1658 = vpack.c.bf16 %v1463, %v1463
  %v1659 = vpack.c.bf16 %v1466, %v1466
  %v1660 = vpack.c.bf16 %v1468, %v1468
  %v1661 = vpack.c.bf16 %v1471, %v1471
  %v1662 = vpack.c.bf16 %v1473, %v1473
  %v1663 = vpack.c.bf16 %v1476, %v1476
  %v1664 = vpack.c.bf16 %v1478, %v1478
  %v1665 = vpack.c.bf16 %v1481, %v1481
  %v1666 = vpack.c.bf16 %v1483, %v1483
  %v1667 = vpack.c.bf16 %v1486, %v1486
  %v1668 = vpack.c.bf16 %v1488, %v1488
  %v1669 = vpack.c.bf16 %v1491, %v1491
  %v1670 = vpack.c.bf16 %v1493, %v1493
  %v1671 = vpack.c.bf16 %v1496, %v1496
  %v1672 = vpack.c.bf16 %v1498, %v1498
  %v1673 = vpack.c.bf16 %v1501, %v1501
  %v1674 = vpack.c.bf16 %v1503, %v1503
  %v1675 = vpack.c.bf16 %v1506, %v1506
  %v1676 = vpack.c.bf16 %v1508, %v1508
  %v1677 = vpack.c.bf16 %v1511, %v1511
  %v1678 = vpack.c.bf16 %v1513, %v1513
  %v1679 = vpack.c.bf16 %v1516, %v1516
  %v1680 = vpack.c.bf16 %v1518, %v1518
  %v1681 = vpack.c.bf16 %v1521, %v1521
  %v1682 = vpack.c.bf16 %v1523, %v1523
  %v1683 = vpack.c.bf16 %v1526, %v1526
  %v1684 = vpack.c.bf16 %v1528, %v1528
  %v1685 = vpack.c.bf16 %v1531, %v1531
  %v1686 = vpack.c.bf16 %v1533, %v1533
  %v1687 = vpack.c.bf16 %v1536, %v1536
  %v1688 = vpack.c.bf16 %v1538, %v1538
  %v1689 = vpack.c.bf16 %v1541, %v1541
  %v1690 = vpack.c.bf16 %v1543, %v1543
  %v1691 = vpack.c.bf16 %v1546, %v1546
  %v1692 = vpack.c.bf16 %v1548, %v1548
  %v1693 = vpack.c.bf16 %v1551, %v1551
  %v1694 = vpack.c.bf16 %v1553, %v1553
  %v1695 = vpack.c.bf16 %v1556, %v1556
  %v1696 = vpack.c.bf16 %v1558, %v1558
  %v1697 = vpack.c.bf16 %v1561, %v1561
  %v1698 = vpack.c.bf16 %v1563, %v1563
  %v1699 = vpack.c.bf16 %v1566, %v1566
  %v1700 = vpack.c.bf16 %v1568, %v1568
  %v1701 = vpack.c.bf16 %v1571, %v1571
  %v1702 = vpack.c.bf16 %v1573, %v1573
  %1703 = vst [vmem:[%s3] sm:$0xf] %v1575
  %1704 = vst [vmem:[%s3 + $0x4] sm:$0xf] %v1576
  %1705 = vst [vmem:[%s3 + $0x8] sm:$0xf] %v1577
  %1706 = vst [vmem:[%s3 + $0xc] sm:$0xf] %v1578
  %1707 = vst [vmem:[%s3 + $0x10] sm:$0xf] %v1579
  %1708 = vst [vmem:[%s3 + $0x14] sm:$0xf] %v1580
  %1709 = vst [vmem:[%s3 + $0x18] sm:$0xf] %v1581
  %1710 = vst [vmem:[%s3 + $0x1c] sm:$0xf] %v1582
  %1711 = vst [vmem:[%s3 + $0x20] sm:$0xf] %v1583
  %1712 = vst [vmem:[%s3 + $0x24] sm:$0xf] %v1584
  %1713 = vst [vmem:[%s3 + $0x28] sm:$0xf] %v1585
  %1714 = vst [vmem:[%s3 + $0x2c] sm:$0xf] %v1586
  %1715 = vst [vmem:[%s3 + $0x30] sm:$0xf] %v1587
  %1716 = vst [vmem:[%s3 + $0x34] sm:$0xf] %v1588
  %1717 = vst [vmem:[%s3 + $0x38] sm:$0xf] %v1589
  %1718 = vst [vmem:[%s3 + $0x3c] sm:$0xf] %v1590
  %1719 = vst [vmem:[%s3 + $0x40] sm:$0xf] %v1591
  %1720 = vst [vmem:[%s3 + $0x44] sm:$0xf] %v1592
  %1721 = vst [vmem:[%s3 + $0x48] sm:$0xf] %v1593
  %1722 = vst [vmem:[%s3 + $0x4c] sm:$0xf] %v1594
  %1723 = vst [vmem:[%s3 + $0x50] sm:$0xf] %v1595
  %1724 = vst [vmem:[%s3 + $0x54] sm:$0xf] %v1596
  %1725 = vst [vmem:[%s3 + $0x58] sm:$0xf] %v1597
  %1726 = vst [vmem:[%s3 + $0x5c] sm:$0xf] %v1598
  %1727 = vst [vmem:[%s3 + $0x60] sm:$0xf] %v1599
  %1728 = vst [vmem:[%s3 + $0x64] sm:$0xf] %v1600
  %1729 = vst [vmem:[%s3 + $0x68] sm:$0xf] %v1601
  %1730 = vst [vmem:[%s3 + $0x6c] sm:$0xf] %v1602
  %1731 = vst [vmem:[%s3 + $0x70] sm:$0xf] %v1603
  %1732 = vst [vmem:[%s3 + $0x74] sm:$0xf] %v1604
  %1733 = vst [vmem:[%s3 + $0x78] sm:$0xf] %v1605
  %1734 = vst [vmem:[%s3 + $0x7c] sm:$0xf] %v1606
  %1735 = vst [vmem:[%s3 + $0x80] sm:$0xf] %v1607
  %1736 = vst [vmem:[%s3 + $0x84] sm:$0xf] %v1608
  %1737 = vst [vmem:[%s3 + $0x88] sm:$0xf] %v1609
  %1738 = vst [vmem:[%s3 + $0x8c] sm:$0xf] %v1610
  %1739 = vst [vmem:[%s3 + $0x90] sm:$0xf] %v1611
  %1740 = vst [vmem:[%s3 + $0x94] sm:$0xf] %v1612
  %1741 = vst [vmem:[%s3 + $0x98] sm:$0xf] %v1613
  %1742 = vst [vmem:[%s3 + $0x9c] sm:$0xf] %v1614
  %1743 = vst [vmem:[%s3 + $0xa0] sm:$0xf] %v1615
  %1744 = vst [vmem:[%s3 + $0xa4] sm:$0xf] %v1616
  %1745 = vst [vmem:[%s3 + $0xa8] sm:$0xf] %v1617
  %1746 = vst [vmem:[%s3 + $0xac] sm:$0xf] %v1618
  %1747 = vst [vmem:[%s3 + $0xb0] sm:$0xf] %v1619
  %1748 = vst [vmem:[%s3 + $0xb4] sm:$0xf] %v1620
  %1749 = vst [vmem:[%s3 + $0xb8] sm:$0xf] %v1621
  %1750 = vst [vmem:[%s3 + $0xbc] sm:$0xf] %v1622
  %1751 = vst [vmem:[%s3 + $0xc0] sm:$0xf] %v1623
  %1752 = vst [vmem:[%s3 + $0xc4] sm:$0xf] %v1624
  %1753 = vst [vmem:[%s3 + $0xc8] sm:$0xf] %v1625
  %1754 = vst [vmem:[%s3 + $0xcc] sm:$0xf] %v1626
  %1755 = vst [vmem:[%s3 + $0xd0] sm:$0xf] %v1627
  %1756 = vst [vmem:[%s3 + $0xd4] sm:$0xf] %v1628
  %1757 = vst [vmem:[%s3 + $0xd8] sm:$0xf] %v1629
  %1758 = vst [vmem:[%s3 + $0xdc] sm:$0xf] %v1630
  %1759 = vst [vmem:[%s3 + $0xe0] sm:$0xf] %v1631
  %1760 = vst [vmem:[%s3 + $0xe4] sm:$0xf] %v1632
  %1761 = vst [vmem:[%s3 + $0xe8] sm:$0xf] %v1633
  %1762 = vst [vmem:[%s3 + $0xec] sm:$0xf] %v1634
  %1763 = vst [vmem:[%s3 + $0xf0] sm:$0xf] %v1635
  %1764 = vst [vmem:[%s3 + $0xf4] sm:$0xf] %v1636
  %1765 = vst [vmem:[%s3 + $0xf8] sm:$0xf] %v1637
  %1766 = vst [vmem:[%s3 + $0xfc] sm:$0xf] %v1638
  %1767 = vst [vmem:[%s3 + $0x100] sm:$0xf] %v1639
  %1768 = vst [vmem:[%s3 + $0x104] sm:$0xf] %v1640
  %1769 = vst [vmem:[%s3 + $0x108] sm:$0xf] %v1641
  %1770 = vst [vmem:[%s3 + $0x10c] sm:$0xf] %v1642
  %1771 = vst [vmem:[%s3 + $0x110] sm:$0xf] %v1643
  %1772 = vst [vmem:[%s3 + $0x114] sm:$0xf] %v1644
  %1773 = vst [vmem:[%s3 + $0x118] sm:$0xf] %v1645
  %1774 = vst [vmem:[%s3 + $0x11c] sm:$0xf] %v1646
  %1775 = vst [vmem:[%s3 + $0x120] sm:$0xf] %v1647
  %1776 = vst [vmem:[%s3 + $0x124] sm:$0xf] %v1648
  %1777 = vst [vmem:[%s3 + $0x128] sm:$0xf] %v1649
  %1778 = vst [vmem:[%s3 + $0x12c] sm:$0xf] %v1650
  %1779 = vst [vmem:[%s3 + $0x130] sm:$0xf] %v1651
  %1780 = vst [vmem:[%s3 + $0x134] sm:$0xf] %v1652
  %1781 = vst [vmem:[%s3 + $0x138] sm:$0xf] %v1653
  %1782 = vst [vmem:[%s3 + $0x13c] sm:$0xf] %v1654
  %1783 = vst [vmem:[%s3 + $0x140] sm:$0xf] %v1655
  %1784 = vst [vmem:[%s3 + $0x144] sm:$0xf] %v1656
  %1785 = vst [vmem:[%s3 + $0x148] sm:$0xf] %v1657
  %1786 = vst [vmem:[%s3 + $0x14c] sm:$0xf] %v1658
  %1787 = vst [vmem:[%s3 + $0x150] sm:$0xf] %v1659
  %1788 = vst [vmem:[%s3 + $0x154] sm:$0xf] %v1660
  %1789 = vst [vmem:[%s3 + $0x158] sm:$0xf] %v1661
  %1790 = vst [vmem:[%s3 + $0x15c] sm:$0xf] %v1662
  %1791 = vst [vmem:[%s3 + $0x160] sm:$0xf] %v1663
  %1792 = vst [vmem:[%s3 + $0x164] sm:$0xf] %v1664
  %1793 = vst [vmem:[%s3 + $0x168] sm:$0xf] %v1665
  %1794 = vst [vmem:[%s3 + $0x16c] sm:$0xf] %v1666
  %1795 = vst [vmem:[%s3 + $0x170] sm:$0xf] %v1667
  %1796 = vst [vmem:[%s3 + $0x174] sm:$0xf] %v1668
  %1797 = vst [vmem:[%s3 + $0x178] sm:$0xf] %v1669
  %1798 = vst [vmem:[%s3 + $0x17c] sm:$0xf] %v1670
  %1799 = vst [vmem:[%s3 + $0x180] sm:$0xf] %v1671
  %1800 = vst [vmem:[%s3 + $0x184] sm:$0xf] %v1672
  %1801 = vst [vmem:[%s3 + $0x188] sm:$0xf] %v1673
  %1802 = vst [vmem:[%s3 + $0x18c] sm:$0xf] %v1674
  %1803 = vst [vmem:[%s3 + $0x190] sm:$0xf] %v1675
  %1804 = vst [vmem:[%s3 + $0x194] sm:$0xf] %v1676
  %1805 = vst [vmem:[%s3 + $0x198] sm:$0xf] %v1677
  %1806 = vst [vmem:[%s3 + $0x19c] sm:$0xf] %v1678
  %1807 = vst [vmem:[%s3 + $0x1a0] sm:$0xf] %v1679
  %1808 = vst [vmem:[%s3 + $0x1a4] sm:$0xf] %v1680
  %1809 = vst [vmem:[%s3 + $0x1a8] sm:$0xf] %v1681
  %1810 = vst [vmem:[%s3 + $0x1ac] sm:$0xf] %v1682
  %1811 = vst [vmem:[%s3 + $0x1b0] sm:$0xf] %v1683
  %1812 = vst [vmem:[%s3 + $0x1b4] sm:$0xf] %v1684
  %1813 = vst [vmem:[%s3 + $0x1b8] sm:$0xf] %v1685
  %1814 = vst [vmem:[%s3 + $0x1bc] sm:$0xf] %v1686
  %1815 = vst [vmem:[%s3 + $0x1c0] sm:$0xf] %v1687
  %1816 = vst [vmem:[%s3 + $0x1c4] sm:$0xf] %v1688
  %1817 = vst [vmem:[%s3 + $0x1c8] sm:$0xf] %v1689
  %1818 = vst [vmem:[%s3 + $0x1cc] sm:$0xf] %v1690
  %1819 = vst [vmem:[%s3 + $0x1d0] sm:$0xf] %v1691
  %1820 = vst [vmem:[%s3 + $0x1d4] sm:$0xf] %v1692
  %1821 = vst [vmem:[%s3 + $0x1d8] sm:$0xf] %v1693
  %1822 = vst [vmem:[%s3 + $0x1dc] sm:$0xf] %v1694
  %1823 = vst [vmem:[%s3 + $0x1e0] sm:$0xf] %v1695
  %1824 = vst [vmem:[%s3 + $0x1e4] sm:$0xf] %v1696
  %1825 = vst [vmem:[%s3 + $0x1e8] sm:$0xf] %v1697
  %1826 = vst [vmem:[%s3 + $0x1ec] sm:$0xf] %v1698
  %1827 = vst [vmem:[%s3 + $0x1f0] sm:$0xf] %v1699
  %1828 = vst [vmem:[%s3 + $0x1f4] sm:$0xf] %v1700
  %1829 = vst [vmem:[%s3 + $0x1f8] sm:$0xf] %v1701
  %1830 = vst [vmem:[%s3 + $0x1fc] sm:$0xf] %v1702
  %v1831 = vadd.f32 %v1256, %v1258
  %v1832 = vadd.f32 %v1831, %v1261
  %v1833 = vadd.f32 %v1832, %v1263
  %v1834 = vadd.f32 %v1833, %v1266
  %v1835 = vadd.f32 %v1834, %v1268
  %v1836 = vadd.f32 %v1835, %v1271
  %v1837 = vadd.f32 %v1836, %v1273
  %v1838 = vadd.f32 %v1837, %v1276
  %v1839 = vadd.f32 %v1838, %v1278
  %v1840 = vadd.f32 %v1839, %v1281
  %v1841 = vadd.f32 %v1840, %v1283
  %v1842 = vadd.f32 %v1841, %v1286
  %v1843 = vadd.f32 %v1842, %v1288
  %v1844 = vadd.f32 %v1843, %v1291
  %v1845 = vadd.f32 %v1844, %v1293
  %v1846 = vadd.f32 %v1845, %v1296
  %v1847 = vadd.f32 %v1846, %v1298
  %v1848 = vadd.f32 %v1847, %v1301
  %v1849 = vadd.f32 %v1848, %v1303
  %v1850 = vadd.f32 %v1849, %v1306
  %v1851 = vadd.f32 %v1850, %v1308
  %v1852 = vadd.f32 %v1851, %v1311
  %v1853 = vadd.f32 %v1852, %v1313
  %v1854 = vadd.f32 %v1853, %v1316
  %v1855 = vadd.f32 %v1854, %v1318
  %v1856 = vadd.f32 %v1855, %v1321
  %v1857 = vadd.f32 %v1856, %v1323
  %v1858 = vadd.f32 %v1857, %v1326
  %v1859 = vadd.f32 %v1858, %v1328
  %v1860 = vadd.f32 %v1859, %v1331
  %v1861 = vadd.f32 %v1860, %v1333
  %v1862 = vadd.f32 %v1861, %v1336
  %v1863 = vadd.f32 %v1862, %v1338
  %v1864 = vadd.f32 %v1863, %v1341
  %v1865 = vadd.f32 %v1864, %v1343
  %v1866 = vadd.f32 %v1865, %v1346
  %v1867 = vadd.f32 %v1866, %v1348
  %v1868 = vadd.f32 %v1867, %v1351
  %v1869 = vadd.f32 %v1868, %v1353
  %v1870 = vadd.f32 %v1869, %v1356
  %v1871 = vadd.f32 %v1870, %v1358
  %v1872 = vadd.f32 %v1871, %v1361
  %v1873 = vadd.f32 %v1872, %v1363
  %v1874 = vadd.f32 %v1873, %v1366
  %v1875 = vadd.f32 %v1874, %v1368
  %v1876 = vadd.f32 %v1875, %v1371
  %v1877 = vadd.f32 %v1876, %v1373
  %v1878 = vadd.f32 %v1877, %v1376
  %v1879 = vadd.f32 %v1878, %v1378
  %v1880 = vadd.f32 %v1879, %v1381
  %v1881 = vadd.f32 %v1880, %v1383
  %v1882 = vadd.f32 %v1881, %v1386
  %v1883 = vadd.f32 %v1882, %v1388
  %v1884 = vadd.f32 %v1883, %v1391
  %v1885 = vadd.f32 %v1884, %v1393
  %v1886 = vadd.f32 %v1885, %v1396
  %v1887 = vadd.f32 %v1886, %v1398
  %v1888 = vadd.f32 %v1887, %v1401
  %v1889 = vadd.f32 %v1888, %v1403
  %v1890 = vadd.f32 %v1889, %v1406
  %v1891 = vadd.f32 %v1890, %v1408
  %v1892 = vadd.f32 %v1891, %v1411
  %v1893 = vadd.f32 %v1892, %v1413
  %v1894 = vadd.f32 %v1893, %v1416
  %v1895 = vadd.f32 %v1894, %v1418
  %v1896 = vadd.f32 %v1895, %v1421
  %v1897 = vadd.f32 %v1896, %v1423
  %v1898 = vadd.f32 %v1897, %v1426
  %v1899 = vadd.f32 %v1898, %v1428
  %v1900 = vadd.f32 %v1899, %v1431
  %v1901 = vadd.f32 %v1900, %v1433
  %v1902 = vadd.f32 %v1901, %v1436
  %v1903 = vadd.f32 %v1902, %v1438
  %v1904 = vadd.f32 %v1903, %v1441
  %v1905 = vadd.f32 %v1904, %v1443
  %v1906 = vadd.f32 %v1905, %v1446
  %v1907 = vadd.f32 %v1906, %v1448
  %v1908 = vadd.f32 %v1907, %v1451
  %v1909 = vadd.f32 %v1908, %v1453
  %v1910 = vadd.f32 %v1909, %v1456
  %v1911 = vadd.f32 %v1910, %v1458
  %v1912 = vadd.f32 %v1911, %v1461
  %v1913 = vadd.f32 %v1912, %v1463
  %v1914 = vadd.f32 %v1913, %v1466
  %v1915 = vadd.f32 %v1914, %v1468
  %v1916 = vadd.f32 %v1915, %v1471
  %v1917 = vadd.f32 %v1916, %v1473
  %v1918 = vadd.f32 %v1917, %v1476
  %v1919 = vadd.f32 %v1918, %v1478
  %v1920 = vadd.f32 %v1919, %v1481
  %v1921 = vadd.f32 %v1920, %v1483
  %v1922 = vadd.f32 %v1921, %v1486
  %v1923 = vadd.f32 %v1922, %v1488
  %v1924 = vadd.f32 %v1923, %v1491
  %v1925 = vadd.f32 %v1924, %v1493
  %v1926 = vadd.f32 %v1925, %v1496
  %v1927 = vadd.f32 %v1926, %v1498
  %v1928 = vadd.f32 %v1927, %v1501
  %v1929 = vadd.f32 %v1928, %v1503
  %v1930 = vadd.f32 %v1929, %v1506
  %v1931 = vadd.f32 %v1930, %v1508
  %v1932 = vadd.f32 %v1931, %v1511
  %v1933 = vadd.f32 %v1932, %v1513
  %v1934 = vadd.f32 %v1933, %v1516
  %v1935 = vadd.f32 %v1934, %v1518
  %v1936 = vadd.f32 %v1935, %v1521
  %v1937 = vadd.f32 %v1936, %v1523
  %v1938 = vadd.f32 %v1937, %v1526
  %v1939 = vadd.f32 %v1938, %v1528
  %v1940 = vadd.f32 %v1939, %v1531
  %v1941 = vadd.f32 %v1940, %v1533
  %v1942 = vadd.f32 %v1941, %v1536
  %v1943 = vadd.f32 %v1942, %v1538
  %v1944 = vadd.f32 %v1943, %v1541
  %v1945 = vadd.f32 %v1944, %v1543
  %v1946 = vadd.f32 %v1945, %v1546
  %v1947 = vadd.f32 %v1946, %v1548
  %v1948 = vadd.f32 %v1947, %v1551
  %v1949 = vadd.f32 %v1948, %v1553
  %v1950 = vadd.f32 %v1949, %v1556
  %v1951 = vadd.f32 %v1950, %v1558
  %v1952 = vadd.f32 %v1951, %v1561
  %v1953 = vadd.f32 %v1952, %v1563
  %v1954 = vadd.f32 %v1953, %v1566
  %v1955 = vadd.f32 %v1954, %v1568
  %v1956 = vadd.f32 %v1955, %v1571
  %v1957 = vadd.f32 %v1956, %v1573
  %v1958 = vrot.slane %v1957, 4
  %v1959 = vadd.f32 %v1957, %v1958
  %v1960 = vrot.slane %v1959, 2
  %v1961 = vadd.f32 %v1959, %v1960
  %v1962 = vrot.slane %v1961, 1
  %v1963 = vadd.f32 %v1961, %v1962
  %v1964 = vmul.f32 %v1256, %v1256
  %v1965 = vmul.f32 %v1258, %v1258
  %v1966 = vmul.f32 %v1261, %v1261
  %v1967 = vmul.f32 %v1263, %v1263
  %v1968 = vmul.f32 %v1266, %v1266
  %v1969 = vmul.f32 %v1268, %v1268
  %v1970 = vmul.f32 %v1271, %v1271
  %v1971 = vmul.f32 %v1273, %v1273
  %v1972 = vmul.f32 %v1276, %v1276
  %v1973 = vmul.f32 %v1278, %v1278
  %v1974 = vmul.f32 %v1281, %v1281
  %v1975 = vmul.f32 %v1283, %v1283
  %v1976 = vmul.f32 %v1286, %v1286
  %v1977 = vmul.f32 %v1288, %v1288
  %v1978 = vmul.f32 %v1291, %v1291
  %v1979 = vmul.f32 %v1293, %v1293
  %v1980 = vmul.f32 %v1296, %v1296
  %v1981 = vmul.f32 %v1298, %v1298
  %v1982 = vmul.f32 %v1301, %v1301
  %v1983 = vmul.f32 %v1303, %v1303
  %v1984 = vmul.f32 %v1306, %v1306
  %v1985 = vmul.f32 %v1308, %v1308
  %v1986 = vmul.f32 %v1311, %v1311
  %v1987 = vmul.f32 %v1313, %v1313
  %v1988 = vmul.f32 %v1316, %v1316
  %v1989 = vmul.f32 %v1318, %v1318
  %v1990 = vmul.f32 %v1321, %v1321
  %v1991 = vmul.f32 %v1323, %v1323
  %v1992 = vmul.f32 %v1326, %v1326
  %v1993 = vmul.f32 %v1328, %v1328
  %v1994 = vmul.f32 %v1331, %v1331
  %v1995 = vmul.f32 %v1333, %v1333
  %v1996 = vmul.f32 %v1336, %v1336
  %v1997 = vmul.f32 %v1338, %v1338
  %v1998 = vmul.f32 %v1341, %v1341
  %v1999 = vmul.f32 %v1343, %v1343
  %v2000 = vmul.f32 %v1346, %v1346
  %v2001 = vmul.f32 %v1348, %v1348
  %v2002 = vmul.f32 %v1351, %v1351
  %v2003 = vmul.f32 %v1353, %v1353
  %v2004 = vmul.f32 %v1356, %v1356
  %v2005 = vmul.f32 %v1358, %v1358
  %v2006 = vmul.f32 %v1361, %v1361
  %v2007 = vmul.f32 %v1363, %v1363
  %v2008 = vmul.f32 %v1366, %v1366
  %v2009 = vmul.f32 %v1368, %v1368
  %v2010 = vmul.f32 %v1371, %v1371
  %v2011 = vmul.f32 %v1373, %v1373
  %v2012 = vmul.f32 %v1376, %v1376
  %v2013 = vmul.f32 %v1378, %v1378
  %v2014 = vmul.f32 %v1381, %v1381
  %v2015 = vmul.f32 %v1383, %v1383
  %v2016 = vmul.f32 %v1386, %v1386
  %v2017 = vmul.f32 %v1388, %v1388
  %v2018 = vmul.f32 %v1391, %v1391
  %v2019 = vmul.f32 %v1393, %v1393
  %v2020 = vmul.f32 %v1396, %v1396
  %v2021 = vmul.f32 %v1398, %v1398
  %v2022 = vmul.f32 %v1401, %v1401
  %v2023 = vmul.f32 %v1403, %v1403
  %v2024 = vmul.f32 %v1406, %v1406
  %v2025 = vmul.f32 %v1408, %v1408
  %v2026 = vmul.f32 %v1411, %v1411
  %v2027 = vmul.f32 %v1413, %v1413
  %v2028 = vmul.f32 %v1416, %v1416
  %v2029 = vmul.f32 %v1418, %v1418
  %v2030 = vmul.f32 %v1421, %v1421
  %v2031 = vmul.f32 %v1423, %v1423
  %v2032 = vmul.f32 %v1426, %v1426
  %v2033 = vmul.f32 %v1428, %v1428
  %v2034 = vmul.f32 %v1431, %v1431
  %v2035 = vmul.f32 %v1433, %v1433
  %v2036 = vmul.f32 %v1436, %v1436
  %v2037 = vmul.f32 %v1438, %v1438
  %v2038 = vmul.f32 %v1441, %v1441
  %v2039 = vmul.f32 %v1443, %v1443
  %v2040 = vmul.f32 %v1446, %v1446
  %v2041 = vmul.f32 %v1448, %v1448
  %v2042 = vmul.f32 %v1451, %v1451
  %v2043 = vmul.f32 %v1453, %v1453
  %v2044 = vmul.f32 %v1456, %v1456
  %v2045 = vmul.f32 %v1458, %v1458
  %v2046 = vmul.f32 %v1461, %v1461
  %v2047 = vmul.f32 %v1463, %v1463
  %v2048 = vmul.f32 %v1466, %v1466
  %v2049 = vmul.f32 %v1468, %v1468
  %v2050 = vmul.f32 %v1471, %v1471
  %v2051 = vmul.f32 %v1473, %v1473
  %v2052 = vmul.f32 %v1476, %v1476
  %v2053 = vmul.f32 %v1478, %v1478
  %v2054 = vmul.f32 %v1481, %v1481
  %v2055 = vmul.f32 %v1483, %v1483
  %v2056 = vmul.f32 %v1486, %v1486
  %v2057 = vmul.f32 %v1488, %v1488
  %v2058 = vmul.f32 %v1491, %v1491
  %v2059 = vmul.f32 %v1493, %v1493
  %v2060 = vmul.f32 %v1496, %v1496
  %v2061 = vmul.f32 %v1498, %v1498
  %v2062 = vmul.f32 %v1501, %v1501
  %v2063 = vmul.f32 %v1503, %v1503
  %v2064 = vmul.f32 %v1506, %v1506
  %v2065 = vmul.f32 %v1508, %v1508
  %v2066 = vmul.f32 %v1511, %v1511
  %v2067 = vmul.f32 %v1513, %v1513
  %v2068 = vmul.f32 %v1516, %v1516
  %v2069 = vmul.f32 %v1518, %v1518
  %v2070 = vmul.f32 %v1521, %v1521
  %v2071 = vmul.f32 %v1523, %v1523
  %v2072 = vmul.f32 %v1526, %v1526
  %v2073 = vmul.f32 %v1528, %v1528
  %v2074 = vmul.f32 %v1531, %v1531
  %v2075 = vmul.f32 %v1533, %v1533
  %v2076 = vmul.f32 %v1536, %v1536
  %v2077 = vmul.f32 %v1538, %v1538
  %v2078 = vmul.f32 %v1541, %v1541
  %v2079 = vmul.f32 %v1543, %v1543
  %v2080 = vmul.f32 %v1546, %v1546
  %v2081 = vmul.f32 %v1548, %v1548
  %v2082 = vmul.f32 %v1551, %v1551
  %v2083 = vmul.f32 %v1553, %v1553
  %v2084 = vmul.f32 %v1556, %v1556
  %v2085 = vmul.f32 %v1558, %v1558
  %v2086 = vmul.f32 %v1561, %v1561
  %v2087 = vmul.f32 %v1563, %v1563
  %v2088 = vmul.f32 %v1566, %v1566
  %v2089 = vmul.f32 %v1568, %v1568
  %v2090 = vmul.f32 %v1571, %v1571
  %v2091 = vmul.f32 %v1573, %v1573
  %v2092 = vadd.f32 %v1964, %v1965
  %v2093 = vadd.f32 %v2092, %v1966
  %v2094 = vadd.f32 %v2093, %v1967
  %v2095 = vadd.f32 %v2094, %v1968
  %v2096 = vadd.f32 %v2095, %v1969
  %v2097 = vadd.f32 %v2096, %v1970
  %v2098 = vadd.f32 %v2097, %v1971
  %v2099 = vadd.f32 %v2098, %v1972
  %v2100 = vadd.f32 %v2099, %v1973
  %v2101 = vadd.f32 %v2100, %v1974
  %v2102 = vadd.f32 %v2101, %v1975
  %v2103 = vadd.f32 %v2102, %v1976
  %v2104 = vadd.f32 %v2103, %v1977
  %v2105 = vadd.f32 %v2104, %v1978
  %v2106 = vadd.f32 %v2105, %v1979
  %v2107 = vadd.f32 %v2106, %v1980
  %v2108 = vadd.f32 %v2107, %v1981
  %v2109 = vadd.f32 %v2108, %v1982
  %v2110 = vadd.f32 %v2109, %v1983
  %v2111 = vadd.f32 %v2110, %v1984
  %v2112 = vadd.f32 %v2111, %v1985
  %v2113 = vadd.f32 %v2112, %v1986
  %v2114 = vadd.f32 %v2113, %v1987
  %v2115 = vadd.f32 %v2114, %v1988
  %v2116 = vadd.f32 %v2115, %v1989
  %v2117 = vadd.f32 %v2116, %v1990
  %v2118 = vadd.f32 %v2117, %v1991
  %v2119 = vadd.f32 %v2118, %v1992
  %v2120 = vadd.f32 %v2119, %v1993
  %v2121 = vadd.f32 %v2120, %v1994
  %v2122 = vadd.f32 %v2121, %v1995
  %v2123 = vadd.f32 %v2122, %v1996
  %v2124 = vadd.f32 %v2123, %v1997
  %v2125 = vadd.f32 %v2124, %v1998
  %v2126 = vadd.f32 %v2125, %v1999
  %v2127 = vadd.f32 %v2126, %v2000
  %v2128 = vadd.f32 %v2127, %v2001
  %v2129 = vadd.f32 %v2128, %v2002
  %v2130 = vadd.f32 %v2129, %v2003
  %v2131 = vadd.f32 %v2130, %v2004
  %v2132 = vadd.f32 %v2131, %v2005
  %v2133 = vadd.f32 %v2132, %v2006
  %v2134 = vadd.f32 %v2133, %v2007
  %v2135 = vadd.f32 %v2134, %v2008
  %v2136 = vadd.f32 %v2135, %v2009
  %v2137 = vadd.f32 %v2136, %v2010
  %v2138 = vadd.f32 %v2137, %v2011
  %v2139 = vadd.f32 %v2138, %v2012
  %v2140 = vadd.f32 %v2139, %v2013
  %v2141 = vadd.f32 %v2140, %v2014
  %v2142 = vadd.f32 %v2141, %v2015
  %v2143 = vadd.f32 %v2142, %v2016
  %v2144 = vadd.f32 %v2143, %v2017
  %v2145 = vadd.f32 %v2144, %v2018
  %v2146 = vadd.f32 %v2145, %v2019
  %v2147 = vadd.f32 %v2146, %v2020
  %v2148 = vadd.f32 %v2147, %v2021
  %v2149 = vadd.f32 %v2148, %v2022
  %v2150 = vadd.f32 %v2149, %v2023
  %v2151 = vadd.f32 %v2150, %v2024
  %v2152 = vadd.f32 %v2151, %v2025
  %v2153 = vadd.f32 %v2152, %v2026
  %v2154 = vadd.f32 %v2153, %v2027
  %v2155 = vadd.f32 %v2154, %v2028
  %v2156 = vadd.f32 %v2155, %v2029
  %v2157 = vadd.f32 %v2156, %v2030
  %v2158 = vadd.f32 %v2157, %v2031
  %v2159 = vadd.f32 %v2158, %v2032
  %v2160 = vadd.f32 %v2159, %v2033
  %v2161 = vadd.f32 %v2160, %v2034
  %v2162 = vadd.f32 %v2161, %v2035
  %v2163 = vadd.f32 %v2162, %v2036
  %v2164 = vadd.f32 %v2163, %v2037
  %v2165 = vadd.f32 %v2164, %v2038
  %v2166 = vadd.f32 %v2165, %v2039
  %v2167 = vadd.f32 %v2166, %v2040
  %v2168 = vadd.f32 %v2167, %v2041
  %v2169 = vadd.f32 %v2168, %v2042
  %v2170 = vadd.f32 %v2169, %v2043
  %v2171 = vadd.f32 %v2170, %v2044
  %v2172 = vadd.f32 %v2171, %v2045
  %v2173 = vadd.f32 %v2172, %v2046
  %v2174 = vadd.f32 %v2173, %v2047
  %v2175 = vadd.f32 %v2174, %v2048
  %v2176 = vadd.f32 %v2175, %v2049
  %v2177 = vadd.f32 %v2176, %v2050
  %v2178 = vadd.f32 %v2177, %v2051
  %v2179 = vadd.f32 %v2178, %v2052
  %v2180 = vadd.f32 %v2179, %v2053
  %v2181 = vadd.f32 %v2180, %v2054
  %v2182 = vadd.f32 %v2181, %v2055
  %v2183 = vadd.f32 %v2182, %v2056
  %v2184 = vadd.f32 %v2183, %v2057
  %v2185 = vadd.f32 %v2184, %v2058
  %v2186 = vadd.f32 %v2185, %v2059
  %v2187 = vadd.f32 %v2186, %v2060
  %v2188 = vadd.f32 %v2187, %v2061
  %v2189 = vadd.f32 %v2188, %v2062
  %v2190 = vadd.f32 %v2189, %v2063
  %v2191 = vadd.f32 %v2190, %v2064
  %v2192 = vadd.f32 %v2191, %v2065
  %v2193 = vadd.f32 %v2192, %v2066
  %v2194 = vadd.f32 %v2193, %v2067
  %v2195 = vadd.f32 %v2194, %v2068
  %v2196 = vadd.f32 %v2195, %v2069
  %v2197 = vadd.f32 %v2196, %v2070
  %v2198 = vadd.f32 %v2197, %v2071
  %v2199 = vadd.f32 %v2198, %v2072
  %v2200 = vadd.f32 %v2199, %v2073
  %v2201 = vadd.f32 %v2200, %v2074
  %v2202 = vadd.f32 %v2201, %v2075
  %v2203 = vadd.f32 %v2202, %v2076
  %v2204 = vadd.f32 %v2203, %v2077
  %v2205 = vadd.f32 %v2204, %v2078
  %v2206 = vadd.f32 %v2205, %v2079
  %v2207 = vadd.f32 %v2206, %v2080
  %v2208 = vadd.f32 %v2207, %v2081
  %v2209 = vadd.f32 %v2208, %v2082
  %v2210 = vadd.f32 %v2209, %v2083
  %v2211 = vadd.f32 %v2210, %v2084
  %v2212 = vadd.f32 %v2211, %v2085
  %v2213 = vadd.f32 %v2212, %v2086
  %v2214 = vadd.f32 %v2213, %v2087
  %v2215 = vadd.f32 %v2214, %v2088
  %v2216 = vadd.f32 %v2215, %v2089
  %v2217 = vadd.f32 %v2216, %v2090
  %v2218 = vadd.f32 %v2217, %v2091
  %v2219 = vrot.slane %v2218, 4
  %v2220 = vadd.f32 %v2218, %v2219
  %v2221 = vrot.slane %v2220, 2
  %v2222 = vadd.f32 %v2220, %v2221
  %v2223 = vrot.slane %v2222, 1
  %v2224 = vadd.f32 %v2222, %v2223
  %2225 = vst [vmem:[%s4] sm:$0x1] %v1963
  %2226 = vst [vmem:[%s5] sm:$0x1] %v2224
  // Predicated region
  $region14: #{_lambda_.9} parent=0 // pred_check
    _
  $region15: #{_lambda_.9} parent=0 // pred_check_branch
    %2228 = sbr.rel (0) target = $region17
  $region16: #{_lambda_.9} parent=0 // pred_region
    _
  $region17: #{_lambda_.9} parent=0 // pred_fallthru
    _
  // Predicated region
  $region18: #{_lambda_.9} parent=0 // pred_check
    _
  $region19: #{_lambda_.9} parent=0 // pred_check_branch
    %2230 = sbr.rel (0) target = $region21
  $region20: #{_lambda_.9} parent=0 // pred_region
    _
  $region21: #{_lambda_.9} parent=0 // pred_fallthru
    _
  // Predicated region
  $region22: #{_lambda_.9} parent=0 // pred_check
    _
  $region23: #{_lambda_.9} parent=0 // pred_check_branch
    %2232 = sbr.rel (0) target = $region25
  $region24: #{_lambda_.9} parent=0 // pred_region
    _
  $region25: #{_lambda_.9} parent=0 // pred_fallthru
    _
  // Predicated region
  $region26: #{_lambda_.9} parent=0 // pred_check
    _
  $region27: #{_lambda_.9} parent=0 // pred_check_branch
    %2234 = sbr.rel (0) target = $region29
  $region28: #{_lambda_.9} parent=0 // pred_region
    _
  $region29: #{_lambda_.9} parent=0 // pred_fallthru
    _
  // Predicated region
  $region30: #{_lambda_.9} parent=0 // pred_check
    _
  $region31: #{_lambda_.9} parent=0 // pred_check_branch
    %2236 = sbr.rel (0) target = $region33
  $region32: #{_lambda_.9} parent=0 // pred_region
    _
  $region33: #{_lambda_.9} parent=0 // pred_fallthru
    _
  // Predicated region
  $region34: #{_lambda_.9} parent=0 // pred_check
    _
  $region35: #{_lambda_.9} parent=0 // pred_check_branch
    %2238 = sbr.rel (0) target = $region37
  $region36: #{_lambda_.9} parent=0 // pred_region
    _
  $region37: #{_lambda_.9} parent=0 // pred_fallthru
    _

</llo_original>
